<compile_context>
chip_gen: v5e
topology: v5e:2x2
jax: 0.10.0
libtpu: 0.0.40
codegen_flags: <defaults>
</compile_context>

<pallas_src>
import jax
import jax.numpy as jnp
from jax.experimental import pallas as pl
from jax.experimental.pallas import tpu as pltpu


_VMEM_LIMIT = 32 * 1024 * 1024  # <= physical VMEM on v5e/v6e/v7x; >= every default.


# ----------------------------------------------------------------------------
# Tiling helpers (128/256-aligned tiles + explicit padding, per review)
# ----------------------------------------------------------------------------

def _round_up(x, m):
    return -(-x // m) * m


def _hw_tiling(hw, small_limit=512, candidates=(512, 384, 256, 128),
               max_waste=0.08, tj_target=1024, tc_target=512):
    """Pick (hw_pad, ti, tj, tc): MXU/lane-aligned tiles along the flattened
    spatial axis.  Small hw -> one 128-aligned tile.  Large hw -> the largest
    aligned base tile whose padding waste is <= max_waste; tj (key-resident
    attention tile) and tc (column tile of the 1x1-conv kernels) grow to
    aligned multiples of the base that still divide hw_pad."""
    if hw <= small_limit:
        hw_pad = _round_up(hw, 128)
        return hw_pad, hw_pad, hw_pad, hw_pad
    base = candidates[-1]
    for t in candidates:
        if (_round_up(hw, t) - hw) / hw <= max_waste:
            base = t
            break
    hw_pad = _round_up(hw, base)

    def grow(target):
        best = base
        k = 2
        while k * base <= target:
            if hw_pad % (k * base) == 0:
                best = k * base
            k += 1
        return best

    return hw_pad, base, grow(tj_target), grow(tc_target)


def _default_exp_dtype():
    """bf16 exp on v6e/v7x (bf16 EUP); f32 on v5e and older (no bf16 EUP)."""
    try:
        kind = jax.devices()[0].device_kind.lower()
    except Exception:  # pragma: no cover
        return jnp.float32
    if any(g in kind for g in ("v2", "v3", "v4", "v5")):
        return jnp.float32
    return jnp.bfloat16


def _pad_hw(x, hw_pad):
    pad = hw_pad - x.shape[-1]
    if pad == 0:
        return x
    return jnp.pad(x, [(0, 0)] * (x.ndim - 1) + [(0, pad)])


# ----------------------------------------------------------------------------
# Kernel builders
# ----------------------------------------------------------------------------

def _make_qk_kernel(num_x, cq):
    """Fused cross-modal concat + img|node 1x1 conv + folded BN + ReLU.
    Inputs are channel-major pieces; output query is token-major (one in-kernel
    transpose per tile so the attention kernel never transposes per step),
    output key stays channel-major."""

    def kernel(*refs):
        x_refs = refs[:num_x]
        w_refs = refs[num_x:2 * num_x]
        s_ref, b_ref, q_ref, k_ref = refs[2 * num_x:2 * num_x + 4]
        acc = jnp.dot(w_refs[0][...], x_refs[0][...],
                      preferred_element_type=jnp.float32)
        for t in range(1, num_x):
            acc = acc + jnp.dot(w_refs[t][...], x_refs[t][...],
                                preferred_element_type=jnp.float32)
        y = jnp.maximum(acc * s_ref[...] + b_ref[...], 0.0)     # (2cq, tc) f32
        k_ref[...] = y[cq:, :].astype(k_ref.dtype)              # channel-major key
        q_ref[...] = jnp.transpose(y[:cq, :]).astype(q_ref.dtype)  # token-major query

    return kernel


def _make_dep_attn_kernel(cp, ti, mask_bound, exp_dtype):
    """Dep_Context attention, flash-style online softmax (reduction over query
    positions i).  p carries an appended all-ones channel so prob@p also yields
    the softmax denominator (no explicit cross-lane sum)."""

    def kernel(q_ref, k_ref, p_ref, o_ref, m_sc, acc_sc):
        i = pl.program_id(2)

        @pl.when(i == 0)
        def _():
            m_sc[...] = jnp.full_like(m_sc, -jnp.inf)
            acc_sc[...] = jnp.zeros_like(acc_sc)

        # energy tile: (ti, tj) = q_tok(ti, cq) @ key_T(cq, tj)  -- no transposes
        s = jnp.dot(q_ref[...], k_ref[...], preferred_element_type=jnp.float32)
        if mask_bound is not None:  # padded query rows must not enter the softmax
            rows = i * ti + jax.lax.broadcasted_iota(jnp.int32, (ti, 1), 0)
            s = jnp.where(rows < mask_bound, s, -1e30)

        m_prev = m_sc[...]                                         # (1, tj)
        m_new = jnp.maximum(m_prev, jnp.max(s, axis=0, keepdims=True))
        alpha = jnp.exp(m_prev - m_new)
        prob = jnp.exp((s - m_new).astype(exp_dtype)).astype(jnp.bfloat16)
        acc_sc[...] = alpha * acc_sc[...] + jnp.dot(
            p_ref[...], prob, preferred_element_type=jnp.float32)  # (cp+1, tj)
        m_sc[...] = m_new

        @pl.when(i == pl.num_programs(2) - 1)
        def _():
            denom = acc_sc[cp:cp + 1, :]
            o_ref[...] = (acc_sc[0:cp, :] *
                          pl.reciprocal(denom, approx=True)).astype(o_ref.dtype)

    return kernel


def _make_proj_att_kernel(head_bounds):
    """Fused F_cont projection (1x1 conv + BN + ReLU) -> all att heads (1x1
    conv + bias) -> per-head channel softmax (per-head max -> no NaN risk).
    Everything channel-major; outputs are lane-dense."""

    def kernel(co_ref, wp_ref, ps_ref, pb_ref, aw_ref, ab_ref,
               f_ref, lg_ref, sm_ref):
        f = jnp.dot(wp_ref[...], co_ref[...], preferred_element_type=jnp.float32)
        f = jnp.maximum(f * ps_ref[...] + pb_ref[...], 0.0)        # (hidden, tc)
        f_ref[...] = f.astype(f_ref.dtype)

        logits = jnp.dot(aw_ref[...], f.astype(jnp.bfloat16),
                         preferred_element_type=jnp.float32) + ab_ref[...]  # (T, tc)
        lg_ref[...] = logits.astype(lg_ref.dtype)

        t_total = logits.shape[0]
        row_id = jax.lax.broadcasted_iota(jnp.int32, (t_total, 1), 0)
        m_full = jnp.zeros_like(logits)
        for (s0, s1) in head_bounds:                # static, few heads
            mask = (row_id >= s0) & (row_id < s1)
            mh = jnp.max(jnp.where(mask, logits, -jnp.inf), axis=0, keepdims=True)
            m_full = m_full + jnp.where(mask, mh, 0.0)
        e = jnp.exp(logits - m_full)
        d_full = jnp.zeros_like(logits)
        for (s0, s1) in head_bounds:
            mask = (row_id >= s0) & (row_id < s1)
            dh = jnp.sum(jnp.where(mask, e, 0.0), axis=0, keepdims=True)
            d_full = d_full + jnp.where(mask, dh, 0.0)
        sm_ref[...] = (e * pl.reciprocal(d_full, approx=True)).astype(sm_ref.dtype)

    return kernel


# ----------------------------------------------------------------------------
# pallas_call wrappers
# ----------------------------------------------------------------------------

def qk_project(x_list, w_list, scale, bias, *, n, tc, out_dtype=jnp.bfloat16):
    """Fused query|key projection over channel-major input pieces.
    Returns (q_tok (n, hw_pad, cq), key_T (n, cq, hw_pad))."""
    hw_pad = x_list[0].shape[-1]
    two_cq = w_list[0].shape[0]
    cq = two_cq // 2
    num_x = len(x_list)
    grid = (n, hw_pad // tc)

    in_specs = []
    for x in x_list:
        ck = x.shape[1]
        if x.shape[0] == 1:   # coord features: shared across batch, no broadcast copy
            in_specs.append(pl.BlockSpec((None, ck, tc), lambda b, s: (0, 0, s)))
        else:
            in_specs.append(pl.BlockSpec((None, ck, tc), lambda b, s: (b, 0, s)))
    for wk in w_list:
        in_specs.append(pl.BlockSpec(wk.shape, lambda b, s: (0, 0)))
    in_specs.append(pl.BlockSpec(scale.shape, lambda b, s: (0, 0)))
    in_specs.append(pl.BlockSpec(bias.shape, lambda b, s: (0, 0)))

    return pl.pallas_call(
        _make_qk_kernel(num_x, cq),
        out_shape=(jax.ShapeDtypeStruct((n, hw_pad, cq), out_dtype),
                   jax.ShapeDtypeStruct((n, cq, hw_pad), out_dtype)),
        grid=grid,
        in_specs=in_specs,
        out_specs=(pl.BlockSpec((None, tc, cq), lambda b, s: (b, s, 0)),
                   pl.BlockSpec((None, cq, tc), lambda b, s: (b, 0, s))),
        compiler_params=pltpu.CompilerParams(
            dimension_semantics=("parallel", "parallel"),
            vmem_limit_bytes=_VMEM_LIMIT),
    )(*x_list, *w_list, scale, bias)


def dep_context_attn(q_tok, key_T, p_aug, *, hw_real, ti, tj,
                     out_dtype=jnp.bfloat16, exp_dtype=jnp.float32):
    """q_tok (n, hw_pad, cq) token-major, key_T/p_aug channel-major.
    p_aug has an extra trailing all-ones channel.  Returns co_T (n, cp, hw_pad)."""
    n, hw_pad, _ = q_tok.shape
    cp1 = p_aug.shape[1]
    cp = cp1 - 1
    grid = (n, hw_pad // tj, hw_pad // ti)
    mask_bound = hw_real if hw_pad != hw_real else None

    return pl.pallas_call(
        _make_dep_attn_kernel(cp, ti, mask_bound, exp_dtype),
        out_shape=jax.ShapeDtypeStruct((n, cp, hw_pad), out_dtype),
        grid=grid,
        in_specs=[
            pl.BlockSpec((None, ti, q_tok.shape[-1]), lambda b, j, i: (b, i, 0)),
            pl.BlockSpec((None, key_T.shape[1], tj), lambda b, j, i: (b, 0, j)),
            pl.BlockSpec((None, cp1, ti), lambda b, j, i: (b, 0, i)),
        ],
        out_specs=pl.BlockSpec((None, cp, tj), lambda b, j, i: (b, 0, j)),
        scratch_shapes=[
            pltpu.VMEM((1, tj), jnp.float32),     # running max (per key column)
            pltpu.VMEM((cp1, tj), jnp.float32),   # accumulator (+ denominator row)
        ],
        compiler_params=pltpu.CompilerParams(
            dimension_semantics=("parallel", "parallel", "arbitrary"),
            vmem_limit_bytes=_VMEM_LIMIT),
    )(q_tok, key_T, p_aug)


def proj_att(co_T, wpT, ps, pb, awT, ab, head_bounds, *, tc):
    """Fused projection + att heads + per-head softmax, all channel-major."""
    n, cp, hw_pad = co_T.shape
    hidden = wpT.shape[0]
    t_total = awT.shape[0]
    grid = (n, hw_pad // tc)

    return pl.pallas_call(
        _make_proj_att_kernel(head_bounds),
        out_shape=(jax.ShapeDtypeStruct((n, hidden, hw_pad), jnp.bfloat16),
                   jax.ShapeDtypeStruct((n, t_total, hw_pad), jnp.float32),
                   jax.ShapeDtypeStruct((n, t_total, hw_pad), jnp.bfloat16)),
        grid=grid,
        in_specs=[
            pl.BlockSpec((None, cp, tc), lambda b, s: (b, 0, s)),
            pl.BlockSpec(wpT.shape, lambda b, s: (0, 0)),
            pl.BlockSpec(ps.shape, lambda b, s: (0, 0)),
            pl.BlockSpec(pb.shape, lambda b, s: (0, 0)),
            pl.BlockSpec(awT.shape, lambda b, s: (0, 0)),
            pl.BlockSpec(ab.shape, lambda b, s: (0, 0)),
        ],
        out_specs=(pl.BlockSpec((None, hidden, tc), lambda b, s: (b, 0, s)),
                   pl.BlockSpec((None, t_total, tc), lambda b, s: (b, 0, s)),
                   pl.BlockSpec((None, t_total, tc), lambda b, s: (b, 0, s))),
        compiler_params=pltpu.CompilerParams(
            dimension_semantics=("parallel", "parallel"),
            vmem_limit_bytes=_VMEM_LIMIT),
    )(co_T, wpT, ps, pb, awT, ab)


# ----------------------------------------------------------------------------
# Glue (pure JAX): coord features, parameter folding, forward
# ----------------------------------------------------------------------------

def generate_spatial_batch_cm(H, W):
    """Channel-major (1, 8, H*W) spatial features, matching the PyTorch helper
    channel order [xmin, ymin, xmax, ymax, xctr, yctr, 1/W, 1/H]."""
    wv = jnp.arange(W, dtype=jnp.float32)
    hv = jnp.arange(H, dtype=jnp.float32)
    xmin = wv / W * 2.0 - 1.0
    xmax = (wv + 1.0) / W * 2.0 - 1.0
    xctr = (xmin + xmax) / 2.0
    ymin = hv / H * 2.0 - 1.0
    ymax = (hv + 1.0) / H * 2.0 - 1.0
    yctr = (ymin + ymax) / 2.0
    ones = jnp.ones((H, W), jnp.float32)
    feats = jnp.stack([
        jnp.broadcast_to(xmin[None, :], (H, W)),
        jnp.broadcast_to(ymin[:, None], (H, W)),
        jnp.broadcast_to(xmax[None, :], (H, W)),
        jnp.broadcast_to(ymax[:, None], (H, W)),
        jnp.broadcast_to(xctr[None, :], (H, W)),
        jnp.broadcast_to(yctr[:, None], (H, W)),
        ones / W,
        ones / H,
    ], axis=0)
    return feats.reshape(1, 8, H * W)


def contexture_forward(params, xp_list, p_fea, part_list_list):
    """Mirrors Contexture.forward.  p_fea: (N, C, H, W) NCHW f32."""
    n, c, h, w = p_fea.shape
    hw = h * w
    num_parts = len(xp_list)
    hidden = params["proj_w"].shape[1]
    couts = [len(pl_i) + 1 for pl_i in part_list_list]
    exp_dtype = _default_exp_dtype()

    hw_pad, ti, tj, tc = _hw_tiling(hw)

    # Channel-major token matrices -- free reshapes from NCHW (no transposes).
    # TODO(synk): the PyTorch module hardcodes generate_spatial_batch(60, 60);
    # coords are generated at the actual (H, W) (identical when H == W == 60).
    x_chan = [xp.reshape(n, xp.shape[1], hw) for xp in xp_list]
    p_chan = p_fea.reshape(n, c, hw)
    coord = generate_spatial_batch_cm(h, w)

    x_in = [_pad_hw(v, hw_pad).astype(jnp.bfloat16) for v in x_chan]
    p_in = _pad_hw(p_chan, hw_pad).astype(jnp.bfloat16)
    coord_in = _pad_hw(coord, hw_pad).astype(jnp.bfloat16)
    qk_inputs = x_in + [p_in, coord_in]

    # img|node weights concatenated along Cout, transposed, then split along
    # the input-channel axis to match the (xp..., p, coord) pieces.
    qk_wT = jnp.concatenate([params["img_w"], params["node_w"]],
                            axis=1).T.astype(jnp.bfloat16)        # (2c, cross_c)
    piece_sizes = [v.shape[1] for v in x_chan] + [c, 8]
    qk_w_pieces, off = [], 0
    for sz in piece_sizes:
        qk_w_pieces.append(qk_wT[:, off:off + sz])
        off += sz
    qk_scale = jnp.concatenate([params["img_s"], params["node_s"]],
                               axis=1).reshape(2 * c, 1)
    qk_bias = jnp.concatenate([params["img_b"], params["node_b"]],
                              axis=1).reshape(2 * c, 1)

    q_tok, key_T = qk_project(qk_inputs, qk_w_pieces, qk_scale, qk_bias,
                              n=n, tc=tc)

    # p with an appended all-ones channel: prob@p yields the softmax denominator.
    p_aug = jnp.concatenate(
        [p_in, jnp.ones((n, 1, hw_pad), jnp.bfloat16)], axis=1)
    co_T = dep_context_attn(q_tok, key_T, p_aug, hw_real=hw, ti=ti, tj=tj,
                            exp_dtype=exp_dtype)                   # (n, c, hw_pad)

    # F_cont (single shared projection) fused with all att heads + softmax.
    wpT = params["proj_w"].T.astype(jnp.bfloat16)                  # (hidden, c)
    ps = params["proj_s"].reshape(hidden, 1)
    pb = params["proj_b"].reshape(hidden, 1)
    awT = jnp.concatenate(params["att_w"], axis=1).T.astype(jnp.bfloat16)
    ab = jnp.concatenate(params["att_b"], axis=1).reshape(-1, 1)
    head_bounds, off = [], 0
    for cc in couts:
        head_bounds.append((off, off + cc))
        off += cc

    f_T, lg_T, sm_T = proj_att(co_T, wpT, ps, pb, awT, ab, head_bounds, tc=tc)

    def _unpad_nchw(x):  # (n, C, hw_pad) -> (n, C, h, w); pure reshape when unpadded
        if hw_pad != hw:
            x = x[:, :, :hw]
        return x.reshape(n, x.shape[1], h, w)

    f_nchw = _unpad_nchw(f_T)
    lg = _unpad_nchw(lg_T)
    sm = _unpad_nchw(sm_T)

    # F_cont holds the SAME module for every part -> identical outputs.
    F_dep_list = [f_nchw for _ in range(num_parts)]
    att_list, att_list_list = [], []
    off = 0
    for i in range(num_parts):
        cc = couts[i]
        att_list.append(lg[:, off:off + cc])
        sf = sm[:, off:off + cc]
        att_list_list.append([sf[:, j:j + 1] for j in range(cc)])
        off += cc

    return F_dep_list, att_list_list, att_list


# ----------------------------------------------------------------------------
# Pure-JAX reference (f32) for a tolerant correctness check
# ----------------------------------------------------------------------------

def _reference_forward(params, xp_list, p_fea, part_list_list):
    n, c, h, w = p_fea.shape
    hw = h * w
    coord = jnp.broadcast_to(generate_spatial_batch_cm(h, w), (n, 8, hw))
    cross = jnp.concatenate([x.reshape(n, -1, hw) for x in xp_list]
                            + [p_fea.reshape(n, c, hw), coord], axis=1)

    def conv_bn_relu(x, wT, s, b):
        y = jnp.einsum('oc,nch->noh', wT, x)
        return jnp.maximum(y * s[None] + b[None], 0.0)

    query = conv_bn_relu(cross, params["img_w"].T,
                         params["img_s"].reshape(-1, 1), params["img_b"].reshape(-1, 1))
    key = conv_bn_relu(cross, params["node_w"].T,
                       params["node_s"].reshape(-1, 1), params["node_b"].reshape(-1, 1))
    energy = jnp.einsum('nci,ncj->nij', query, key)
    attention = jax.nn.softmax(energy, axis=1)
    co = jnp.einsum('nci,nij->ncj', p_fea.reshape(n, c, hw), attention)
    f = conv_bn_relu(co, params["proj_w"].T,
                     params["proj_s"].reshape(-1, 1), params["proj_b"].reshape(-1, 1))
    awT = jnp.concatenate(params["att_w"], axis=1).T
    ab = jnp.concatenate(params["att_b"], axis=1).reshape(-1, 1)
    logits = jnp.einsum('oc,nch->noh', awT, f) + ab[None]

    hidden = f.shape[1]
    f_nchw = f.reshape(n, hidden, h, w)
    F_dep_list = [f_nchw for _ in range(len(xp_list))]
    att_list, att_list_list = [], []
    off = 0
    for i in range(len(xp_list)):
        cc = len(part_list_list[i]) + 1
        lg = logits[:, off:off + cc].reshape(n, cc, h, w)
        sf = jax.nn.softmax(lg, axis=1)
        att_list.append(lg)
        att_list_list.append([sf[:, j:j + 1] for j in range(cc)])
        off += cc
    return F_dep_list, att_list_list, att_list


# ----------------------------------------------------------------------------
# Deterministic parameter construction
# ----------------------------------------------------------------------------

def _init_conv(key, cin, cout):
    return jax.random.normal(key, (cin, cout), jnp.float32) / jnp.sqrt(float(cin))


def _init_bn_folded(key, c):
    k1, k2, k3, k4 = jax.random.split(key, 4)
    gamma = 1.0 + 0.1 * jax.random.normal(k1, (1, c), jnp.float32)
    beta = 0.1 * jax.random.normal(k2, (1, c), jnp.float32)
    mean = 0.1 * jax.random.normal(k3, (1, c), jnp.float32)
    var = jnp.abs(jax.random.normal(k4, (1, c), jnp.float32)) + 1.0
    scale = gamma / jnp.sqrt(var + 1e-5)
    bias = beta - mean * scale
    return scale, bias


def make_params(key, in_dim, hidden_dim, parts, part_list_list):
    cross_c = in_dim + parts * hidden_dim + 8
    keys = jax.random.split(key, 8 + 2 * len(part_list_list))
    img_s, img_b = _init_bn_folded(keys[1], in_dim)
    node_s, node_b = _init_bn_folded(keys[3], in_dim)
    proj_s, proj_b = _init_bn_folded(keys[5], hidden_dim)
    params = {
        "img_w": _init_conv(keys[0], cross_c, in_dim),
        "img_s": img_s, "img_b": img_b,
        "node_w": _init_conv(keys[2], cross_c, in_dim),
        "node_s": node_s, "node_b": node_b,
        "proj_w": _init_conv(keys[4], in_dim, hidden_dim),
        "proj_s": proj_s, "proj_b": proj_b,
        "att_w": [], "att_b": [],
    }
    for i, plist in enumerate(part_list_list):
        cout = len(plist) + 1
        params["att_w"].append(_init_conv(keys[6 + 2 * i], hidden_dim, cout))
        params["att_b"].append(
            0.1 * jax.random.normal(keys[7 + 2 * i], (1, cout), jnp.float32))
    return params


# ----------------------------------------------------------------------------
# Main
# ----------------------------------------------------------------------------

if __name__ == "__main__":
    N, IN_DIM, HIDDEN, PARTS, H, W = 2, 32, 8, 3, 8, 8
    part_list_list = [[1, 2], [3, 4], [5]]
    couts = [len(p) + 1 for p in part_list_list]

    root = jax.random.PRNGKey(0)
    k_params, k_pfea, *k_xp = jax.random.split(root, 2 + PARTS)
    params = make_params(k_params, IN_DIM, HIDDEN, PARTS, part_list_list)
    p_fea = jax.random.normal(k_pfea, (N, IN_DIM, H, W), jnp.float32)
    xp_list = [jax.random.normal(k_xp[i], (N, HIDDEN, H, W), jnp.float32)
               for i in range(PARTS)]

    fwd = jax.jit(lambda pp, xs, pf: contexture_forward(pp, xs, pf, part_list_list))
    F_dep_list, att_list_list, att_list = fwd(params, xp_list, p_fea)
    jax.block_until_ready((F_dep_list, att_list_list, att_list))

    # Shape sanity (matches PyTorch module output shapes).
    assert all(f.shape == (N, HIDDEN, H, W) for f in F_dep_list)
    assert all(a.shape == (N, couts[i], H, W) for i, a in enumerate(att_list))
    assert all(s.shape == (N, 1, H, W) for g in att_list_list for s in g)

    # Per-head softmax sanity: channels sum to ~1 (bf16 + approx reciprocal).
    for g in att_list_list:
        ssum = sum(t.astype(jnp.float32) for t in g)
        assert bool(jnp.all(jnp.abs(ssum - 1.0) < 2e-2)), "softmax sum check failed"

    # Tolerant comparison against a pure-JAX f32 reference (kernels use bf16
    # MXU operands and approximate reciprocals).
    refF, refSS, refA = _reference_forward(params, xp_list, p_fea, part_list_list)

    def _check(a, b, atol, rtol):
        a = a.astype(jnp.float32)
        b = b.astype(jnp.float32)
        tol = atol + rtol * float(jnp.max(jnp.abs(b)))
        assert bool(jnp.max(jnp.abs(a - b)) <= tol), "mismatch vs reference"

    _check(F_dep_list[0], refF[0], atol=0.1, rtol=0.15)
    for i in range(PARTS):
        _check(att_list[i], refA[i], atol=0.1, rtol=0.15)
        for j in range(couts[i]):
            _check(att_list_list[i][j], refSS[i][j], atol=0.1, rtol=0.0)

    print("KERNEL_OK")
</pallas_src>

<mosaic_0001>
module attributes {stable_mosaic.version = 11 : i64} {
  func.func @kernel(%arg0: i32, %arg1: i32, %arg2: memref<1x32x128xbf16, #tpu.memory_space<vmem>>, %arg3: memref<8x32xbf16, #tpu.memory_space<vmem>>, %arg4: memref<8x1xf32, #tpu.memory_space<vmem>>, %arg5: memref<8x1xf32, #tpu.memory_space<vmem>>, %arg6: memref<8x8xbf16, #tpu.memory_space<vmem>>, %arg7: memref<8x1xf32, #tpu.memory_space<vmem>>, %arg8: memref<1x8x128xbf16, #tpu.memory_space<vmem>>, %arg9: memref<1x8x128xf32, #tpu.memory_space<vmem>>, %arg10: memref<1x8x128xbf16, #tpu.memory_space<vmem>>) attributes {dimension_semantics = [#tpu.dimension_semantics<parallel>, #tpu.dimension_semantics<parallel>], iteration_bounds = array<i64: 2, 1>, scalar_prefetch = 0 : i64, scratch_operands = 0 : i64, tpu.core_type = #tpu.core_type<tc>, window_params = [{transform_indices = @transform_0, window_bounds = array<i64: 1, 32, 128>}, {pipeline_mode = #tpu.pipeline_mode<synchronous>, transform_indices = @transform_1, window_bounds = array<i64: 8, 32>}, {pipeline_mode = #tpu.pipeline_mode<synchronous>, transform_indices = @transform_2, window_bounds = array<i64: 8, 1>}, {pipeline_mode = #tpu.pipeline_mode<synchronous>, transform_indices = @transform_3, window_bounds = array<i64: 8, 1>}, {pipeline_mode = #tpu.pipeline_mode<synchronous>, transform_indices = @transform_4, window_bounds = array<i64: 8, 8>}, {pipeline_mode = #tpu.pipeline_mode<synchronous>, transform_indices = @transform_5, window_bounds = array<i64: 8, 1>}, {transform_indices = @transform_6, window_bounds = array<i64: 1, 8, 128>}, {transform_indices = @transform_7, window_bounds = array<i64: 1, 8, 128>}, {transform_indices = @transform_8, window_bounds = array<i64: 1, 8, 128>}]} {
    %c0 = arith.constant 0 : index
    %c0_0 = arith.constant 0 : index
    %0 = vector.load %arg3[%c0, %c0_0] : memref<8x32xbf16, #tpu.memory_space<vmem>>, vector<8x32xbf16>
    %c0_1 = arith.constant 0 : index
    %c0_2 = arith.constant 0 : index
    %c0_3 = arith.constant 0 : index
    %1 = vector.load %arg2[%c0_1, %c0_2, %c0_3] : memref<1x32x128xbf16, #tpu.memory_space<vmem>>, vector<1x32x128xbf16>
    %2 = vector.shape_cast %1 : vector<1x32x128xbf16> to vector<32x128xbf16>
    %cst = arith.constant dense<0.000000e+00> : vector<8x128xf32>
    %3 = tpu.matmul %0, %2, %cst {dimension_numbers = #tpu.dot_dimension_numbers<[1], [0], [0], [1], [0, 0, 1, 1], [], []>} : vector<8x32xbf16>, vector<32x128xbf16>, vector<8x128xf32> -> vector<8x128xf32>
    %c0_4 = arith.constant 0 : index
    %c0_5 = arith.constant 0 : index
    %4 = vector.load %arg4[%c0_4, %c0_5] : memref<8x1xf32, #tpu.memory_space<vmem>>, vector<8x1xf32>
    %5 = vector.broadcast %4 : vector<8x1xf32> to vector<8x128xf32>
    %6 = arith.mulf %3, %5 : vector<8x128xf32>
    %c0_6 = arith.constant 0 : index
    %c0_7 = arith.constant 0 : index
    %7 = vector.load %arg5[%c0_6, %c0_7] : memref<8x1xf32, #tpu.memory_space<vmem>>, vector<8x1xf32>
    %8 = vector.broadcast %7 : vector<8x1xf32> to vector<8x128xf32>
    %9 = arith.addf %6, %8 : vector<8x128xf32>
    %cst_8 = arith.constant 0.000000e+00 : f32
    %10 = vector.broadcast %cst_8 : f32 to vector<8x128xf32>
    %11 = arith.maximumf %9, %10 : vector<8x128xf32>
    %12 = arith.truncf %11 : vector<8x128xf32> to vector<8x128xbf16>
    %c0_9 = arith.constant 0 : index
    %c0_10 = arith.constant 0 : index
    %c0_11 = arith.constant 0 : index
    %13 = vector.load %arg8[%c0_9, %c0_10, %c0_11] : memref<1x8x128xbf16, #tpu.memory_space<vmem>>, vector<1x8x128xbf16>
    %14 = vector.shape_cast %13 : vector<1x8x128xbf16> to vector<8x128xbf16>
    %15 = vector.shape_cast %12 : vector<8x128xbf16> to vector<1x8x128xbf16>
    tpu.vector_store %arg8[%c0_9, %c0_10, %c0_11], %15 {strides = array<i32>} : memref<1x8x128xbf16, #tpu.memory_space<vmem>>, vector<1x8x128xbf16>,
    %c0_12 = arith.constant 0 : index
    %c0_13 = arith.constant 0 : index
    %16 = vector.load %arg6[%c0_12, %c0_13] : memref<8x8xbf16, #tpu.memory_space<vmem>>, vector<8x8xbf16>
    %17 = arith.truncf %11 : vector<8x128xf32> to vector<8x128xbf16>
    %cst_14 = arith.constant dense<0.000000e+00> : vector<8x128xf32>
    %18 = tpu.matmul %16, %17, %cst_14 {dimension_numbers = #tpu.dot_dimension_numbers<[1], [0], [0], [1], [0, 0, 1, 1], [], []>} : vector<8x8xbf16>, vector<8x128xbf16>, vector<8x128xf32> -> vector<8x128xf32>
    %c0_15 = arith.constant 0 : index
    %c0_16 = arith.constant 0 : index
    %19 = vector.load %arg7[%c0_15, %c0_16] : memref<8x1xf32, #tpu.memory_space<vmem>>, vector<8x1xf32>
    %20 = vector.broadcast %19 : vector<8x1xf32> to vector<8x128xf32>
    %21 = arith.addf %18, %20 : vector<8x128xf32>
    %c0_17 = arith.constant 0 : index
    %c0_18 = arith.constant 0 : index
    %c0_19 = arith.constant 0 : index
    %22 = vector.load %arg9[%c0_17, %c0_18, %c0_19] : memref<1x8x128xf32, #tpu.memory_space<vmem>>, vector<1x8x128xf32>
    %23 = vector.shape_cast %22 : vector<1x8x128xf32> to vector<8x128xf32>
    %24 = vector.shape_cast %21 : vector<8x128xf32> to vector<1x8x128xf32>
    tpu.vector_store %arg9[%c0_17, %c0_18, %c0_19], %24 {strides = array<i32>} : memref<1x8x128xf32, #tpu.memory_space<vmem>>, vector<1x8x128xf32>,
    %25 = tpu.iota {dimensions = array<i32: 0>} : vector<8x1xi32>
    %cst_20 = arith.constant 0.000000e+00 : f32
    %26 = vector.broadcast %cst_20 : f32 to vector<8x128xf32>
    %c0_i32 = arith.constant 0 : i32
    %27 = vector.broadcast %c0_i32 : i32 to vector<8x1xi32>
    %28 = arith.cmpi sge, %25, %27 : vector<8x1xi32>
    %c3_i32 = arith.constant 3 : i32
    %29 = vector.broadcast %c3_i32 : i32 to vector<8x1xi32>
    %30 = arith.cmpi slt, %25, %29 : vector<8x1xi32>
    %31 = arith.andi %28, %30 : vector<8x1xi1>
    %cst_21 = arith.constant 0xFF800000 : f32
    %32 = vector.shape_cast %31 : vector<8x1xi1> to vector<8x1xi1>
    %33 = vector.broadcast %32 : vector<8x1xi1> to vector<8x128xi1>
    %34 = vector.broadcast %cst_21 : f32 to vector<8x128xf32>
    %35 = arith.select %33, %21, %34 : vector<8x128xi1>, vector<8x128xf32>
    %cst_22 = arith.constant dense<0xFF800000> : vector<128xf32>
    %36 = vector.multi_reduction <maximumf>, %35, %cst_22 [0] : vector<8x128xf32> to vector<128xf32>
    %37 = vector.shape_cast %36 : vector<128xf32> to vector<1x128xf32>
    %cst_23 = arith.constant 0.000000e+00 : f32
    %38 = vector.shape_cast %31 : vector<8x1xi1> to vector<8x1xi1>
    %39 = vector.broadcast %38 : vector<8x1xi1> to vector<8x128xi1>
    %40 = vector.shape_cast %37 : vector<1x128xf32> to vector<1x128xf32>
    %41 = vector.broadcast %40 : vector<1x128xf32> to vector<8x128xf32>
    %42 = vector.broadcast %cst_23 : f32 to vector<8x128xf32>
    %43 = arith.select %39, %41, %42 : vector<8x128xi1>, vector<8x128xf32>
    %44 = arith.addf %26, %43 : vector<8x128xf32>
    %c3_i32_24 = arith.constant 3 : i32
    %45 = vector.broadcast %c3_i32_24 : i32 to vector<8x1xi32>
    %46 = arith.cmpi sge, %25, %45 : vector<8x1xi32>
    %c6_i32 = arith.constant 6 : i32
    %47 = vector.broadcast %c6_i32 : i32 to vector<8x1xi32>
    %48 = arith.cmpi slt, %25, %47 : vector<8x1xi32>
    %49 = arith.andi %46, %48 : vector<8x1xi1>
    %cst_25 = arith.constant 0xFF800000 : f32
    %50 = vector.shape_cast %49 : vector<8x1xi1> to vector<8x1xi1>
    %51 = vector.broadcast %50 : vector<8x1xi1> to vector<8x128xi1>
    %52 = vector.broadcast %cst_25 : f32 to vector<8x128xf32>
    %53 = arith.select %51, %21, %52 : vector<8x128xi1>, vector<8x128xf32>
    %cst_26 = arith.constant dense<0xFF800000> : vector<128xf32>
    %54 = vector.multi_reduction <maximumf>, %53, %cst_26 [0] : vector<8x128xf32> to vector<128xf32>
    %55 = vector.shape_cast %54 : vector<128xf32> to vector<1x128xf32>
    %cst_27 = arith.constant 0.000000e+00 : f32
    %56 = vector.shape_cast %49 : vector<8x1xi1> to vector<8x1xi1>
    %57 = vector.broadcast %56 : vector<8x1xi1> to vector<8x128xi1>
    %58 = vector.shape_cast %55 : vector<1x128xf32> to vector<1x128xf32>
    %59 = vector.broadcast %58 : vector<1x128xf32> to vector<8x128xf32>
    %60 = vector.broadcast %cst_27 : f32 to vector<8x128xf32>
    %61 = arith.select %57, %59, %60 : vector<8x128xi1>, vector<8x128xf32>
    %62 = arith.addf %44, %61 : vector<8x128xf32>
    %c6_i32_28 = arith.constant 6 : i32
    %63 = vector.broadcast %c6_i32_28 : i32 to vector<8x1xi32>
    %64 = arith.cmpi sge, %25, %63 : vector<8x1xi32>
    %c8_i32 = arith.constant 8 : i32
    %65 = vector.broadcast %c8_i32 : i32 to vector<8x1xi32>
    %66 = arith.cmpi slt, %25, %65 : vector<8x1xi32>
    %67 = arith.andi %64, %66 : vector<8x1xi1>
    %cst_29 = arith.constant 0xFF800000 : f32
    %68 = vector.shape_cast %67 : vector<8x1xi1> to vector<8x1xi1>
    %69 = vector.broadcast %68 : vector<8x1xi1> to vector<8x128xi1>
    %70 = vector.broadcast %cst_29 : f32 to vector<8x128xf32>
    %71 = arith.select %69, %21, %70 : vector<8x128xi1>, vector<8x128xf32>
    %cst_30 = arith.constant dense<0xFF800000> : vector<128xf32>
    %72 = vector.multi_reduction <maximumf>, %71, %cst_30 [0] : vector<8x128xf32> to vector<128xf32>
    %73 = vector.shape_cast %72 : vector<128xf32> to vector<1x128xf32>
    %cst_31 = arith.constant 0.000000e+00 : f32
    %74 = vector.shape_cast %67 : vector<8x1xi1> to vector<8x1xi1>
    %75 = vector.broadcast %74 : vector<8x1xi1> to vector<8x128xi1>
    %76 = vector.shape_cast %73 : vector<1x128xf32> to vector<1x128xf32>
    %77 = vector.broadcast %76 : vector<1x128xf32> to vector<8x128xf32>
    %78 = vector.broadcast %cst_31 : f32 to vector<8x128xf32>
    %79 = arith.select %75, %77, %78 : vector<8x128xi1>, vector<8x128xf32>
    %80 = arith.addf %62, %79 : vector<8x128xf32>
    %81 = arith.subf %21, %80 : vector<8x128xf32>
    %82 = math.exp %81 : vector<8x128xf32>
    %cst_32 = arith.constant 0.000000e+00 : f32
    %83 = vector.broadcast %cst_32 : f32 to vector<8x128xf32>
    %c0_i32_33 = arith.constant 0 : i32
    %84 = vector.broadcast %c0_i32_33 : i32 to vector<8x1xi32>
    %85 = arith.cmpi sge, %25, %84 : vector<8x1xi32>
    %c3_i32_34 = arith.constant 3 : i32
    %86 = vector.broadcast %c3_i32_34 : i32 to vector<8x1xi32>
    %87 = arith.cmpi slt, %25, %86 : vector<8x1xi32>
    %88 = arith.andi %85, %87 : vector<8x1xi1>
    %cst_35 = arith.constant 0.000000e+00 : f32
    %89 = vector.shape_cast %88 : vector<8x1xi1> to vector<8x1xi1>
    %90 = vector.broadcast %89 : vector<8x1xi1> to vector<8x128xi1>
    %91 = vector.broadcast %cst_35 : f32 to vector<8x128xf32>
    %92 = arith.select %90, %82, %91 : vector<8x128xi1>, vector<8x128xf32>
    %cst_36 = arith.constant dense<0.000000e+00> : vector<128xf32>
    %93 = vector.multi_reduction <add>, %92, %cst_36 [0] : vector<8x128xf32> to vector<128xf32>
    %94 = vector.shape_cast %93 : vector<128xf32> to vector<1x128xf32>
    %cst_37 = arith.constant 0.000000e+00 : f32
    %95 = vector.shape_cast %88 : vector<8x1xi1> to vector<8x1xi1>
    %96 = vector.broadcast %95 : vector<8x1xi1> to vector<8x128xi1>
    %97 = vector.shape_cast %94 : vector<1x128xf32> to vector<1x128xf32>
    %98 = vector.broadcast %97 : vector<1x128xf32> to vector<8x128xf32>
    %99 = vector.broadcast %cst_37 : f32 to vector<8x128xf32>
    %100 = arith.select %96, %98, %99 : vector<8x128xi1>, vector<8x128xf32>
    %101 = arith.addf %83, %100 : vector<8x128xf32>
    %c3_i32_38 = arith.constant 3 : i32
    %102 = vector.broadcast %c3_i32_38 : i32 to vector<8x1xi32>
    %103 = arith.cmpi sge, %25, %102 : vector<8x1xi32>
    %c6_i32_39 = arith.constant 6 : i32
    %104 = vector.broadcast %c6_i32_39 : i32 to vector<8x1xi32>
    %105 = arith.cmpi slt, %25, %104 : vector<8x1xi32>
    %106 = arith.andi %103, %105 : vector<8x1xi1>
    %cst_40 = arith.constant 0.000000e+00 : f32
    %107 = vector.shape_cast %106 : vector<8x1xi1> to vector<8x1xi1>
    %108 = vector.broadcast %107 : vector<8x1xi1> to vector<8x128xi1>
    %109 = vector.broadcast %cst_40 : f32 to vector<8x128xf32>
    %110 = arith.select %108, %82, %109 : vector<8x128xi1>, vector<8x128xf32>
    %cst_41 = arith.constant dense<0.000000e+00> : vector<128xf32>
    %111 = vector.multi_reduction <add>, %110, %cst_41 [0] : vector<8x128xf32> to vector<128xf32>
    %112 = vector.shape_cast %111 : vector<128xf32> to vector<1x128xf32>
    %cst_42 = arith.constant 0.000000e+00 : f32
    %113 = vector.shape_cast %106 : vector<8x1xi1> to vector<8x1xi1>
    %114 = vector.broadcast %113 : vector<8x1xi1> to vector<8x128xi1>
    %115 = vector.shape_cast %112 : vector<1x128xf32> to vector<1x128xf32>
    %116 = vector.broadcast %115 : vector<1x128xf32> to vector<8x128xf32>
    %117 = vector.broadcast %cst_42 : f32 to vector<8x128xf32>
    %118 = arith.select %114, %116, %117 : vector<8x128xi1>, vector<8x128xf32>
    %119 = arith.addf %101, %118 : vector<8x128xf32>
    %c6_i32_43 = arith.constant 6 : i32
    %120 = vector.broadcast %c6_i32_43 : i32 to vector<8x1xi32>
    %121 = arith.cmpi sge, %25, %120 : vector<8x1xi32>
    %c8_i32_44 = arith.constant 8 : i32
    %122 = vector.broadcast %c8_i32_44 : i32 to vector<8x1xi32>
    %123 = arith.cmpi slt, %25, %122 : vector<8x1xi32>
    %124 = arith.andi %121, %123 : vector<8x1xi1>
    %cst_45 = arith.constant 0.000000e+00 : f32
    %125 = vector.shape_cast %124 : vector<8x1xi1> to vector<8x1xi1>
    %126 = vector.broadcast %125 : vector<8x1xi1> to vector<8x128xi1>
    %127 = vector.broadcast %cst_45 : f32 to vector<8x128xf32>
    %128 = arith.select %126, %82, %127 : vector<8x128xi1>, vector<8x128xf32>
    %cst_46 = arith.constant dense<0.000000e+00> : vector<128xf32>
    %129 = vector.multi_reduction <add>, %128, %cst_46 [0] : vector<8x128xf32> to vector<128xf32>
    %130 = vector.shape_cast %129 : vector<128xf32> to vector<1x128xf32>
    %cst_47 = arith.constant 0.000000e+00 : f32
    %131 = vector.shape_cast %124 : vector<8x1xi1> to vector<8x1xi1>
    %132 = vector.broadcast %131 : vector<8x1xi1> to vector<8x128xi1>
    %133 = vector.shape_cast %130 : vector<1x128xf32> to vector<1x128xf32>
    %134 = vector.broadcast %133 : vector<1x128xf32> to vector<8x128xf32>
    %135 = vector.broadcast %cst_47 : f32 to vector<8x128xf32>
    %136 = arith.select %132, %134, %135 : vector<8x128xi1>, vector<8x128xf32>
    %137 = arith.addf %119, %136 : vector<8x128xf32>
    %138 = tpu.reciprocal %137 {approx = true} : vector<8x128xf32> -> vector<8x128xf32>
    %139 = arith.mulf %82, %138 : vector<8x128xf32>
    %140 = arith.truncf %139 : vector<8x128xf32> to vector<8x128xbf16>
    %c0_48 = arith.constant 0 : index
    %c0_49 = arith.constant 0 : index
    %c0_50 = arith.constant 0 : index
    %141 = vector.load %arg10[%c0_48, %c0_49, %c0_50] : memref<1x8x128xbf16, #tpu.memory_space<vmem>>, vector<1x8x128xbf16>
    %142 = vector.shape_cast %141 : vector<1x8x128xbf16> to vector<8x128xbf16>
    %143 = vector.shape_cast %140 : vector<8x128xbf16> to vector<1x8x128xbf16>
    tpu.vector_store %arg10[%c0_48, %c0_49, %c0_50], %143 {strides = array<i32>} : memref<1x8x128xbf16, #tpu.memory_space<vmem>>, vector<1x8x128xbf16>,
    return
  }
  func.func @transform_0(%arg0: i32, %arg1: i32) -> (i32, i32, i32) {
    %c0_i32 = arith.constant 0 : i32
    %c0_i32_0 = arith.constant 0 : i32
    return %arg0, %c0_i32, %arg1 : i32, i32, i32
  }
  func.func @transform_1(%arg0: i32, %arg1: i32) -> (i32, i32) {
    %c0_i32 = arith.constant 0 : i32
    %c0_i32_0 = arith.constant 0 : i32
    %c0_i32_1 = arith.constant 0 : i32
    return %c0_i32, %c0_i32_0 : i32, i32
  }
  func.func @transform_2(%arg0: i32, %arg1: i32) -> (i32, i32) {
    %c0_i32 = arith.constant 0 : i32
    %c0_i32_0 = arith.constant 0 : i32
    %c0_i32_1 = arith.constant 0 : i32
    return %c0_i32, %c0_i32_0 : i32, i32
  }
  func.func @transform_3(%arg0: i32, %arg1: i32) -> (i32, i32) {
    %c0_i32 = arith.constant 0 : i32
    %c0_i32_0 = arith.constant 0 : i32
    %c0_i32_1 = arith.constant 0 : i32
    return %c0_i32, %c0_i32_0 : i32, i32
  }
  func.func @transform_4(%arg0: i32, %arg1: i32) -> (i32, i32) {
    %c0_i32 = arith.constant 0 : i32
    %c0_i32_0 = arith.constant 0 : i32
    %c0_i32_1 = arith.constant 0 : i32
    return %c0_i32, %c0_i32_0 : i32, i32
  }
  func.func @transform_5(%arg0: i32, %arg1: i32) -> (i32, i32) {
    %c0_i32 = arith.constant 0 : i32
    %c0_i32_0 = arith.constant 0 : i32
    %c0_i32_1 = arith.constant 0 : i32
    return %c0_i32, %c0_i32_0 : i32, i32
  }
  func.func @transform_6(%arg0: i32, %arg1: i32) -> (i32, i32, i32) {
    %c0_i32 = arith.constant 0 : i32
    %c0_i32_0 = arith.constant 0 : i32
    return %arg0, %c0_i32, %arg1 : i32, i32, i32
  }
  func.func @transform_7(%arg0: i32, %arg1: i32) -> (i32, i32, i32) {
    %c0_i32 = arith.constant 0 : i32
    %c0_i32_0 = arith.constant 0 : i32
    return %arg0, %c0_i32, %arg1 : i32, i32, i32
  }
  func.func @transform_8(%arg0: i32, %arg1: i32) -> (i32, i32, i32) {
    %c0_i32 = arith.constant 0 : i32
    %c0_i32_0 = arith.constant 0 : i32
    return %arg0, %c0_i32, %arg1 : i32, i32, i32
  }
}

module attributes {stable_mosaic.version = 11 : i64} {
  func.func @kernel(%arg0: i32, %arg1: i32, %arg2: memref<1x8x128xbf16, #tpu.memory_space<vmem>>, %arg3: memref<1x8x128xbf16, #tpu.memory_space<vmem>>, %arg4: memref<1x8x128xbf16, #tpu.memory_space<vmem>>, %arg5: memref<1x32x128xbf16, #tpu.memory_space<vmem>>, %arg6: memref<1x8x128xbf16, #tpu.memory_space<vmem>>, %arg7: memref<64x8xbf16, #tpu.memory_space<vmem>>, %arg8: memref<64x8xbf16, #tpu.memory_space<vmem>>, %arg9: memref<64x8xbf16, #tpu.memory_space<vmem>>, %arg10: memref<64x32xbf16, #tpu.memory_space<vmem>>, %arg11: memref<64x8xbf16, #tpu.memory_space<vmem>>, %arg12: memref<64x1xf32, #tpu.memory_space<vmem>>, %arg13: memref<64x1xf32, #tpu.memory_space<vmem>>, %arg14: memref<1x128x32xbf16, #tpu.memory_space<vmem>>, %arg15: memref<1x32x128xbf16, #tpu.memory_space<vmem>>) attributes {dimension_semantics = [#tpu.dimension_semantics<parallel>, #tpu.dimension_semantics<parallel>], iteration_bounds = array<i64: 2, 1>, scalar_prefetch = 0 : i64, scratch_operands = 0 : i64, tpu.core_type = #tpu.core_type<tc>, window_params = [{transform_indices = @transform_0, window_bounds = array<i64: 1, 8, 128>}, {transform_indices = @transform_1, window_bounds = array<i64: 1, 8, 128>}, {transform_indices = @transform_2, window_bounds = array<i64: 1, 8, 128>}, {transform_indices = @transform_3, window_bounds = array<i64: 1, 32, 128>}, {transform_indices = @transform_4, window_bounds = array<i64: 1, 8, 128>}, {pipeline_mode = #tpu.pipeline_mode<synchronous>, transform_indices = @transform_5, window_bounds = array<i64: 64, 8>}, {pipeline_mode = #tpu.pipeline_mode<synchronous>, transform_indices = @transform_6, window_bounds = array<i64: 64, 8>}, {pipeline_mode = #tpu.pipeline_mode<synchronous>, transform_indices = @transform_7, window_bounds = array<i64: 64, 8>}, {pipeline_mode = #tpu.pipeline_mode<synchronous>, transform_indices = @transform_8, window_bounds = array<i64: 64, 32>}, {pipeline_mode = #tpu.pipeline_mode<synchronous>, transform_indices = @transform_9, window_bounds = array<i64: 64, 8>}, {pipeline_mode = #tpu.pipeline_mode<synchronous>, transform_indices = @transform_10, window_bounds = array<i64: 64, 1>}, {pipeline_mode = #tpu.pipeline_mode<synchronous>, transform_indices = @transform_11, window_bounds = array<i64: 64, 1>}, {transform_indices = @transform_12, window_bounds = array<i64: 1, 128, 32>}, {transform_indices = @transform_13, window_bounds = array<i64: 1, 32, 128>}]} {
    %c0 = arith.constant 0 : index
    %c0_0 = arith.constant 0 : index
    %0 = vector.load %arg7[%c0, %c0_0] : memref<64x8xbf16, #tpu.memory_space<vmem>>, vector<64x8xbf16>
    %c0_1 = arith.constant 0 : index
    %c0_2 = arith.constant 0 : index
    %c0_3 = arith.constant 0 : index
    %1 = vector.load %arg2[%c0_1, %c0_2, %c0_3] : memref<1x8x128xbf16, #tpu.memory_space<vmem>>, vector<1x8x128xbf16>
    %2 = vector.shape_cast %1 : vector<1x8x128xbf16> to vector<8x128xbf16>
    %cst = arith.constant dense<0.000000e+00> : vector<64x128xf32>
    %3 = tpu.matmul %0, %2, %cst {dimension_numbers = #tpu.dot_dimension_numbers<[1], [0], [0], [1], [0, 0, 1, 1], [], []>} : vector<64x8xbf16>, vector<8x128xbf16>, vector<64x128xf32> -> vector<64x128xf32>
    %c0_4 = arith.constant 0 : index
    %c0_5 = arith.constant 0 : index
    %4 = vector.load %arg8[%c0_4, %c0_5] : memref<64x8xbf16, #tpu.memory_space<vmem>>, vector<64x8xbf16>
    %c0_6 = arith.constant 0 : index
    %c0_7 = arith.constant 0 : index
    %c0_8 = arith.constant 0 : index
    %5 = vector.load %arg3[%c0_6, %c0_7, %c0_8] : memref<1x8x128xbf16, #tpu.memory_space<vmem>>, vector<1x8x128xbf16>
    %6 = vector.shape_cast %5 : vector<1x8x128xbf16> to vector<8x128xbf16>
    %cst_9 = arith.constant dense<0.000000e+00> : vector<64x128xf32>
    %7 = tpu.matmul %4, %6, %cst_9 {dimension_numbers = #tpu.dot_dimension_numbers<[1], [0], [0], [1], [0, 0, 1, 1], [], []>} : vector<64x8xbf16>, vector<8x128xbf16>, vector<64x128xf32> -> vector<64x128xf32>
    %8 = arith.addf %3, %7 : vector<64x128xf32>
    %c0_10 = arith.constant 0 : index
    %c0_11 = arith.constant 0 : index
    %9 = vector.load %arg9[%c0_10, %c0_11] : memref<64x8xbf16, #tpu.memory_space<vmem>>, vector<64x8xbf16>
    %c0_12 = arith.constant 0 : index
    %c0_13 = arith.constant 0 : index
    %c0_14 = arith.constant 0 : index
    %10 = vector.load %arg4[%c0_12, %c0_13, %c0_14] : memref<1x8x128xbf16, #tpu.memory_space<vmem>>, vector<1x8x128xbf16>
    %11 = vector.shape_cast %10 : vector<1x8x128xbf16> to vector<8x128xbf16>
    %cst_15 = arith.constant dense<0.000000e+00> : vector<64x128xf32>
    %12 = tpu.matmul %9, %11, %cst_15 {dimension_numbers = #tpu.dot_dimension_numbers<[1], [0], [0], [1], [0, 0, 1, 1], [], []>} : vector<64x8xbf16>, vector<8x128xbf16>, vector<64x128xf32> -> vector<64x128xf32>
    %13 = arith.addf %8, %12 : vector<64x128xf32>
    %c0_16 = arith.constant 0 : index
    %c0_17 = arith.constant 0 : index
    %14 = vector.load %arg10[%c0_16, %c0_17] : memref<64x32xbf16, #tpu.memory_space<vmem>>, vector<64x32xbf16>
    %c0_18 = arith.constant 0 : index
    %c0_19 = arith.constant 0 : index
    %c0_20 = arith.constant 0 : index
    %15 = vector.load %arg5[%c0_18, %c0_19, %c0_20] : memref<1x32x128xbf16, #tpu.memory_space<vmem>>, vector<1x32x128xbf16>
    %16 = vector.shape_cast %15 : vector<1x32x128xbf16> to vector<32x128xbf16>
    %cst_21 = arith.constant dense<0.000000e+00> : vector<64x128xf32>
    %17 = tpu.matmul %14, %16, %cst_21 {dimension_numbers = #tpu.dot_dimension_numbers<[1], [0], [0], [1], [0, 0, 1, 1], [], []>} : vector<64x32xbf16>, vector<32x128xbf16>, vector<64x128xf32> -> vector<64x128xf32>
    %18 = arith.addf %13, %17 : vector<64x128xf32>
    %c0_22 = arith.constant 0 : index
    %c0_23 = arith.constant 0 : index
    %19 = vector.load %arg11[%c0_22, %c0_23] : memref<64x8xbf16, #tpu.memory_space<vmem>>, vector<64x8xbf16>
    %c0_24 = arith.constant 0 : index
    %c0_25 = arith.constant 0 : index
    %c0_26 = arith.constant 0 : index
    %20 = vector.load %arg6[%c0_24, %c0_25, %c0_26] : memref<1x8x128xbf16, #tpu.memory_space<vmem>>, vector<1x8x128xbf16>
    %21 = vector.shape_cast %20 : vector<1x8x128xbf16> to vector<8x128xbf16>
    %cst_27 = arith.constant dense<0.000000e+00> : vector<64x128xf32>
    %22 = tpu.matmul %19, %21, %cst_27 {dimension_numbers = #tpu.dot_dimension_numbers<[1], [0], [0], [1], [0, 0, 1, 1], [], []>} : vector<64x8xbf16>, vector<8x128xbf16>, vector<64x128xf32> -> vector<64x128xf32>
    %23 = arith.addf %18, %22 : vector<64x128xf32>
    %c0_28 = arith.constant 0 : index
    %c0_29 = arith.constant 0 : index
    %24 = vector.load %arg12[%c0_28, %c0_29] : memref<64x1xf32, #tpu.memory_space<vmem>>, vector<64x1xf32>
    %25 = vector.broadcast %24 : vector<64x1xf32> to vector<64x128xf32>
    %26 = arith.mulf %23, %25 : vector<64x128xf32>
    %c0_30 = arith.constant 0 : index
    %c0_31 = arith.constant 0 : index
    %27 = vector.load %arg13[%c0_30, %c0_31] : memref<64x1xf32, #tpu.memory_space<vmem>>, vector<64x1xf32>
    %28 = vector.broadcast %27 : vector<64x1xf32> to vector<64x128xf32>
    %29 = arith.addf %26, %28 : vector<64x128xf32>
    %cst_32 = arith.constant 0.000000e+00 : f32
    %30 = vector.broadcast %cst_32 : f32 to vector<64x128xf32>
    %31 = arith.maximumf %29, %30 : vector<64x128xf32>
    %32 = vector.extract_strided_slice %31 {offsets = [32, 0], sizes = [32, 128], strides = [1, 1]} : vector<64x128xf32> to vector<32x128xf32>
    %33 = arith.truncf %32 : vector<32x128xf32> to vector<32x128xbf16>
    %c0_33 = arith.constant 0 : index
    %c0_34 = arith.constant 0 : index
    %c0_35 = arith.constant 0 : index
    %34 = vector.load %arg15[%c0_33, %c0_34, %c0_35] : memref<1x32x128xbf16, #tpu.memory_space<vmem>>, vector<1x32x128xbf16>
    %35 = vector.shape_cast %34 : vector<1x32x128xbf16> to vector<32x128xbf16>
    %36 = vector.shape_cast %33 : vector<32x128xbf16> to vector<1x32x128xbf16>
    tpu.vector_store %arg15[%c0_33, %c0_34, %c0_35], %36 {strides = array<i32>} : memref<1x32x128xbf16, #tpu.memory_space<vmem>>, vector<1x32x128xbf16>,
    %37 = vector.extract_strided_slice %31 {offsets = [0, 0], sizes = [32, 128], strides = [1, 1]} : vector<64x128xf32> to vector<32x128xf32>
    %38 = tpu.transpose %37, [1, 0] : vector<32x128xf32> -> vector<128x32xf32>
    %39 = arith.truncf %38 : vector<128x32xf32> to vector<128x32xbf16>
    %c0_36 = arith.constant 0 : index
    %c0_37 = arith.constant 0 : index
    %c0_38 = arith.constant 0 : index
    %40 = vector.load %arg14[%c0_36, %c0_37, %c0_38] : memref<1x128x32xbf16, #tpu.memory_space<vmem>>, vector<1x128x32xbf16>
    %41 = vector.shape_cast %40 : vector<1x128x32xbf16> to vector<128x32xbf16>
    %42 = vector.shape_cast %39 : vector<128x32xbf16> to vector<1x128x32xbf16>
    tpu.vector_store %arg14[%c0_36, %c0_37, %c0_38], %42 {strides = array<i32>} : memref<1x128x32xbf16, #tpu.memory_space<vmem>>, vector<1x128x32xbf16>,
    return
  }
  func.func @transform_0(%arg0: i32, %arg1: i32) -> (i32, i32, i32) {
    %c0_i32 = arith.constant 0 : i32
    %c0_i32_0 = arith.constant 0 : i32
    return %arg0, %c0_i32, %arg1 : i32, i32, i32
  }
  func.func @transform_1(%arg0: i32, %arg1: i32) -> (i32, i32, i32) {
    %c0_i32 = arith.constant 0 : i32
    %c0_i32_0 = arith.constant 0 : i32
    return %arg0, %c0_i32, %arg1 : i32, i32, i32
  }
  func.func @transform_2(%arg0: i32, %arg1: i32) -> (i32, i32, i32) {
    %c0_i32 = arith.constant 0 : i32
    %c0_i32_0 = arith.constant 0 : i32
    return %arg0, %c0_i32, %arg1 : i32, i32, i32
  }
  func.func @transform_3(%arg0: i32, %arg1: i32) -> (i32, i32, i32) {
    %c0_i32 = arith.constant 0 : i32
    %c0_i32_0 = arith.constant 0 : i32
    return %arg0, %c0_i32, %arg1 : i32, i32, i32
  }
  func.func @transform_4(%arg0: i32, %arg1: i32) -> (i32, i32, i32) {
    %c0_i32 = arith.constant 0 : i32
    %c0_i32_0 = arith.constant 0 : i32
    %c0_i32_1 = arith.constant 0 : i32
    return %c0_i32, %c0_i32_0, %arg1 : i32, i32, i32
  }
  func.func @transform_5(%arg0: i32, %arg1: i32) -> (i32, i32) {
    %c0_i32 = arith.constant 0 : i32
    %c0_i32_0 = arith.constant 0 : i32
    %c0_i32_1 = arith.constant 0 : i32
    return %c0_i32, %c0_i32_0 : i32, i32
  }
  func.func @transform_6(%arg0: i32, %arg1: i32) -> (i32, i32) {
    %c0_i32 = arith.constant 0 : i32
    %c0_i32_0 = arith.constant 0 : i32
    %c0_i32_1 = arith.constant 0 : i32
    return %c0_i32, %c0_i32_0 : i32, i32
  }
  func.func @transform_7(%arg0: i32, %arg1: i32) -> (i32, i32) {
    %c0_i32 = arith.constant 0 : i32
    %c0_i32_0 = arith.constant 0 : i32
    %c0_i32_1 = arith.constant 0 : i32
    return %c0_i32, %c0_i32_0 : i32, i32
  }
  func.func @transform_8(%arg0: i32, %arg1: i32) -> (i32, i32) {
    %c0_i32 = arith.constant 0 : i32
    %c0_i32_0 = arith.constant 0 : i32
    %c0_i32_1 = arith.constant 0 : i32
    return %c0_i32, %c0_i32_0 : i32, i32
  }
  func.func @transform_9(%arg0: i32, %arg1: i32) -> (i32, i32) {
    %c0_i32 = arith.constant 0 : i32
    %c0_i32_0 = arith.constant 0 : i32
    %c0_i32_1 = arith.constant 0 : i32
    return %c0_i32, %c0_i32_0 : i32, i32
  }
  func.func @transform_10(%arg0: i32, %arg1: i32) -> (i32, i32) {
    %c0_i32 = arith.constant 0 : i32
    %c0_i32_0 = arith.constant 0 : i32
    %c0_i32_1 = arith.constant 0 : i32
    return %c0_i32, %c0_i32_0 : i32, i32
  }
  func.func @transform_11(%arg0: i32, %arg1: i32) -> (i32, i32) {
    %c0_i32 = arith.constant 0 : i32
    %c0_i32_0 = arith.constant 0 : i32
    %c0_i32_1 = arith.constant 0 : i32
    return %c0_i32, %c0_i32_0 : i32, i32
  }
  func.func @transform_12(%arg0: i32, %arg1: i32) -> (i32, i32, i32) {
    %c0_i32 = arith.constant 0 : i32
    %c0_i32_0 = arith.constant 0 : i32
    return %arg0, %arg1, %c0_i32 : i32, i32, i32
  }
  func.func @transform_13(%arg0: i32, %arg1: i32) -> (i32, i32, i32) {
    %c0_i32 = arith.constant 0 : i32
    %c0_i32_0 = arith.constant 0 : i32
    return %arg0, %c0_i32, %arg1 : i32, i32, i32
  }
}

module attributes {stable_mosaic.version = 11 : i64} {
  func.func @kernel(%arg0: i32, %arg1: i32, %arg2: i32, %arg3: memref<1x128x32xbf16, #tpu.memory_space<vmem>>, %arg4: memref<1x32x128xbf16, #tpu.memory_space<vmem>>, %arg5: memref<1x33x128xbf16, #tpu.memory_space<vmem>>, %arg6: memref<1x32x128xbf16, #tpu.memory_space<vmem>>, %arg7: memref<1x128xf32, #tpu.memory_space<vmem>>, %arg8: memref<33x128xf32, #tpu.memory_space<vmem>>) attributes {dimension_semantics = [#tpu.dimension_semantics<parallel>, #tpu.dimension_semantics<parallel>, #tpu.dimension_semantics<arbitrary>], iteration_bounds = array<i64: 2, 1, 1>, scalar_prefetch = 0 : i64, scratch_operands = 2 : i64, tpu.core_type = #tpu.core_type<tc>, window_params = [{transform_indices = @transform_0, window_bounds = array<i64: 1, 128, 32>}, {transform_indices = @transform_1, window_bounds = array<i64: 1, 32, 128>}, {transform_indices = @transform_2, window_bounds = array<i64: 1, 33, 128>}, {transform_indices = @transform_3, window_bounds = array<i64: 1, 32, 128>}]} {
    %c0_i32 = arith.constant 0 : i32
    %0 = arith.cmpi eq, %arg2, %c0_i32 : i32
    %1 = arith.extui %0 : i1 to i32
    %c0_i32_0 = arith.constant 0 : i32
    %2 = arith.cmpi ne, %1, %c0_i32_0 : i32
    scf.if %2 {
      %cst_22 = arith.constant 0xFF800000 : f32
      %40 = vector.broadcast %cst_22 : f32 to vector<1x128xf32>
      %c0_23 = arith.constant 0 : index
      %c0_24 = arith.constant 0 : index
      %41 = vector.load %arg7[%c0_23, %c0_24] : memref<1x128xf32, #tpu.memory_space<vmem>>, vector<1x128xf32>
      tpu.vector_store %arg7[%c0_23, %c0_24], %40 {strides = array<i32>} : memref<1x128xf32, #tpu.memory_space<vmem>>, vector<1x128xf32>,
      %cst_25 = arith.constant 0.000000e+00 : f32
      %42 = vector.broadcast %cst_25 : f32 to vector<33x128xf32>
      %c0_26 = arith.constant 0 : index
      %c0_27 = arith.constant 0 : index
      %43 = vector.load %arg8[%c0_26, %c0_27] : memref<33x128xf32, #tpu.memory_space<vmem>>, vector<33x128xf32>
      tpu.vector_store %arg8[%c0_26, %c0_27], %42 {strides = array<i32>} : memref<33x128xf32, #tpu.memory_space<vmem>>, vector<33x128xf32>,
    } else {
    }
    %c0 = arith.constant 0 : index
    %c0_1 = arith.constant 0 : index
    %c0_2 = arith.constant 0 : index
    %3 = vector.load %arg3[%c0, %c0_1, %c0_2] : memref<1x128x32xbf16, #tpu.memory_space<vmem>>, vector<1x128x32xbf16>
    %4 = vector.shape_cast %3 : vector<1x128x32xbf16> to vector<128x32xbf16>
    %c0_3 = arith.constant 0 : index
    %c0_4 = arith.constant 0 : index
    %c0_5 = arith.constant 0 : index
    %5 = vector.load %arg4[%c0_3, %c0_4, %c0_5] : memref<1x32x128xbf16, #tpu.memory_space<vmem>>, vector<1x32x128xbf16>
    %6 = vector.shape_cast %5 : vector<1x32x128xbf16> to vector<32x128xbf16>
    %cst = arith.constant dense<0.000000e+00> : vector<128x128xf32>
    %7 = tpu.matmul %4, %6, %cst {dimension_numbers = #tpu.dot_dimension_numbers<[1], [0], [0], [1], [0, 0, 1, 1], [], []>} : vector<128x32xbf16>, vector<32x128xbf16>, vector<128x128xf32> -> vector<128x128xf32>
    %c128_i32 = arith.constant 128 : i32
    %8 = arith.muli %arg2, %c128_i32 : i32
    %9 = tpu.iota {dimensions = array<i32: 0>} : vector<128x1xi32>
    %10 = vector.broadcast %8 : i32 to vector<128x1xi32>
    %11 = arith.addi %10, %9 : vector<128x1xi32>
    %c64_i32 = arith.constant 64 : i32
    %12 = vector.broadcast %c64_i32 : i32 to vector<128x1xi32>
    %13 = arith.cmpi slt, %11, %12 : vector<128x1xi32>
    %cst_6 = arith.constant -1.000000e+30 : f32
    %14 = vector.shape_cast %13 : vector<128x1xi1> to vector<128x1xi1>
    %15 = vector.broadcast %14 : vector<128x1xi1> to vector<128x128xi1>
    %16 = vector.broadcast %cst_6 : f32 to vector<128x128xf32>
    %17 = arith.select %15, %7, %16 : vector<128x128xi1>, vector<128x128xf32>
    %c0_7 = arith.constant 0 : index
    %c0_8 = arith.constant 0 : index
    %18 = vector.load %arg7[%c0_7, %c0_8] : memref<1x128xf32, #tpu.memory_space<vmem>>, vector<1x128xf32>
    %cst_9 = arith.constant dense<0xFF800000> : vector<128xf32>
    %19 = vector.multi_reduction <maximumf>, %17, %cst_9 [0] : vector<128x128xf32> to vector<128xf32>
    %20 = vector.shape_cast %19 : vector<128xf32> to vector<1x128xf32>
    %21 = arith.maximumf %18, %20 : vector<1x128xf32>
    %22 = arith.subf %18, %21 : vector<1x128xf32>
    %23 = math.exp %22 : vector<1x128xf32>
    %24 = vector.broadcast %21 : vector<1x128xf32> to vector<128x128xf32>
    %25 = arith.subf %17, %24 : vector<128x128xf32>
    %26 = arith.truncf %25 : vector<128x128xf32> to vector<128x128xbf16>
    %27 = math.exp %26 : vector<128x128xbf16>
    %c0_10 = arith.constant 0 : index
    %c0_11 = arith.constant 0 : index
    %28 = vector.load %arg8[%c0_10, %c0_11] : memref<33x128xf32, #tpu.memory_space<vmem>>, vector<33x128xf32>
    %29 = vector.broadcast %23 : vector<1x128xf32> to vector<33x128xf32>
    %30 = arith.mulf %29, %28 : vector<33x128xf32>
    %c0_12 = arith.constant 0 : index
    %c0_13 = arith.constant 0 : index
    %c0_14 = arith.constant 0 : index
    %31 = vector.load %arg5[%c0_12, %c0_13, %c0_14] : memref<1x33x128xbf16, #tpu.memory_space<vmem>>, vector<1x33x128xbf16>
    %32 = vector.shape_cast %31 : vector<1x33x128xbf16> to vector<33x128xbf16>
    %cst_15 = arith.constant dense<0.000000e+00> : vector<33x128xf32>
    %33 = tpu.matmul %32, %27, %cst_15 {dimension_numbers = #tpu.dot_dimension_numbers<[1], [0], [0], [1], [0, 0, 1, 1], [], []>} : vector<33x128xbf16>, vector<128x128xbf16>, vector<33x128xf32> -> vector<33x128xf32>
    %34 = arith.addf %30, %33 : vector<33x128xf32>
    %c0_16 = arith.constant 0 : index
    %c0_17 = arith.constant 0 : index
    %35 = vector.load %arg8[%c0_16, %c0_17] : memref<33x128xf32, #tpu.memory_space<vmem>>, vector<33x128xf32>
    tpu.vector_store %arg8[%c0_16, %c0_17], %34 {strides = array<i32>} : memref<33x128xf32, #tpu.memory_space<vmem>>, vector<33x128xf32>,
    %c0_18 = arith.constant 0 : index
    %c0_19 = arith.constant 0 : index
    %36 = vector.load %arg7[%c0_18, %c0_19] : memref<1x128xf32, #tpu.memory_space<vmem>>, vector<1x128xf32>
    tpu.vector_store %arg7[%c0_18, %c0_19], %21 {strides = array<i32>} : memref<1x128xf32, #tpu.memory_space<vmem>>, vector<1x128xf32>,
    %c0_i32_20 = arith.constant 0 : i32
    %37 = arith.cmpi eq, %arg2, %c0_i32_20 : i32
    %38 = arith.extui %37 : i1 to i32
    %c0_i32_21 = arith.constant 0 : i32
    %39 = arith.cmpi ne, %38, %c0_i32_21 : i32
    scf.if %39 {
      %c32 = arith.constant 32 : index
      %c0_22 = arith.constant 0 : index
      %40 = vector.load %arg8[%c32, %c0_22] : memref<33x128xf32, #tpu.memory_space<vmem>>, vector<1x128xf32>
      %c0_23 = arith.constant 0 : index
      %c0_24 = arith.constant 0 : index
      %41 = vector.load %arg8[%c0_23, %c0_24] : memref<33x128xf32, #tpu.memory_space<vmem>>, vector<32x128xf32>
      %42 = tpu.reciprocal %40 {approx = true} : vector<1x128xf32> -> vector<1x128xf32>
      %43 = vector.broadcast %42 : vector<1x128xf32> to vector<32x128xf32>
      %44 = arith.mulf %41, %43 : vector<32x128xf32>
      %45 = arith.truncf %44 : vector<32x128xf32> to vector<32x128xbf16>
      %c0_25 = arith.constant 0 : index
      %c0_26 = arith.constant 0 : index
      %c0_27 = arith.constant 0 : index
      %46 = vector.load %arg6[%c0_25, %c0_26, %c0_27] : memref<1x32x128xbf16, #tpu.memory_space<vmem>>, vector<1x32x128xbf16>
      %47 = vector.shape_cast %46 : vector<1x32x128xbf16> to vector<32x128xbf16>
      %48 = vector.shape_cast %45 : vector<32x128xbf16> to vector<1x32x128xbf16>
      tpu.vector_store %arg6[%c0_25, %c0_26, %c0_27], %48 {strides = array<i32>} : memref<1x32x128xbf16, #tpu.memory_space<vmem>>, vector<1x32x128xbf16>,
    } else {
    }
    return
  }
  func.func @transform_0(%arg0: i32, %arg1: i32, %arg2: i32) -> (i32, i32, i32) {
    %c0_i32 = arith.constant 0 : i32
    %c0_i32_0 = arith.constant 0 : i32
    return %arg0, %arg2, %c0_i32 : i32, i32, i32
  }
  func.func @transform_1(%arg0: i32, %arg1: i32, %arg2: i32) -> (i32, i32, i32) {
    %c0_i32 = arith.constant 0 : i32
    %c0_i32_0 = arith.constant 0 : i32
    return %arg0, %c0_i32, %arg1 : i32, i32, i32
  }
  func.func @transform_2(%arg0: i32, %arg1: i32, %arg2: i32) -> (i32, i32, i32) {
    %c0_i32 = arith.constant 0 : i32
    %c0_i32_0 = arith.constant 0 : i32
    return %arg0, %c0_i32, %arg2 : i32, i32, i32
  }
  func.func @transform_3(%arg0: i32, %arg1: i32, %arg2: i32) -> (i32, i32, i32) {
    %c0_i32 = arith.constant 0 : i32
    %c0_i32_0 = arith.constant 0 : i32
    return %arg0, %c0_i32, %arg1 : i32, i32, i32
  }
}

</mosaic_0001>

<llo_original>
// kernel: _lambda_.5
$region0: #{_lambda_.5}
  #allocation0 [shape = 'u32[]', space=smem, size = 0x4, offset = 0x4, fixed_abs, tag = 'smem constant byte address 0x4 - core index']
  #allocation1 [shape = 'u32[72,128]{1,0:T(1,128)}', space=vmem, size = 0x9000, scoped, tag = 'internal scratch']
  %s0 = inlined_call_operand.vmem [shape: bf16[2,32,128], index: 0, kind: input, shape index: {}]
  %s1 = inlined_call_operand.vmem [shape: bf16[8,32], index: 1, kind: input, shape index: {}]
  %s2 = inlined_call_operand.vmem [shape: f32[8,1], index: 2, kind: input, shape index: {}]
  %s3 = inlined_call_operand.vmem [shape: f32[8,1], index: 3, kind: input, shape index: {}]
  %s4 = inlined_call_operand.vmem [shape: bf16[8,8], index: 4, kind: input, shape index: {}]
  %s5 = inlined_call_operand.vmem [shape: f32[8,1], index: 5, kind: input, shape index: {}]
  %s6 = inlined_call_operand.vmem [shape: bf16[2,8,128], index: 6, kind: output, shape index: {0}]
  %s7 = inlined_call_operand.vmem [shape: f32[2,8,128], index: 7, kind: output, shape index: {1}]
  %s8 = inlined_call_operand.vmem [shape: bf16[2,8,128], index: 8, kind: output, shape index: {2}]
  %9 = xla_tuple %s6, %s7, %s8
  %s10 = sld [smem:[#allocation0]]
  $region73: #{_lambda_.5} parent=0
    _
  %s12 = ssub.s32 1, %s10
  %s13 = scalar_select 0, %s12, %s10
  loop: start=0, step=1, limit=4
  $region2: #{_lambda_.5} parent=0 // loop_pre_header
    _
  $region3: #{_lambda_.5} parent=0 // loop_header
    %s15 = sphi 0, %s19
    %p16 = scmp.ge.s32.totalorder %s15, 4
    %s22 = sphi 0, %s34
    %s23 = sphi 0, %s30
    %s24 = sphi 0, %s22
    %s25 = sphi 0, %s23
    %s26 = sphi 0, %s24
    %s27 = sphi 0, %s25
    %s39 = sphi 0, %s41
    %s42 = sphi 0, %s39
    %s43 = sphi 0, %s42
    %s59 = sphi 0, %s43
    %s63 = sphi 0, %s63
    %s65 = sphi 0, %s63
    %s66 = sphi 0, %s65
    %s80 = sphi 0, %s66
    %s84 = sphi 0, %s84
    %s86 = sphi 0, %s84
    %s87 = sphi 0, %s86
    %s101 = sphi 0, %s87
    %s105 = sphi 0, %s105
    %s107 = sphi 0, %s105
    %s108 = sphi 0, %s107
    %s122 = sphi 0, %s108
    %s126 = sphi 0, %s126
    %s128 = sphi 0, %s126
    %s129 = sphi 0, %s128
    %s143 = sphi 0, %s129
    %s147 = sphi 0, %s147
    %s149 = sphi 0, %s147
    %s150 = sphi 0, %s149
    %s164 = sphi 0, %s150
    %s172 = sphi 0, %s174
    %s175 = sphi 0, %s172
    %s176 = sphi 0, %s175
    %s192 = sphi 0, %s176
    %s200 = sphi 0, %s202
    %s203 = sphi 0, %s200
    %s204 = sphi 0, %s203
    %s220 = sphi 0, %s204
    %s228 = sphi 0, %s230
    %s231 = sphi 0, %s228
    %s232 = sphi 0, %s231
    %s248 = sphi 0, %s232
  $region4: #{_lambda_.5} parent=0 // loop_header_branch
    %18 = sbr.rel (%p16) target = $region8
  $region5: #{_lambda_.5} parent=0 // loop_body
    %s20 = ssub.s32 %s15, 1
    %s21 = ssub.s32 %s15, 2
    %s28 = sadd.s32 1, %s23
    %p29 = scmp.ge.s32.totalorder %s28, 1
    %s30 = scalar_select %p29, 0, %s28
    %s31 = sadd.s32 1, %s22
    %s32 = scalar_select %p29, %s31, %s22
    %p33 = scmp.ge.s32.totalorder %s32, 2
    %s34 = scalar_select %p33, 0, %s32
    %s35 = ssub.s32 %s22, %s34
    %s36 = ssub.s32 %s23, %s30
    %s37 = sor.u32 %s35, %s36
    %p38 = scmp.eq.s32.totalorder %s37, 0
    %s40 = sadd.s32 %s39, 1
    %s41 = scalar_select %p38, %s39, %s40
    %p44 = pneg %p38
    %p45 = scmp.eq.s32.totalorder %s15, 1
    %p46 = por %p44, %p45
    %p47 = scmp.ne.s32.totalorder %s39, %s42
    %p48 = scmp.eq.s32.totalorder %s15, 0
    %p49 = por %p47, %p48
    %p50 = scmp.ne.s32.totalorder %s39, %s42
    %p51 = scmp.eq.s32.totalorder %s20, 1
    %p52 = por %p50, %p51
    %p53 = scmp.ne.s32.totalorder %s42, %s43
    %p54 = scmp.eq.s32.totalorder %s20, 0
    %p55 = por %p53, %p54
    %p56 = scmp.ne.s32.totalorder %s42, %s43
    %p57 = scmp.eq.s32.totalorder %s21, 1
    %p58 = por %p56, %p57
    %p60 = scmp.ne.s32.totalorder %s43, %s59
    %p61 = scmp.eq.s32.totalorder %s21, 0
    %p62 = por %p60, %p61
    %s64 = sadd.s32 %s63, 1
    %p67 = scmp.eq.s32.totalorder %s15, 1
    %p68 = scmp.ne.s32.totalorder %s63, %s65
    %p69 = scmp.eq.s32.totalorder %s15, 0
    %p70 = por %p68, %p69
    %p71 = scmp.ne.s32.totalorder %s63, %s65
    %p72 = scmp.eq.s32.totalorder %s20, 1
    %p73 = por %p71, %p72
    %p74 = scmp.ne.s32.totalorder %s65, %s66
    %p75 = scmp.eq.s32.totalorder %s20, 0
    %p76 = por %p74, %p75
    %p77 = scmp.ne.s32.totalorder %s65, %s66
    %p78 = scmp.eq.s32.totalorder %s21, 1
    %p79 = por %p77, %p78
    %p81 = scmp.ne.s32.totalorder %s66, %s80
    %p82 = scmp.eq.s32.totalorder %s21, 0
    %p83 = por %p81, %p82
    %s85 = sadd.s32 %s84, 1
    %p88 = scmp.eq.s32.totalorder %s15, 1
    %p89 = scmp.ne.s32.totalorder %s84, %s86
    %p90 = scmp.eq.s32.totalorder %s15, 0
    %p91 = por %p89, %p90
    %p92 = scmp.ne.s32.totalorder %s84, %s86
    %p93 = scmp.eq.s32.totalorder %s20, 1
    %p94 = por %p92, %p93
    %p95 = scmp.ne.s32.totalorder %s86, %s87
    %p96 = scmp.eq.s32.totalorder %s20, 0
    %p97 = por %p95, %p96
    %p98 = scmp.ne.s32.totalorder %s86, %s87
    %p99 = scmp.eq.s32.totalorder %s21, 1
    %p100 = por %p98, %p99
    %p102 = scmp.ne.s32.totalorder %s87, %s101
    %p103 = scmp.eq.s32.totalorder %s21, 0
    %p104 = por %p102, %p103
    %s106 = sadd.s32 %s105, 1
    %p109 = scmp.eq.s32.totalorder %s15, 1
    %p110 = scmp.ne.s32.totalorder %s105, %s107
    %p111 = scmp.eq.s32.totalorder %s15, 0
    %p112 = por %p110, %p111
    %p113 = scmp.ne.s32.totalorder %s105, %s107
    %p114 = scmp.eq.s32.totalorder %s20, 1
    %p115 = por %p113, %p114
    %p116 = scmp.ne.s32.totalorder %s107, %s108
    %p117 = scmp.eq.s32.totalorder %s20, 0
    %p118 = por %p116, %p117
    %p119 = scmp.ne.s32.totalorder %s107, %s108
    %p120 = scmp.eq.s32.totalorder %s21, 1
    %p121 = por %p119, %p120
    %p123 = scmp.ne.s32.totalorder %s108, %s122
    %p124 = scmp.eq.s32.totalorder %s21, 0
    %p125 = por %p123, %p124
    %s127 = sadd.s32 %s126, 1
    %p130 = scmp.eq.s32.totalorder %s15, 1
    %p131 = scmp.ne.s32.totalorder %s126, %s128
    %p132 = scmp.eq.s32.totalorder %s15, 0
    %p133 = por %p131, %p132
    %p134 = scmp.ne.s32.totalorder %s126, %s128
    %p135 = scmp.eq.s32.totalorder %s20, 1
    %p136 = por %p134, %p135
    %p137 = scmp.ne.s32.totalorder %s128, %s129
    %p138 = scmp.eq.s32.totalorder %s20, 0
    %p139 = por %p137, %p138
    %p140 = scmp.ne.s32.totalorder %s128, %s129
    %p141 = scmp.eq.s32.totalorder %s21, 1
    %p142 = por %p140, %p141
    %p144 = scmp.ne.s32.totalorder %s129, %s143
    %p145 = scmp.eq.s32.totalorder %s21, 0
    %p146 = por %p144, %p145
    %s148 = sadd.s32 %s147, 1
    %p151 = scmp.eq.s32.totalorder %s15, 1
    %p152 = scmp.ne.s32.totalorder %s147, %s149
    %p153 = scmp.eq.s32.totalorder %s15, 0
    %p154 = por %p152, %p153
    %p155 = scmp.ne.s32.totalorder %s147, %s149
    %p156 = scmp.eq.s32.totalorder %s20, 1
    %p157 = por %p155, %p156
    %p158 = scmp.ne.s32.totalorder %s149, %s150
    %p159 = scmp.eq.s32.totalorder %s20, 0
    %p160 = por %p158, %p159
    %p161 = scmp.ne.s32.totalorder %s149, %s150
    %p162 = scmp.eq.s32.totalorder %s21, 1
    %p163 = por %p161, %p162
    %p165 = scmp.ne.s32.totalorder %s150, %s164
    %p166 = scmp.eq.s32.totalorder %s21, 0
    %p167 = por %p165, %p166
    %s168 = ssub.s32 %s22, %s34
    %s169 = ssub.s32 %s23, %s30
    %s170 = sor.u32 %s168, %s169
    %p171 = scmp.eq.s32.totalorder %s170, 0
    %s173 = sadd.s32 %s172, 1
    %s174 = scalar_select %p171, %s172, %s173
    %p177 = pneg %p171
    %p178 = scmp.eq.s32.totalorder %s15, 1
    %p179 = por %p177, %p178
    %p180 = scmp.ne.s32.totalorder %s172, %s175
    %p181 = scmp.eq.s32.totalorder %s15, 0
    %p182 = por %p180, %p181
    %p183 = scmp.ne.s32.totalorder %s172, %s175
    %p184 = scmp.eq.s32.totalorder %s20, 1
    %p185 = por %p183, %p184
    %p186 = scmp.ne.s32.totalorder %s175, %s176
    %p187 = scmp.eq.s32.totalorder %s20, 0
    %p188 = por %p186, %p187
    %p189 = scmp.ne.s32.totalorder %s175, %s176
    %p190 = scmp.eq.s32.totalorder %s21, 1
    %p191 = por %p189, %p190
    %p193 = scmp.ne.s32.totalorder %s176, %s192
    %p194 = scmp.eq.s32.totalorder %s21, 0
    %p195 = por %p193, %p194
    %s196 = ssub.s32 %s22, %s34
    %s197 = ssub.s32 %s23, %s30
    %s198 = sor.u32 %s196, %s197
    %p199 = scmp.eq.s32.totalorder %s198, 0
    %s201 = sadd.s32 %s200, 1
    %s202 = scalar_select %p199, %s200, %s201
    %p205 = pneg %p199
    %p206 = scmp.eq.s32.totalorder %s15, 1
    %p207 = por %p205, %p206
    %p208 = scmp.ne.s32.totalorder %s200, %s203
    %p209 = scmp.eq.s32.totalorder %s15, 0
    %p210 = por %p208, %p209
    %p211 = scmp.ne.s32.totalorder %s200, %s203
    %p212 = scmp.eq.s32.totalorder %s20, 1
    %p213 = por %p211, %p212
    %p214 = scmp.ne.s32.totalorder %s203, %s204
    %p215 = scmp.eq.s32.totalorder %s20, 0
    %p216 = por %p214, %p215
    %p217 = scmp.ne.s32.totalorder %s203, %s204
    %p218 = scmp.eq.s32.totalorder %s21, 1
    %p219 = por %p217, %p218
    %p221 = scmp.ne.s32.totalorder %s204, %s220
    %p222 = scmp.eq.s32.totalorder %s21, 0
    %p223 = por %p221, %p222
    %s224 = ssub.s32 %s22, %s34
    %s225 = ssub.s32 %s23, %s30
    %s226 = sor.u32 %s224, %s225
    %p227 = scmp.eq.s32.totalorder %s226, 0
    %s229 = sadd.s32 %s228, 1
    %s230 = scalar_select %p227, %s228, %s229
    %p233 = pneg %p227
    %p234 = scmp.eq.s32.totalorder %s15, 1
    %p235 = por %p233, %p234
    %p236 = scmp.ne.s32.totalorder %s228, %s231
    %p237 = scmp.eq.s32.totalorder %s15, 0
    %p238 = por %p236, %p237
    %p239 = scmp.ne.s32.totalorder %s228, %s231
    %p240 = scmp.eq.s32.totalorder %s20, 1
    %p241 = por %p239, %p240
    %p242 = scmp.ne.s32.totalorder %s231, %s232
    %p243 = scmp.eq.s32.totalorder %s20, 0
    %p244 = por %p242, %p243
    %p245 = scmp.ne.s32.totalorder %s231, %s232
    %p246 = scmp.eq.s32.totalorder %s21, 1
    %p247 = por %p245, %p246
    %p249 = scmp.ne.s32.totalorder %s232, %s248
    %p250 = scmp.eq.s32.totalorder %s21, 0
    %p251 = por %p249, %p250
    %p252 = scmp.le.s32.totalorder 1, %s15
    %p253 = scmp.lt.s32.totalorder %s15, 3
    %p254 = pnand %p252, %p253
    %p255 = pneg %p254
    // Predicated region
    $region9: #{_lambda_.5} parent=5 // pred_check
      _
    $region10: #{_lambda_.5} parent=5 // pred_check_branch
      %257 = sbr.rel (%p254) target = $region12
    $region11: #{_lambda_.5} parent=5 // pred_region
      %s258 = ssub.s32 %s15, 1
      // Predicated region
      $region13: #{_lambda_.5} parent=11 // pred_check
        %p259 = pneg %p76
      $region14: #{_lambda_.5} parent=11 // pred_check_branch
        %261 = sbr.rel (%p259) target = $region16
      $region15: #{_lambda_.5} parent=11 // pred_region
        _
      $region16: #{_lambda_.5} parent=11 // pred_fallthru
        _
      // Predicated region
      $region17: #{_lambda_.5} parent=11 // pred_check
        %p262 = pneg %p97
      $region18: #{_lambda_.5} parent=11 // pred_check_branch
        %264 = sbr.rel (%p262) target = $region20
      $region19: #{_lambda_.5} parent=11 // pred_region
        _
      $region20: #{_lambda_.5} parent=11 // pred_fallthru
        _
      // Predicated region
      $region21: #{_lambda_.5} parent=11 // pred_check
        %p265 = pneg %p118
      $region22: #{_lambda_.5} parent=11 // pred_check_branch
        %267 = sbr.rel (%p265) target = $region24
      $region23: #{_lambda_.5} parent=11 // pred_region
        _
      $region24: #{_lambda_.5} parent=11 // pred_fallthru
        _
      // Predicated region
      $region25: #{_lambda_.5} parent=11 // pred_check
        %p268 = pneg %p139
      $region26: #{_lambda_.5} parent=11 // pred_check_branch
        %270 = sbr.rel (%p268) target = $region28
      $region27: #{_lambda_.5} parent=11 // pred_region
        _
      $region28: #{_lambda_.5} parent=11 // pred_fallthru
        _
      // Predicated region
      $region29: #{_lambda_.5} parent=11 // pred_check
        %p271 = pneg %p160
      $region30: #{_lambda_.5} parent=11 // pred_check_branch
        %273 = sbr.rel (%p271) target = $region32
      $region31: #{_lambda_.5} parent=11 // pred_region
        _
      $region32: #{_lambda_.5} parent=11 // pred_fallthru
        _
    $region12: #{_lambda_.5} parent=5 // pred_fallthru
      _
    %p274 = scmp.lt.s32.totalorder %s15, 2
    // Predicated region
    $region33: #{_lambda_.5} parent=5 // pred_check
      %p275 = pneg %p274
    $region34: #{_lambda_.5} parent=5 // pred_check_branch
      %277 = sbr.rel (%p275) target = $region36
    $region35: #{_lambda_.5} parent=5 // pred_region
      // Predicated region
      $region37: #{_lambda_.5} parent=35 // pred_check
        %p278 = pneg %p49
      $region38: #{_lambda_.5} parent=35 // pred_check_branch
        %280 = sbr.rel (%p278) target = $region40
      $region39: #{_lambda_.5} parent=35 // pred_region
        %p281 = scmp.lt.s32.totalorder %s22, 1
        %s282 = scalar_select %p281, %s22, 1
        %p283 = scmp.lt.s32.totalorder %s23, 0
        %s284 = scalar_select %p283, %s23, 0
        %s285 = smul.addr %s282, 4
        %s286 = sadd.s32 %s284, %s285
        %s287 = smul.addr %s286, 4
        %s288 = scalar_lea.vmem %s0, %s287
      $region40: #{_lambda_.5} parent=35 // pred_fallthru
        _
    $region36: #{_lambda_.5} parent=5 // pred_fallthru
      _
    %p289 = scmp.le.s32.totalorder 1, %s15
    %p290 = scmp.lt.s32.totalorder %s15, 3
    %p291 = pnand %p289, %p290
    %p292 = pneg %p291
    // Predicated region
    $region41: #{_lambda_.5} parent=5 // pred_check
      _
    $region42: #{_lambda_.5} parent=5 // pred_check_branch
      %294 = sbr.rel (%p291) target = $region44
    $region43: #{_lambda_.5} parent=5 // pred_region
      %s295 = ssub.s32 %s15, 1
      %p296 = scmp.lt.s32.totalorder %s24, 1
      %s297 = scalar_select %p296, %s24, 1
      %p298 = scmp.lt.s32.totalorder %s25, 0
      %s299 = scalar_select %p298, %s25, 0
      %s300 = smul.addr %s297, 4
      %s301 = sadd.s32 %s299, %s300
      %s302 = smul.addr %s301, 4
      %s303 = scalar_lea.vmem %s0, %s302
      %p304 = pneg %p55
      %p305 = pneg %p52
      %p306 = pneg %p76
      %p307 = pneg %p73
      %p308 = pneg %p97
      %p309 = pneg %p94
      %p310 = pneg %p118
      %p311 = pneg %p115
      %p312 = pneg %p139
      %p313 = pneg %p136
      %p314 = pneg %p160
      %p315 = pneg %p157
      %p316 = pneg %p188
      %p317 = pneg %p185
      %p318 = scmp.lt.s32.totalorder %s24, 1
      %s319 = scalar_select %p318, %s24, 1
      %p320 = scmp.lt.s32.totalorder %s25, 0
      %s321 = scalar_select %p320, %s25, 0
      %s322 = sadd.s32 %s321, %s319
      %s323 = smul.addr %s322, 4
      %s324 = scalar_lea.vmem %s6, %s323
      %p325 = pneg %p216
      %p326 = pneg %p213
      %p327 = scmp.lt.s32.totalorder %s24, 1
      %s328 = scalar_select %p327, %s24, 1
      %p329 = scmp.lt.s32.totalorder %s25, 0
      %s330 = scalar_select %p329, %s25, 0
      %s331 = sadd.s32 %s330, %s328
      %s332 = smul.addr %s331, 8
      %s333 = scalar_lea.vmem %s7, %s332
      %p334 = pneg %p244
      %p335 = pneg %p241
      %p336 = scmp.lt.s32.totalorder %s24, 1
      %s337 = scalar_select %p336, %s24, 1
      %p338 = scmp.lt.s32.totalorder %s25, 0
      %s339 = scalar_select %p338, %s25, 0
      %s340 = sadd.s32 %s339, %s337
      %s341 = smul.addr %s340, 4
      %s342 = scalar_lea.vmem %s8, %s341
      %p343 = scmp.lt.s32.totalorder %s24, 1
      %s344 = scalar_select %p343, %s24, 1
      %p345 = scmp.lt.s32.totalorder %s25, 0
      %s346 = scalar_select %p345, %s25, 0
      %s347 = smul.addr %s344, 4
      %s348 = sadd.s32 %s346, %s347
      %s349 = smul.addr %s348, 4
      %s350 = scalar_lea.vmem %s0, %s349
      %p351 = scmp.lt.s32.totalorder %s24, 1
      %s352 = scalar_select %p351, %s24, 1
      %p353 = scmp.lt.s32.totalorder %s25, 0
      %s354 = scalar_select %p353, %s25, 0
      %s355 = sadd.s32 %s354, %s352
      %s356 = smul.addr %s355, 4
      %s357 = scalar_lea.vmem %s6, %s356
      %p358 = scmp.lt.s32.totalorder %s24, 1
      %s359 = scalar_select %p358, %s24, 1
      %p360 = scmp.lt.s32.totalorder %s25, 0
      %s361 = scalar_select %p360, %s25, 0
      %s362 = sadd.s32 %s361, %s359
      %s363 = smul.addr %s362, 8
      %s364 = scalar_lea.vmem %s7, %s363
      %p365 = scmp.lt.s32.totalorder %s24, 1
      %s366 = scalar_select %p365, %s24, 1
      %p367 = scmp.lt.s32.totalorder %s25, 0
      %s368 = scalar_select %p367, %s25, 0
      %s369 = sadd.s32 %s368, %s366
      %s370 = smul.addr %s369, 4
      %s371 = scalar_lea.vmem %s8, %s370
      %v373 = vld [vmem:[%s1] sm:$0xf]
      %v374 = vld [vmem:[%s350] sm:$0xf]
      %v375 = vld [vmem:[%s350 + $0x4] sm:$0xf]
      %v376 = vld [vmem:[%s350 + $0x8] sm:$0xf]
      %v377 = vld [vmem:[%s350 + $0xc] sm:$0xf]
      %v382 = vunpack.c.l.b16 %v374
      %v383 = vunpack.c.l.b16 %v375
      %v384 = vunpack.c.l.b16 %v376
      %v385 = vunpack.c.l.b16 %v377
      %v386 = vpack.c.b16 %v383, %v382
      %v387 = vpack.c.b16 %v385, %v384
      %vm390 = vcmask 261120
      %v392 = vsel %vm390, %v373, 0
      %394 = vmatpush.bf16.msra.mxu0 0
      %395 = vmatpush.bf16.msra.mxu0 0
      %396 = vmatpush.bf16.msra.mxu0 0
      %397 = vmatpush.bf16.msra.mxu0 0
      %398 = vmatpush.bf16.msra.mxu0 0
      %399 = vmatpush.bf16.msra.mxu0 0
      %400 = vmatpush.bf16.msra.mxu0 %v387
      %401 = vmatpush.bf16.msra.mxu0 %v386
      %402 = vmatmul.bf16.gmra.mxu0 %v392
      %v403 = vpop.f32.mrf.mxu0
      %v404 = vadd.f32 0.0, %v403
      %v405 = vpop.f32.mrf.mxu0
      %406 = vdwg.mxu0
      %v407 = vld [vmem:[%s2] sm:$0xff]
      %409 = vset.pattern.permute.xlu0 0
      %410 = vperm.xlu0 %409, %v407
      %v411 = vpop.permute.xlu0 %410
      %v413 = vmul.f32 %v404, %v411
      %v414 = vld [vmem:[%s3] sm:$0xff]
      %416 = vset.pattern.permute.xlu0 0
      %417 = vperm.xlu0 %416, %v414
      %v418 = vpop.permute.xlu0 %417
      %v420 = vadd.f32 %v413, %v418
      %v421 = vmax.f32 %v420, 0.0
      %v422 = vpack.c.bf16 %v421, %v421
      %423 = vst [vmem:[%s357] sm:$0xf] %v422
      %v424 = vld [vmem:[%s4] sm:$0xf]
      %v425 = vld [vmem:[%s5] sm:$0xff]
      %427 = vset.pattern.permute.xlu0 0
      %428 = vperm.xlu0 %427, %v425
      %v429 = vpop.permute.xlu0 %428
      %vm431 = vcmask 64512
      %v433 = vsel %vm431, %v424, 0
      %vm435 = vcmask 1043456
      %v437 = vsel %vm435, %v422, 0
      %439 = vmatpush.bf16.msra.mxu0 0
      %440 = vmatpush.bf16.msra.mxu0 0
      %441 = vmatpush.bf16.msra.mxu0 0
      %442 = vmatpush.bf16.msra.mxu0 0
      %443 = vmatpush.bf16.msra.mxu0 0
      %444 = vmatpush.bf16.msra.mxu0 0
      %445 = vmatpush.bf16.msra.mxu0 0
      %446 = vmatpush.bf16.msra.mxu0 %v437
      %447 = vmatmul.bf16.gmra.mxu0 %v433
      %v448 = vpop.f32.mrf.mxu0
      %v449 = vadd.f32 %v429, %v448
      %v450 = vpop.f32.mrf.mxu0
      %451 = vdwg.mxu0
      %452 = vst [vmem:[%s364] sm:$0xff] %v449
      %v453 = vlaneseq
      %v454 = vshrl.u32 %v453, 7
      %vm455 = vcmp.ge.s32.totalorder %v454, 0
      %vm456 = vcmp.lt.s32.totalorder %v454, 3
      %vm457 = vmand %vm455, %vm456
      %v458 = vsel %vm457, 1, 0
      %vm459 = vcmp.eq.s32.totalorder %v458, 1
      %v460 = vsel %vm459, %v449, -inf
      %v461 = vrot.slane %v460, 4
      %v462 = vmax.f32 %v460, %v461
      %v463 = vrot.slane %v462, 2
      %v464 = vmax.f32 %v462, %v463
      %v465 = vrot.slane %v464, 1
      %v466 = vmax.f32 %v464, %v465
      %v467 = vsel %vm459, %v466, 0.0
      %v468 = vadd.f32 %v467, 0.0
      %vm469 = vcmp.ge.s32.totalorder %v454, 3
      %vm470 = vcmp.lt.s32.totalorder %v454, 6
      %vm471 = vmand %vm469, %vm470
      %v472 = vsel %vm471, 1, 0
      %vm473 = vcmp.eq.s32.totalorder %v472, 1
      %v474 = vsel %vm473, %v449, -inf
      %v475 = vrot.slane %v474, 4
      %v476 = vmax.f32 %v474, %v475
      %v477 = vrot.slane %v476, 2
      %v478 = vmax.f32 %v476, %v477
      %v479 = vrot.slane %v478, 1
      %v480 = vmax.f32 %v478, %v479
      %v481 = vsel %vm473, %v480, 0.0
      %v482 = vadd.f32 %v468, %v481
      %vm483 = vcmp.ge.s32.totalorder %v454, 6
      %vm484 = vcmp.lt.s32.totalorder %v454, 8
      %vm485 = vmand %vm483, %vm484
      %v486 = vsel %vm485, 1, 0
      %vm487 = vcmp.eq.s32.totalorder %v486, 1
      %v488 = vsel %vm487, %v449, -inf
      %v489 = vrot.slane %v488, 4
      %v490 = vmax.f32 %v488, %v489
      %v491 = vrot.slane %v490, 2
      %v492 = vmax.f32 %v490, %v491
      %v493 = vrot.slane %v492, 1
      %v494 = vmax.f32 %v492, %v493
      %v495 = vsel %vm487, %v494, 0.0
      %v496 = vadd.f32 %v482, %v495
      %v497 = vsub.f32 %v449, %v496
      %v498 = vmul.f32 %v497, 1.442695
      %v499 = vpow.pop %v498
      %v500 = vsel %vm459, %v499, 0.0
      %v501 = vrot.slane %v500, 4
      %v502 = vadd.f32 %v500, %v501
      %v503 = vrot.slane %v502, 2
      %v504 = vadd.f32 %v502, %v503
      %v505 = vrot.slane %v504, 1
      %v506 = vadd.f32 %v504, %v505
      %v507 = vsel %vm459, %v506, 0.0
      %v508 = vadd.f32 %v507, 0.0
      %v509 = vsel %vm473, %v499, 0.0
      %v510 = vrot.slane %v509, 4
      %v511 = vadd.f32 %v509, %v510
      %v512 = vrot.slane %v511, 2
      %v513 = vadd.f32 %v511, %v512
      %v514 = vrot.slane %v513, 1
      %v515 = vadd.f32 %v513, %v514
      %v516 = vsel %vm473, %v515, 0.0
      %v517 = vadd.f32 %v508, %v516
      %v518 = vsel %vm487, %v499, 0.0
      %v519 = vrot.slane %v518, 4
      %v520 = vadd.f32 %v518, %v519
      %v521 = vrot.slane %v520, 2
      %v522 = vadd.f32 %v520, %v521
      %v523 = vrot.slane %v522, 1
      %v524 = vadd.f32 %v522, %v523
      %v525 = vsel %vm487, %v524, 0.0
      %v526 = vadd.f32 %v517, %v525
      %v527 = vrcp.pop %v526
      %v528 = vmul.f32 %v499, %v527
      %v529 = vpack.c.bf16 %v528, %v528
      %530 = vst [vmem:[%s371] sm:$0xf] %v529
      %p531 = scmp.lt.s32.totalorder %s24, 1
      %s532 = scalar_select %p531, %s24, 1
      %p533 = scmp.lt.s32.totalorder %s25, 0
      %s534 = scalar_select %p533, %s25, 0
      %s535 = sadd.s32 %s534, %s532
      %s536 = smul.addr %s535, 4
      %s537 = scalar_lea.vmem %s6, %s536
      %p538 = scmp.lt.s32.totalorder %s24, 1
      %s539 = scalar_select %p538, %s24, 1
      %p540 = scmp.lt.s32.totalorder %s25, 0
      %s541 = scalar_select %p540, %s25, 0
      %s542 = sadd.s32 %s541, %s539
      %s543 = smul.addr %s542, 8
      %s544 = scalar_lea.vmem %s7, %s543
      %p545 = scmp.lt.s32.totalorder %s24, 1
      %s546 = scalar_select %p545, %s24, 1
      %p547 = scmp.lt.s32.totalorder %s25, 0
      %s548 = scalar_select %p547, %s25, 0
      %s549 = sadd.s32 %s548, %s546
      %s550 = smul.addr %s549, 4
      %s551 = scalar_lea.vmem %s8, %s550
      // Predicated region
      $region45: #{_lambda_.5} parent=43 // pred_check
        %p552 = pneg %p185
      $region46: #{_lambda_.5} parent=43 // pred_check_branch
        %554 = sbr.rel (%p552) target = $region48
      $region47: #{_lambda_.5} parent=43 // pred_region
        _
      $region48: #{_lambda_.5} parent=43 // pred_fallthru
        _
      // Predicated region
      $region49: #{_lambda_.5} parent=43 // pred_check
        %p555 = pneg %p213
      $region50: #{_lambda_.5} parent=43 // pred_check_branch
        %557 = sbr.rel (%p555) target = $region52
      $region51: #{_lambda_.5} parent=43 // pred_region
        _
      $region52: #{_lambda_.5} parent=43 // pred_fallthru
        _
      // Predicated region
      $region53: #{_lambda_.5} parent=43 // pred_check
        %p558 = pneg %p241
      $region54: #{_lambda_.5} parent=43 // pred_check_branch
        %560 = sbr.rel (%p558) target = $region56
      $region55: #{_lambda_.5} parent=43 // pred_region
        _
      $region56: #{_lambda_.5} parent=43 // pred_fallthru
        _
    $region44: #{_lambda_.5} parent=5 // pred_fallthru
      _
    %p561 = scmp.le.s32.totalorder 2, %s15
    // Predicated region
    $region57: #{_lambda_.5} parent=5 // pred_check
      %p562 = pneg %p561
    $region58: #{_lambda_.5} parent=5 // pred_check_branch
      %564 = sbr.rel (%p562) target = $region60
    $region59: #{_lambda_.5} parent=5 // pred_region
      %s565 = ssub.s32 %s15, 2
      // Predicated region
      $region61: #{_lambda_.5} parent=59 // pred_check
        %p566 = pneg %p191
      $region62: #{_lambda_.5} parent=59 // pred_check_branch
        %568 = sbr.rel (%p566) target = $region64
      $region63: #{_lambda_.5} parent=59 // pred_region
        %p569 = scmp.lt.s32.totalorder %s26, 1
        %s570 = scalar_select %p569, %s26, 1
        %p571 = scmp.lt.s32.totalorder %s27, 0
        %s572 = scalar_select %p571, %s27, 0
        %s573 = sadd.s32 %s572, %s570
        %s574 = smul.addr %s573, 4
        %s575 = scalar_lea.vmem %s6, %s574
      $region64: #{_lambda_.5} parent=59 // pred_fallthru
        _
      // Predicated region
      $region65: #{_lambda_.5} parent=59 // pred_check
        %p576 = pneg %p219
      $region66: #{_lambda_.5} parent=59 // pred_check_branch
        %578 = sbr.rel (%p576) target = $region68
      $region67: #{_lambda_.5} parent=59 // pred_region
        %p579 = scmp.lt.s32.totalorder %s26, 1
        %s580 = scalar_select %p579, %s26, 1
        %p581 = scmp.lt.s32.totalorder %s27, 0
        %s582 = scalar_select %p581, %s27, 0
        %s583 = sadd.s32 %s582, %s580
        %s584 = smul.addr %s583, 8
        %s585 = scalar_lea.vmem %s7, %s584
      $region68: #{_lambda_.5} parent=59 // pred_fallthru
        _
      // Predicated region
      $region69: #{_lambda_.5} parent=59 // pred_check
        %p586 = pneg %p247
      $region70: #{_lambda_.5} parent=59 // pred_check_branch
        %588 = sbr.rel (%p586) target = $region72
      $region71: #{_lambda_.5} parent=59 // pred_region
        %p589 = scmp.lt.s32.totalorder %s26, 1
        %s590 = scalar_select %p589, %s26, 1
        %p591 = scmp.lt.s32.totalorder %s27, 0
        %s592 = scalar_select %p591, %s27, 0
        %s593 = sadd.s32 %s592, %s590
        %s594 = smul.addr %s593, 4
        %s595 = scalar_lea.vmem %s8, %s594
      $region72: #{_lambda_.5} parent=59 // pred_fallthru
        _
    $region60: #{_lambda_.5} parent=5 // pred_fallthru
      _
  $region6: #{_lambda_.5} parent=0 // loop_footer
    %s19 = sadd.s32 1, %s15
  $region7: #{_lambda_.5} parent=0 // loop_footer_branch
    %14 = sbr.rel target = $region3
  $region8: #{_lambda_.5} parent=0 // loop_exit
    _

// kernel: _lambda_.4
$region0: #{_lambda_.4}
  #allocation0 [shape = 'u32[]', space=smem, size = 0x4, offset = 0x4, fixed_abs, tag = 'smem constant byte address 0x4 - core index']
  #allocation1 [shape = 'u32[72,128]{1,0:T(1,128)}', space=vmem, size = 0x9000, scoped, tag = 'internal scratch']
  #allocation2 [shape = 'f32[1,128]{1,0:T(1,128)}', space=vmem, size = 0x200, scoped, tag = 'scratch operand']
  #allocation3 [shape = 'f32[33,128]{1,0:T(8,128)}', space=vmem, size = 0x5000, scoped, tag = 'scratch operand']
  %s0 = inlined_call_operand.vmem [shape: bf16[2,128,32], index: 0, kind: input, shape index: {}]
  %s1 = inlined_call_operand.vmem [shape: bf16[2,32,128], index: 1, kind: input, shape index: {}]
  %s2 = inlined_call_operand.vmem [shape: bf16[2,33,128], index: 2, kind: input, shape index: {}]
  %s3 = inlined_call_operand.vmem [shape: bf16[2,32,128], index: 3, kind: output, shape index: {}]
  %s4 = sld [smem:[#allocation0]]
  $region53: #{_lambda_.4} parent=0
    _
  %s6 = ssub.s32 1, %s4
  %s7 = scalar_select 0, %s6, %s4
  loop: start=0, step=1, limit=4
  $region2: #{_lambda_.4} parent=0 // loop_pre_header
    _
  $region3: #{_lambda_.4} parent=0 // loop_header
    %s9 = sphi 0, %s13
    %p10 = scmp.ge.s32.totalorder %s9, 4
    %s16 = sphi 0, %s35
    %s17 = sphi 0, %s31
    %s18 = sphi 0, %s27
    %s19 = sphi 0, %s16
    %s20 = sphi 0, %s17
    %s21 = sphi 0, %s18
    %s22 = sphi 0, %s19
    %s23 = sphi 0, %s20
    %s24 = sphi 0, %s21
    %s40 = sphi 0, %s42
    %s43 = sphi 0, %s40
    %s44 = sphi 0, %s43
    %s60 = sphi 0, %s44
    %s68 = sphi 0, %s70
    %s71 = sphi 0, %s68
    %s72 = sphi 0, %s71
    %s88 = sphi 0, %s72
    %s96 = sphi 0, %s98
    %s99 = sphi 0, %s96
    %s100 = sphi 0, %s99
    %s116 = sphi 0, %s100
    %s124 = sphi 0, %s126
    %s127 = sphi 0, %s124
    %s128 = sphi 0, %s127
    %s144 = sphi 0, %s128
  $region4: #{_lambda_.4} parent=0 // loop_header_branch
    %12 = sbr.rel (%p10) target = $region8
  $region5: #{_lambda_.4} parent=0 // loop_body
    %s14 = ssub.s32 %s9, 1
    %s15 = ssub.s32 %s9, 2
    %s25 = sadd.s32 1, %s18
    %p26 = scmp.ge.s32.totalorder %s25, 1
    %s27 = scalar_select %p26, 0, %s25
    %s28 = sadd.s32 1, %s17
    %s29 = scalar_select %p26, %s28, %s17
    %p30 = scmp.ge.s32.totalorder %s29, 1
    %s31 = scalar_select %p30, 0, %s29
    %s32 = sadd.s32 1, %s16
    %s33 = scalar_select %p30, %s32, %s16
    %p34 = scmp.ge.s32.totalorder %s33, 2
    %s35 = scalar_select %p34, 0, %s33
    %s36 = ssub.s32 %s16, %s35
    %s37 = ssub.s32 %s18, %s27
    %s38 = sor.u32 %s36, %s37
    %p39 = scmp.eq.s32.totalorder %s38, 0
    %s41 = sadd.s32 %s40, 1
    %s42 = scalar_select %p39, %s40, %s41
    %p45 = pneg %p39
    %p46 = scmp.eq.s32.totalorder %s9, 1
    %p47 = por %p45, %p46
    %p48 = scmp.ne.s32.totalorder %s40, %s43
    %p49 = scmp.eq.s32.totalorder %s9, 0
    %p50 = por %p48, %p49
    %p51 = scmp.ne.s32.totalorder %s40, %s43
    %p52 = scmp.eq.s32.totalorder %s14, 1
    %p53 = por %p51, %p52
    %p54 = scmp.ne.s32.totalorder %s43, %s44
    %p55 = scmp.eq.s32.totalorder %s14, 0
    %p56 = por %p54, %p55
    %p57 = scmp.ne.s32.totalorder %s43, %s44
    %p58 = scmp.eq.s32.totalorder %s15, 1
    %p59 = por %p57, %p58
    %p61 = scmp.ne.s32.totalorder %s44, %s60
    %p62 = scmp.eq.s32.totalorder %s15, 0
    %p63 = por %p61, %p62
    %s64 = ssub.s32 %s16, %s35
    %s65 = ssub.s32 %s17, %s31
    %s66 = sor.u32 %s64, %s65
    %p67 = scmp.eq.s32.totalorder %s66, 0
    %s69 = sadd.s32 %s68, 1
    %s70 = scalar_select %p67, %s68, %s69
    %p73 = pneg %p67
    %p74 = scmp.eq.s32.totalorder %s9, 1
    %p75 = por %p73, %p74
    %p76 = scmp.ne.s32.totalorder %s68, %s71
    %p77 = scmp.eq.s32.totalorder %s9, 0
    %p78 = por %p76, %p77
    %p79 = scmp.ne.s32.totalorder %s68, %s71
    %p80 = scmp.eq.s32.totalorder %s14, 1
    %p81 = por %p79, %p80
    %p82 = scmp.ne.s32.totalorder %s71, %s72
    %p83 = scmp.eq.s32.totalorder %s14, 0
    %p84 = por %p82, %p83
    %p85 = scmp.ne.s32.totalorder %s71, %s72
    %p86 = scmp.eq.s32.totalorder %s15, 1
    %p87 = por %p85, %p86
    %p89 = scmp.ne.s32.totalorder %s72, %s88
    %p90 = scmp.eq.s32.totalorder %s15, 0
    %p91 = por %p89, %p90
    %s92 = ssub.s32 %s16, %s35
    %s93 = ssub.s32 %s18, %s27
    %s94 = sor.u32 %s92, %s93
    %p95 = scmp.eq.s32.totalorder %s94, 0
    %s97 = sadd.s32 %s96, 1
    %s98 = scalar_select %p95, %s96, %s97
    %p101 = pneg %p95
    %p102 = scmp.eq.s32.totalorder %s9, 1
    %p103 = por %p101, %p102
    %p104 = scmp.ne.s32.totalorder %s96, %s99
    %p105 = scmp.eq.s32.totalorder %s9, 0
    %p106 = por %p104, %p105
    %p107 = scmp.ne.s32.totalorder %s96, %s99
    %p108 = scmp.eq.s32.totalorder %s14, 1
    %p109 = por %p107, %p108
    %p110 = scmp.ne.s32.totalorder %s99, %s100
    %p111 = scmp.eq.s32.totalorder %s14, 0
    %p112 = por %p110, %p111
    %p113 = scmp.ne.s32.totalorder %s99, %s100
    %p114 = scmp.eq.s32.totalorder %s15, 1
    %p115 = por %p113, %p114
    %p117 = scmp.ne.s32.totalorder %s100, %s116
    %p118 = scmp.eq.s32.totalorder %s15, 0
    %p119 = por %p117, %p118
    %s120 = ssub.s32 %s16, %s35
    %s121 = ssub.s32 %s17, %s31
    %s122 = sor.u32 %s120, %s121
    %p123 = scmp.eq.s32.totalorder %s122, 0
    %s125 = sadd.s32 %s124, 1
    %s126 = scalar_select %p123, %s124, %s125
    %p129 = pneg %p123
    %p130 = scmp.eq.s32.totalorder %s9, 1
    %p131 = por %p129, %p130
    %p132 = scmp.ne.s32.totalorder %s124, %s127
    %p133 = scmp.eq.s32.totalorder %s9, 0
    %p134 = por %p132, %p133
    %p135 = scmp.ne.s32.totalorder %s124, %s127
    %p136 = scmp.eq.s32.totalorder %s14, 1
    %p137 = por %p135, %p136
    %p138 = scmp.ne.s32.totalorder %s127, %s128
    %p139 = scmp.eq.s32.totalorder %s14, 0
    %p140 = por %p138, %p139
    %p141 = scmp.ne.s32.totalorder %s127, %s128
    %p142 = scmp.eq.s32.totalorder %s15, 1
    %p143 = por %p141, %p142
    %p145 = scmp.ne.s32.totalorder %s128, %s144
    %p146 = scmp.eq.s32.totalorder %s15, 0
    %p147 = por %p145, %p146
    %p148 = scmp.le.s32.totalorder 1, %s9
    %p149 = scmp.lt.s32.totalorder %s9, 3
    %p150 = pnand %p148, %p149
    %p151 = pneg %p150
    // Predicated region
    $region9: #{_lambda_.4} parent=5 // pred_check
      _
    $region10: #{_lambda_.4} parent=5 // pred_check_branch
      %153 = sbr.rel (%p150) target = $region12
    $region11: #{_lambda_.4} parent=5 // pred_region
      %s154 = ssub.s32 %s9, 1
    $region12: #{_lambda_.4} parent=5 // pred_fallthru
      _
    %p155 = scmp.lt.s32.totalorder %s9, 2
    // Predicated region
    $region13: #{_lambda_.4} parent=5 // pred_check
      %p156 = pneg %p155
    $region14: #{_lambda_.4} parent=5 // pred_check_branch
      %158 = sbr.rel (%p156) target = $region16
    $region15: #{_lambda_.4} parent=5 // pred_region
      // Predicated region
      $region17: #{_lambda_.4} parent=15 // pred_check
        %p159 = pneg %p50
      $region18: #{_lambda_.4} parent=15 // pred_check_branch
        %161 = sbr.rel (%p159) target = $region20
      $region19: #{_lambda_.4} parent=15 // pred_region
        %s162 = smul.u32 16, %s18
        %p163 = scmp.lt.s32.totalorder %s16, 1
        %s164 = scalar_select %p163, %s16, 1
        %p165 = scmp.lt.s32.totalorder %s162, 15
        %s166 = scalar_select %p165, %s162, 15
        %s167 = smul.addr %s164, 16
        %s168 = sadd.s32 %s166, %s167
        %s169 = smul.addr %s168, 4
        %s170 = scalar_lea.vmem %s0, %s169
        %s171 = smul.u32 16, %s18
      $region20: #{_lambda_.4} parent=15 // pred_fallthru
        _
      // Predicated region
      $region21: #{_lambda_.4} parent=15 // pred_check
        %p172 = pneg %p78
      $region22: #{_lambda_.4} parent=15 // pred_check_branch
        %174 = sbr.rel (%p172) target = $region24
      $region23: #{_lambda_.4} parent=15 // pred_region
        %p175 = scmp.lt.s32.totalorder %s16, 1
        %s176 = scalar_select %p175, %s16, 1
        %p177 = scmp.lt.s32.totalorder %s17, 0
        %s178 = scalar_select %p177, %s17, 0
        %s179 = smul.addr %s176, 4
        %s180 = sadd.s32 %s178, %s179
        %s181 = smul.addr %s180, 4
        %s182 = scalar_lea.vmem %s1, %s181
      $region24: #{_lambda_.4} parent=15 // pred_fallthru
        _
      // Predicated region
      $region25: #{_lambda_.4} parent=15 // pred_check
        %p183 = pneg %p106
      $region26: #{_lambda_.4} parent=15 // pred_check_branch
        %185 = sbr.rel (%p183) target = $region28
      $region27: #{_lambda_.4} parent=15 // pred_region
        %p186 = scmp.lt.s32.totalorder %s16, 1
        %s187 = scalar_select %p186, %s16, 1
        %p188 = scmp.lt.s32.totalorder %s18, 0
        %s189 = scalar_select %p188, %s18, 0
        %s190 = smul.addr %s187, 5
        %s191 = sadd.s32 %s189, %s190
        %s192 = smul.addr %s191, 4
        %s193 = scalar_lea.vmem %s2, %s192
      $region28: #{_lambda_.4} parent=15 // pred_fallthru
        _
    $region16: #{_lambda_.4} parent=5 // pred_fallthru
      _
    %p194 = scmp.le.s32.totalorder 1, %s9
    %p195 = scmp.lt.s32.totalorder %s9, 3
    %p196 = pnand %p194, %p195
    %p197 = pneg %p196
    // Predicated region
    $region29: #{_lambda_.4} parent=5 // pred_check
      _
    $region30: #{_lambda_.4} parent=5 // pred_check_branch
      %199 = sbr.rel (%p196) target = $region32
    $region31: #{_lambda_.4} parent=5 // pred_region
      %s200 = ssub.s32 %s9, 1
      %s201 = smul.u32 16, %s21
      %p202 = scmp.lt.s32.totalorder %s19, 1
      %s203 = scalar_select %p202, %s19, 1
      %p204 = scmp.lt.s32.totalorder %s201, 15
      %s205 = scalar_select %p204, %s201, 15
      %s206 = smul.addr %s203, 16
      %s207 = sadd.s32 %s205, %s206
      %s208 = smul.addr %s207, 4
      %s209 = scalar_lea.vmem %s0, %s208
      %p210 = pneg %p56
      %p211 = pneg %p53
      %p212 = scmp.lt.s32.totalorder %s19, 1
      %s213 = scalar_select %p212, %s19, 1
      %p214 = scmp.lt.s32.totalorder %s20, 0
      %s215 = scalar_select %p214, %s20, 0
      %s216 = smul.addr %s213, 4
      %s217 = sadd.s32 %s215, %s216
      %s218 = smul.addr %s217, 4
      %s219 = scalar_lea.vmem %s1, %s218
      %p220 = pneg %p84
      %p221 = pneg %p81
      %p222 = scmp.lt.s32.totalorder %s19, 1
      %s223 = scalar_select %p222, %s19, 1
      %p224 = scmp.lt.s32.totalorder %s21, 0
      %s225 = scalar_select %p224, %s21, 0
      %s226 = smul.addr %s223, 5
      %s227 = sadd.s32 %s225, %s226
      %s228 = smul.addr %s227, 4
      %s229 = scalar_lea.vmem %s2, %s228
      %p230 = pneg %p112
      %p231 = pneg %p109
      %p232 = pneg %p140
      %p233 = pneg %p137
      %p234 = scmp.lt.s32.totalorder %s19, 1
      %s235 = scalar_select %p234, %s19, 1
      %p236 = scmp.lt.s32.totalorder %s20, 0
      %s237 = scalar_select %p236, %s20, 0
      %s238 = smul.addr %s235, 4
      %s239 = sadd.s32 %s237, %s238
      %s240 = smul.addr %s239, 4
      %s241 = scalar_lea.vmem %s3, %s240
      %s242 = smul.u32 16, %s21
      %p243 = scmp.lt.s32.totalorder %s19, 1
      %s244 = scalar_select %p243, %s19, 1
      %p245 = scmp.lt.s32.totalorder %s242, 15
      %s246 = scalar_select %p245, %s242, 15
      %s247 = smul.addr %s244, 16
      %s248 = sadd.s32 %s246, %s247
      %s249 = smul.addr %s248, 4
      %s250 = scalar_lea.vmem %s0, %s249
      %s251 = smul.u32 16, %s21
      %p252 = scmp.lt.s32.totalorder %s19, 1
      %s253 = scalar_select %p252, %s19, 1
      %p254 = scmp.lt.s32.totalorder %s20, 0
      %s255 = scalar_select %p254, %s20, 0
      %s256 = smul.addr %s253, 4
      %s257 = sadd.s32 %s255, %s256
      %s258 = smul.addr %s257, 4
      %s259 = scalar_lea.vmem %s1, %s258
      %p260 = scmp.lt.s32.totalorder %s19, 1
      %s261 = scalar_select %p260, %s19, 1
      %p262 = scmp.lt.s32.totalorder %s21, 0
      %s263 = scalar_select %p262, %s21, 0
      %s264 = smul.addr %s261, 5
      %s265 = sadd.s32 %s263, %s264
      %s266 = smul.addr %s265, 4
      %s267 = scalar_lea.vmem %s2, %s266
      %p268 = scmp.lt.s32.totalorder %s19, 1
      %s269 = scalar_select %p268, %s19, 1
      %p270 = scmp.lt.s32.totalorder %s20, 0
      %s271 = scalar_select %p270, %s20, 0
      %s272 = smul.addr %s269, 4
      %s273 = sadd.s32 %s271, %s272
      %s274 = smul.addr %s273, 4
      %s275 = scalar_lea.vmem %s3, %s274
      %p277 = scmp.eq.s32.totalorder %s21, 0
      // Predicated region
      $region33: #{_lambda_.4} parent=31 // pred_check
        %p278 = pneg %p277
      $region34: #{_lambda_.4} parent=31 // pred_check_branch
        %280 = sbr.rel (%p278) target = $region36
      $region35: #{_lambda_.4} parent=31 // pred_region
        %281 = vst [vmem:[#allocation2] sm:$0x1] -inf
        %282 = vst [vmem:[#allocation3] sm:$0xff] 0.0
        %283 = vst [vmem:[#allocation3 + $0x8] sm:$0xff] 0.0
        %284 = vst [vmem:[#allocation3 + $0x10] sm:$0xff] 0.0
        %285 = vst [vmem:[#allocation3 + $0x18] sm:$0xff] 0.0
        %286 = vst [vmem:[#allocation3 + $0x20] sm:$0x1] 0.0
      $region36: #{_lambda_.4} parent=31 // pred_fallthru
        _
      %v287 = vld [vmem:[%s250] sm:$0xf]
      %v288 = vld [vmem:[%s250 + $0x4] sm:$0xf]
      %v289 = vld [vmem:[%s250 + $0x8] sm:$0xf]
      %v290 = vld [vmem:[%s250 + $0xc] sm:$0xf]
      %v291 = vld [vmem:[%s250 + $0x10] sm:$0xf]
      %v292 = vld [vmem:[%s250 + $0x14] sm:$0xf]
      %v293 = vld [vmem:[%s250 + $0x18] sm:$0xf]
      %v294 = vld [vmem:[%s250 + $0x1c] sm:$0xf]
      %v295 = vld [vmem:[%s250 + $0x20] sm:$0xf]
      %v296 = vld [vmem:[%s250 + $0x24] sm:$0xf]
      %v297 = vld [vmem:[%s250 + $0x28] sm:$0xf]
      %v298 = vld [vmem:[%s250 + $0x2c] sm:$0xf]
      %v299 = vld [vmem:[%s250 + $0x30] sm:$0xf]
      %v300 = vld [vmem:[%s250 + $0x34] sm:$0xf]
      %v301 = vld [vmem:[%s250 + $0x38] sm:$0xf]
      %v302 = vld [vmem:[%s250 + $0x3c] sm:$0xf]
      %v303 = vld [vmem:[%s259] sm:$0xf]
      %v304 = vld [vmem:[%s259 + $0x4] sm:$0xf]
      %v305 = vld [vmem:[%s259 + $0x8] sm:$0xf]
      %v306 = vld [vmem:[%s259 + $0xc] sm:$0xf]
      %v323 = vunpack.c.l.b16 %v287
      %v324 = vunpack.c.l.b16 %v288
      %v325 = vunpack.c.l.b16 %v289
      %v326 = vunpack.c.l.b16 %v290
      %v327 = vunpack.c.l.b16 %v291
      %v328 = vunpack.c.l.b16 %v292
      %v329 = vunpack.c.l.b16 %v293
      %v330 = vunpack.c.l.b16 %v294
      %v331 = vunpack.c.l.b16 %v295
      %v332 = vunpack.c.l.b16 %v296
      %v333 = vunpack.c.l.b16 %v297
      %v334 = vunpack.c.l.b16 %v298
      %v335 = vunpack.c.l.b16 %v299
      %v336 = vunpack.c.l.b16 %v300
      %v337 = vunpack.c.l.b16 %v301
      %v338 = vunpack.c.l.b16 %v302
      %v339 = vpack.c.b16 %v324, %v323
      %v340 = vpack.c.b16 %v326, %v325
      %v341 = vpack.c.b16 %v328, %v327
      %v342 = vpack.c.b16 %v330, %v329
      %v343 = vpack.c.b16 %v332, %v331
      %v344 = vpack.c.b16 %v334, %v333
      %v345 = vpack.c.b16 %v336, %v335
      %v346 = vpack.c.b16 %v338, %v337
      %v351 = vunpack.c.l.b16 %v303
      %v352 = vunpack.c.l.b16 %v304
      %v353 = vunpack.c.l.b16 %v305
      %v354 = vunpack.c.l.b16 %v306
      %v355 = vpack.c.b16 %v352, %v351
      %v356 = vpack.c.b16 %v354, %v353
      %vm359 = vcmask 261120
      %v361 = vsel %vm359, %v339, 0
      %v364 = vsel %vm359, %v340, 0
      %v367 = vsel %vm359, %v341, 0
      %v370 = vsel %vm359, %v342, 0
      %v373 = vsel %vm359, %v343, 0
      %v376 = vsel %vm359, %v344, 0
      %v379 = vsel %vm359, %v345, 0
      %v382 = vsel %vm359, %v346, 0
      %384 = vmatpush.bf16.msra.mxu0 0
      %385 = vmatpush.bf16.msra.mxu0 0
      %386 = vmatpush.bf16.msra.mxu0 0
      %387 = vmatpush.bf16.msra.mxu0 0
      %388 = vmatpush.bf16.msra.mxu0 0
      %389 = vmatpush.bf16.msra.mxu0 0
      %390 = vmatpush.bf16.msra.mxu0 %v356
      %391 = vmatpush.bf16.msra.mxu0 %v355
      %392 = vmatmul.bf16.gmra.mxu0 %v361
      %v393 = vpop.f32.mrf.mxu0
      %v394 = vadd.f32 0.0, %v393
      %v395 = vpop.f32.mrf.mxu0
      %v396 = vadd.f32 0.0, %v395
      %397 = vmatmul.bf16.gmra.mxu0 %v364
      %v398 = vpop.f32.mrf.mxu0
      %v399 = vadd.f32 0.0, %v398
      %v400 = vpop.f32.mrf.mxu0
      %v401 = vadd.f32 0.0, %v400
      %402 = vmatmul.bf16.gmra.mxu0 %v367
      %v403 = vpop.f32.mrf.mxu0
      %v404 = vadd.f32 0.0, %v403
      %v405 = vpop.f32.mrf.mxu0
      %v406 = vadd.f32 0.0, %v405
      %407 = vmatmul.bf16.gmra.mxu0 %v370
      %v408 = vpop.f32.mrf.mxu0
      %v409 = vadd.f32 0.0, %v408
      %v410 = vpop.f32.mrf.mxu0
      %v411 = vadd.f32 0.0, %v410
      %412 = vmatmul.bf16.gmra.mxu0 %v373
      %v413 = vpop.f32.mrf.mxu0
      %v414 = vadd.f32 0.0, %v413
      %v415 = vpop.f32.mrf.mxu0
      %v416 = vadd.f32 0.0, %v415
      %417 = vmatmul.bf16.gmra.mxu0 %v376
      %v418 = vpop.f32.mrf.mxu0
      %v419 = vadd.f32 0.0, %v418
      %v420 = vpop.f32.mrf.mxu0
      %v421 = vadd.f32 0.0, %v420
      %422 = vmatmul.bf16.gmra.mxu0 %v379
      %v423 = vpop.f32.mrf.mxu0
      %v424 = vadd.f32 0.0, %v423
      %v425 = vpop.f32.mrf.mxu0
      %v426 = vadd.f32 0.0, %v425
      %427 = vmatmul.bf16.gmra.mxu0 %v382
      %v428 = vpop.f32.mrf.mxu0
      %v429 = vadd.f32 0.0, %v428
      %v430 = vpop.f32.mrf.mxu0
      %v431 = vadd.f32 0.0, %v430
      %432 = vdwg.mxu0
      %s433 = smul.u32 %s21, 128
      %v434 = vlaneseq
      %v435 = vshrl.u32 %v434, 7
      %v436 = vadd.s32 %v435, 8
      %v437 = vadd.s32 %v435, 16
      %v438 = vadd.s32 %v435, 24
      %v439 = vadd.s32 %v435, 32
      %v440 = vadd.s32 %v435, 40
      %v441 = vadd.s32 %v435, 48
      %v442 = vadd.s32 %v435, 56
      %v443 = vadd.s32 %v435, 64
      %v444 = vadd.s32 %v435, 72
      %v445 = vadd.s32 %v435, 80
      %v446 = vadd.s32 %v435, 88
      %v447 = vadd.s32 %v435, 96
      %v448 = vadd.s32 %v435, 104
      %v449 = vadd.s32 %v435, 112
      %v450 = vadd.s32 %v435, 120
      %v451 = vstv %s433
      %v452 = vadd.s32 %v451, %v435
      %v453 = vadd.s32 %v451, %v436
      %v454 = vadd.s32 %v451, %v437
      %v455 = vadd.s32 %v451, %v438
      %v456 = vadd.s32 %v451, %v439
      %v457 = vadd.s32 %v451, %v440
      %v458 = vadd.s32 %v451, %v441
      %v459 = vadd.s32 %v451, %v442
      %v460 = vadd.s32 %v451, %v443
      %v461 = vadd.s32 %v451, %v444
      %v462 = vadd.s32 %v451, %v445
      %v463 = vadd.s32 %v451, %v446
      %v464 = vadd.s32 %v451, %v447
      %v465 = vadd.s32 %v451, %v448
      %v466 = vadd.s32 %v451, %v449
      %v467 = vadd.s32 %v451, %v450
      %vm468 = vcmp.lt.s32.totalorder %v452, 64
      %vm469 = vcmp.lt.s32.totalorder %v453, 64
      %vm470 = vcmp.lt.s32.totalorder %v454, 64
      %vm471 = vcmp.lt.s32.totalorder %v455, 64
      %vm472 = vcmp.lt.s32.totalorder %v456, 64
      %vm473 = vcmp.lt.s32.totalorder %v457, 64
      %vm474 = vcmp.lt.s32.totalorder %v458, 64
      %vm475 = vcmp.lt.s32.totalorder %v459, 64
      %vm476 = vcmp.lt.s32.totalorder %v460, 64
      %vm477 = vcmp.lt.s32.totalorder %v461, 64
      %vm478 = vcmp.lt.s32.totalorder %v462, 64
      %vm479 = vcmp.lt.s32.totalorder %v463, 64
      %vm480 = vcmp.lt.s32.totalorder %v464, 64
      %vm481 = vcmp.lt.s32.totalorder %v465, 64
      %vm482 = vcmp.lt.s32.totalorder %v466, 64
      %vm483 = vcmp.lt.s32.totalorder %v467, 64
      %v484 = vsel %vm468, 1, 0
      %v485 = vsel %vm469, 1, 0
      %v486 = vsel %vm470, 1, 0
      %v487 = vsel %vm471, 1, 0
      %v488 = vsel %vm472, 1, 0
      %v489 = vsel %vm473, 1, 0
      %v490 = vsel %vm474, 1, 0
      %v491 = vsel %vm475, 1, 0
      %v492 = vsel %vm476, 1, 0
      %v493 = vsel %vm477, 1, 0
      %v494 = vsel %vm478, 1, 0
      %v495 = vsel %vm479, 1, 0
      %v496 = vsel %vm480, 1, 0
      %v497 = vsel %vm481, 1, 0
      %v498 = vsel %vm482, 1, 0
      %v499 = vsel %vm483, 1, 0
      %vm500 = vcmp.eq.s32.totalorder %v484, 1
      %vm501 = vcmp.eq.s32.totalorder %v485, 1
      %vm502 = vcmp.eq.s32.totalorder %v486, 1
      %vm503 = vcmp.eq.s32.totalorder %v487, 1
      %vm504 = vcmp.eq.s32.totalorder %v488, 1
      %vm505 = vcmp.eq.s32.totalorder %v489, 1
      %vm506 = vcmp.eq.s32.totalorder %v490, 1
      %vm507 = vcmp.eq.s32.totalorder %v491, 1
      %vm508 = vcmp.eq.s32.totalorder %v492, 1
      %vm509 = vcmp.eq.s32.totalorder %v493, 1
      %vm510 = vcmp.eq.s32.totalorder %v494, 1
      %vm511 = vcmp.eq.s32.totalorder %v495, 1
      %vm512 = vcmp.eq.s32.totalorder %v496, 1
      %vm513 = vcmp.eq.s32.totalorder %v497, 1
      %vm514 = vcmp.eq.s32.totalorder %v498, 1
      %vm515 = vcmp.eq.s32.totalorder %v499, 1
      %v516 = vsel %vm500, %v394, -1e+30
      %v517 = vsel %vm501, %v396, -1e+30
      %v518 = vsel %vm502, %v399, -1e+30
      %v519 = vsel %vm503, %v401, -1e+30
      %v520 = vsel %vm504, %v404, -1e+30
      %v521 = vsel %vm505, %v406, -1e+30
      %v522 = vsel %vm506, %v409, -1e+30
      %v523 = vsel %vm507, %v411, -1e+30
      %v524 = vsel %vm508, %v414, -1e+30
      %v525 = vsel %vm509, %v416, -1e+30
      %v526 = vsel %vm510, %v419, -1e+30
      %v527 = vsel %vm511, %v421, -1e+30
      %v528 = vsel %vm512, %v424, -1e+30
      %v529 = vsel %vm513, %v426, -1e+30
      %v530 = vsel %vm514, %v429, -1e+30
      %v531 = vsel %vm515, %v431, -1e+30
      %v532 = vld [vmem:[#allocation2] sm:$0x1]
      %v533 = vmax.f32 %v516, %v520
      %v534 = vmax.f32 %v517, %v521
      %v535 = vmax.f32 %v518, %v522
      %v536 = vmax.f32 %v519, %v523
      %v537 = vmax.f32 %v533, %v524
      %v538 = vmax.f32 %v534, %v525
      %v539 = vmax.f32 %v535, %v526
      %v540 = vmax.f32 %v536, %v527
      %v541 = vmax.f32 %v537, %v528
      %v542 = vmax.f32 %v538, %v529
      %v543 = vmax.f32 %v539, %v530
      %v544 = vmax.f32 %v540, %v531
      %v545 = vmax.f32 %v541, %v542
      %v546 = vmax.f32 %v543, %v544
      %v547 = vmax.f32 %v545, %v546
      %v548 = vrot.slane %v547, 4
      %v549 = vmax.f32 %v547, %v548
      %v550 = vrot.slane %v549, 2
      %v551 = vmax.f32 %v549, %v550
      %v552 = vrot.slane %v551, 1
      %v553 = vmax.f32 %v551, %v552
      %v554 = vmax.f32 %v532, %v553
      %v555 = vsub.f32 %v532, %v554
      %v556 = vmul.f32 %v555, 1.442695
      %v557 = vpow.pop %v556
      %v559 = vperm.slane %v554, 0
      %v561 = vsub.f32 %v516, %v559
      %v562 = vsub.f32 %v517, %v559
      %v563 = vsub.f32 %v518, %v559
      %v564 = vsub.f32 %v519, %v559
      %v565 = vsub.f32 %v520, %v559
      %v566 = vsub.f32 %v521, %v559
      %v567 = vsub.f32 %v522, %v559
      %v568 = vsub.f32 %v523, %v559
      %v569 = vsub.f32 %v524, %v559
      %v570 = vsub.f32 %v525, %v559
      %v571 = vsub.f32 %v526, %v559
      %v572 = vsub.f32 %v527, %v559
      %v573 = vsub.f32 %v528, %v559
      %v574 = vsub.f32 %v529, %v559
      %v575 = vsub.f32 %v530, %v559
      %v576 = vsub.f32 %v531, %v559
      %v577 = vpack.c.bf16 %v562, %v561
      %v578 = vpack.c.bf16 %v564, %v563
      %v579 = vpack.c.bf16 %v566, %v565
      %v580 = vpack.c.bf16 %v568, %v567
      %v581 = vpack.c.bf16 %v570, %v569
      %v582 = vpack.c.bf16 %v572, %v571
      %v583 = vpack.c.bf16 %v574, %v573
      %v584 = vpack.c.bf16 %v576, %v575
      %v585 = vunpack.c.l.bf16 %v577
      %v586 = vunpack.c.h.bf16 %v577
      %v587 = vunpack.c.l.bf16 %v578
      %v588 = vunpack.c.h.bf16 %v578
      %v589 = vunpack.c.l.bf16 %v579
      %v590 = vunpack.c.h.bf16 %v579
      %v591 = vunpack.c.l.bf16 %v580
      %v592 = vunpack.c.h.bf16 %v580
      %v593 = vunpack.c.l.bf16 %v581
      %v594 = vunpack.c.h.bf16 %v581
      %v595 = vunpack.c.l.bf16 %v582
      %v596 = vunpack.c.h.bf16 %v582
      %v597 = vunpack.c.l.bf16 %v583
      %v598 = vunpack.c.h.bf16 %v583
      %v599 = vunpack.c.l.bf16 %v584
      %v600 = vunpack.c.h.bf16 %v584
      %v601 = vmul.f32 %v585, 1.442695
      %v602 = vpow.pop %v601
      %v603 = vmul.f32 %v586, 1.442695
      %v604 = vpow.pop %v603
      %v605 = vmul.f32 %v587, 1.442695
      %v606 = vpow.pop %v605
      %v607 = vmul.f32 %v588, 1.442695
      %v608 = vpow.pop %v607
      %v609 = vmul.f32 %v589, 1.442695
      %v610 = vpow.pop %v609
      %v611 = vmul.f32 %v590, 1.442695
      %v612 = vpow.pop %v611
      %v613 = vmul.f32 %v591, 1.442695
      %v614 = vpow.pop %v613
      %v615 = vmul.f32 %v592, 1.442695
      %v616 = vpow.pop %v615
      %v617 = vmul.f32 %v593, 1.442695
      %v618 = vpow.pop %v617
      %v619 = vmul.f32 %v594, 1.442695
      %v620 = vpow.pop %v619
      %v621 = vmul.f32 %v595, 1.442695
      %v622 = vpow.pop %v621
      %v623 = vmul.f32 %v596, 1.442695
      %v624 = vpow.pop %v623
      %v625 = vmul.f32 %v597, 1.442695
      %v626 = vpow.pop %v625
      %v627 = vmul.f32 %v598, 1.442695
      %v628 = vpow.pop %v627
      %v629 = vmul.f32 %v599, 1.442695
      %v630 = vpow.pop %v629
      %v631 = vmul.f32 %v600, 1.442695
      %v632 = vpow.pop %v631
      %v633 = vpack.c.bf16 %v604, %v602
      %v634 = vpack.c.bf16 %v608, %v606
      %v635 = vpack.c.bf16 %v612, %v610
      %v636 = vpack.c.bf16 %v616, %v614
      %v637 = vpack.c.bf16 %v620, %v618
      %v638 = vpack.c.bf16 %v624, %v622
      %v639 = vpack.c.bf16 %v628, %v626
      %v640 = vpack.c.bf16 %v632, %v630
      %v641 = vld [vmem:[#allocation3] sm:$0xff]
      %v642 = vld [vmem:[#allocation3 + $0x8] sm:$0xff]
      %v643 = vld [vmem:[#allocation3 + $0x10] sm:$0xff]
      %v644 = vld [vmem:[#allocation3 + $0x18] sm:$0xff]
      %v645 = vld [vmem:[#allocation3 + $0x20] sm:$0x1]
      %v647 = vperm.slane %v557, 0
      %v649 = vmul.f32 %v647, %v641
      %v650 = vmul.f32 %v647, %v642
      %v651 = vmul.f32 %v647, %v643
      %v652 = vmul.f32 %v647, %v644
      %v653 = vmul.f32 %v647, %v645
      %v654 = vld [vmem:[%s267] sm:$0xf]
      %v655 = vld [vmem:[%s267 + $0x4] sm:$0xf]
      %v656 = vld [vmem:[%s267 + $0x8] sm:$0xf]
      %v657 = vld [vmem:[%s267 + $0xc] sm:$0xf]
      %v658 = vld [vmem:[%s267 + $0x10] sm:$0x1]
      %v664 = vunpack.c.l.b16 %v654
      %v665 = vunpack.c.l.b16 %v655
      %v666 = vunpack.c.l.b16 %v656
      %v667 = vunpack.c.l.b16 %v657
      %v668 = vunpack.c.l.b16 %v658
      %v669 = vpack.c.b16 %v665, %v664
      %v670 = vpack.c.b16 %v667, %v666
      %v671 = vpack.c.b16 %v668, %v668
      %675 = vmatpush.bf16.msra.mxu0 %v640
      %676 = vmatpush.bf16.msra.mxu0 %v639
      %677 = vmatpush.bf16.msra.mxu0 %v638
      %678 = vmatpush.bf16.msra.mxu0 %v637
      %679 = vmatpush.bf16.msra.mxu0 %v636
      %680 = vmatpush.bf16.msra.mxu0 %v635
      %681 = vmatpush.bf16.msra.mxu0 %v634
      %682 = vmatpush.bf16.msra.mxu0 %v633
      %683 = vmatmul.bf16.gmra.mxu0 %v669
      %v684 = vpop.f32.mrf.mxu0
      %v685 = vadd.f32 0.0, %v684
      %v686 = vpop.f32.mrf.mxu0
      %v687 = vadd.f32 0.0, %v686
      %688 = vmatmul.bf16.gmra.mxu0 %v670
      %v689 = vpop.f32.mrf.mxu0
      %v690 = vadd.f32 0.0, %v689
      %v691 = vpop.f32.mrf.mxu0
      %v692 = vadd.f32 0.0, %v691
      %693 = vmatmul.bf16.gmra.mxu0 %v671
      %v694 = vpop.f32.mrf.mxu0
      %v695 = vadd.f32 0.0, %v694
      %v696 = vpop.f32.mrf.mxu0
      %697 = vdwg.mxu0
      %v698 = vadd.f32 %v649, %v685
      %v699 = vadd.f32 %v650, %v687
      %v700 = vadd.f32 %v651, %v690
      %v701 = vadd.f32 %v652, %v692
      %v702 = vadd.f32 %v653, %v695
      %703 = vst [vmem:[#allocation3] sm:$0xff] %v698
      %704 = vst [vmem:[#allocation3 + $0x8] sm:$0xff] %v699
      %705 = vst [vmem:[#allocation3 + $0x10] sm:$0xff] %v700
      %706 = vst [vmem:[#allocation3 + $0x18] sm:$0xff] %v701
      %707 = vst [vmem:[#allocation3 + $0x20] sm:$0x1] %v702
      %708 = vst [vmem:[#allocation2] sm:$0x1] %v554
      // Predicated region
      $region37: #{_lambda_.4} parent=31 // pred_check
        %p709 = pneg %p277
      $region38: #{_lambda_.4} parent=31 // pred_check_branch
        %711 = sbr.rel (%p709) target = $region40
      $region39: #{_lambda_.4} parent=31 // pred_region
        %v712 = vld [vmem:[#allocation3 + $0x20] sm:$0x1]
        %v713 = vld [vmem:[#allocation3] sm:$0xff]
        %v714 = vld [vmem:[#allocation3 + $0x8] sm:$0xff]
        %v715 = vld [vmem:[#allocation3 + $0x10] sm:$0xff]
        %v716 = vld [vmem:[#allocation3 + $0x18] sm:$0xff]
        %v717 = vrcp.pop %v712
        %v718 = vperm.slane %v717, 0
        %v719 = vmul.f32 %v713, %v718
        %v720 = vmul.f32 %v714, %v718
        %v721 = vmul.f32 %v715, %v718
        %v722 = vmul.f32 %v716, %v718
        %v723 = vpack.c.bf16 %v719, %v719
        %v724 = vpack.c.bf16 %v720, %v720
        %v725 = vpack.c.bf16 %v721, %v721
        %v726 = vpack.c.bf16 %v722, %v722
        %727 = vst [vmem:[%s275] sm:$0xf] %v723
        %728 = vst [vmem:[%s275 + $0x4] sm:$0xf] %v724
        %729 = vst [vmem:[%s275 + $0x8] sm:$0xf] %v725
        %730 = vst [vmem:[%s275 + $0xc] sm:$0xf] %v726
      $region40: #{_lambda_.4} parent=31 // pred_fallthru
        _
      %p731 = scmp.lt.s32.totalorder %s19, 1
      %s732 = scalar_select %p731, %s19, 1
      %p733 = scmp.lt.s32.totalorder %s20, 0
      %s734 = scalar_select %p733, %s20, 0
      %s735 = smul.addr %s732, 4
      %s736 = sadd.s32 %s734, %s735
      %s737 = smul.addr %s736, 4
      %s738 = scalar_lea.vmem %s3, %s737
      // Predicated region
      $region41: #{_lambda_.4} parent=31 // pred_check
        %p739 = pneg %p137
      $region42: #{_lambda_.4} parent=31 // pred_check_branch
        %741 = sbr.rel (%p739) target = $region44
      $region43: #{_lambda_.4} parent=31 // pred_region
        _
      $region44: #{_lambda_.4} parent=31 // pred_fallthru
        _
    $region32: #{_lambda_.4} parent=5 // pred_fallthru
      _
    %p742 = scmp.le.s32.totalorder 2, %s9
    // Predicated region
    $region45: #{_lambda_.4} parent=5 // pred_check
      %p743 = pneg %p742
    $region46: #{_lambda_.4} parent=5 // pred_check_branch
      %745 = sbr.rel (%p743) target = $region48
    $region47: #{_lambda_.4} parent=5 // pred_region
      %s746 = ssub.s32 %s9, 2
      // Predicated region
      $region49: #{_lambda_.4} parent=47 // pred_check
        %p747 = pneg %p143
      $region50: #{_lambda_.4} parent=47 // pred_check_branch
        %749 = sbr.rel (%p747) target = $region52
      $region51: #{_lambda_.4} parent=47 // pred_region
        %p750 = scmp.lt.s32.totalorder %s22, 1
        %s751 = scalar_select %p750, %s22, 1
        %p752 = scmp.lt.s32.totalorder %s23, 0
        %s753 = scalar_select %p752, %s23, 0
        %s754 = smul.addr %s751, 4
        %s755 = sadd.s32 %s753, %s754
        %s756 = smul.addr %s755, 4
        %s757 = scalar_lea.vmem %s3, %s756
      $region52: #{_lambda_.4} parent=47 // pred_fallthru
        _
    $region48: #{_lambda_.4} parent=5 // pred_fallthru
      _
  $region6: #{_lambda_.4} parent=0 // loop_footer
    %s13 = sadd.s32 1, %s9
  $region7: #{_lambda_.4} parent=0 // loop_footer_branch
    %8 = sbr.rel target = $region3
  $region8: #{_lambda_.4} parent=0 // loop_exit
    _

// kernel: _lambda_.3
$region0: #{_lambda_.3}
  #allocation0 [shape = 'u32[]', space=smem, size = 0x4, offset = 0x4, fixed_abs, tag = 'smem constant byte address 0x4 - core index']
  #allocation1 [shape = 'u32[72,128]{1,0:T(1,128)}', space=vmem, size = 0x9000, scoped, tag = 'internal scratch']
  %s0 = inlined_call_operand.vmem [shape: bf16[2,8,128], index: 0, kind: input, shape index: {}]
  %s1 = inlined_call_operand.vmem [shape: bf16[2,8,128], index: 1, kind: input, shape index: {}]
  %s2 = inlined_call_operand.vmem [shape: bf16[2,8,128], index: 2, kind: input, shape index: {}]
  %s3 = inlined_call_operand.vmem [shape: bf16[2,32,128], index: 3, kind: input, shape index: {}]
  %s4 = inlined_call_operand.vmem [shape: bf16[1,8,128], index: 4, kind: input, shape index: {}]
  %s5 = inlined_call_operand.vmem [shape: bf16[64,8], index: 5, kind: input, shape index: {}]
  %s6 = inlined_call_operand.vmem [shape: bf16[64,8], index: 6, kind: input, shape index: {}]
  %s7 = inlined_call_operand.vmem [shape: bf16[64,8], index: 7, kind: input, shape index: {}]
  %s8 = inlined_call_operand.vmem [shape: bf16[64,32], index: 8, kind: input, shape index: {}]
  %s9 = inlined_call_operand.vmem [shape: bf16[64,8], index: 9, kind: input, shape index: {}]
  %s10 = inlined_call_operand.vmem [shape: f32[64,1], index: 10, kind: input, shape index: {}]
  %s11 = inlined_call_operand.vmem [shape: f32[64,1], index: 11, kind: input, shape index: {}]
  %s12 = inlined_call_operand.vmem [shape: bf16[2,128,32], index: 12, kind: output, shape index: {0}]
  %s13 = inlined_call_operand.vmem [shape: bf16[2,32,128], index: 13, kind: output, shape index: {1}]
  %14 = xla_tuple %s12, %s13
  %s15 = sld [smem:[#allocation0]]
  $region89: #{_lambda_.3} parent=0
    _
  %s17 = ssub.s32 1, %s15
  %s18 = scalar_select 0, %s17, %s15
  loop: start=0, step=1, limit=4
  $region2: #{_lambda_.3} parent=0 // loop_pre_header
    _
  $region3: #{_lambda_.3} parent=0 // loop_header
    %s20 = sphi 0, %s24
    %p21 = scmp.ge.s32.totalorder %s20, 4
    %s27 = sphi 0, %s39
    %s28 = sphi 0, %s35
    %s29 = sphi 0, %s27
    %s30 = sphi 0, %s28
    %s31 = sphi 0, %s29
    %s32 = sphi 0, %s30
    %s44 = sphi 0, %s46
    %s47 = sphi 0, %s44
    %s48 = sphi 0, %s47
    %s64 = sphi 0, %s48
    %s72 = sphi 0, %s74
    %s75 = sphi 0, %s72
    %s76 = sphi 0, %s75
    %s92 = sphi 0, %s76
    %s100 = sphi 0, %s102
    %s103 = sphi 0, %s100
    %s104 = sphi 0, %s103
    %s120 = sphi 0, %s104
    %s128 = sphi 0, %s130
    %s131 = sphi 0, %s128
    %s132 = sphi 0, %s131
    %s148 = sphi 0, %s132
    %s154 = sphi 0, %s156
    %s157 = sphi 0, %s154
    %s158 = sphi 0, %s157
    %s174 = sphi 0, %s158
    %s178 = sphi 0, %s178
    %s180 = sphi 0, %s178
    %s181 = sphi 0, %s180
    %s195 = sphi 0, %s181
    %s199 = sphi 0, %s199
    %s201 = sphi 0, %s199
    %s202 = sphi 0, %s201
    %s216 = sphi 0, %s202
    %s220 = sphi 0, %s220
    %s222 = sphi 0, %s220
    %s223 = sphi 0, %s222
    %s237 = sphi 0, %s223
    %s241 = sphi 0, %s241
    %s243 = sphi 0, %s241
    %s244 = sphi 0, %s243
    %s258 = sphi 0, %s244
    %s262 = sphi 0, %s262
    %s264 = sphi 0, %s262
    %s265 = sphi 0, %s264
    %s279 = sphi 0, %s265
    %s283 = sphi 0, %s283
    %s285 = sphi 0, %s283
    %s286 = sphi 0, %s285
    %s300 = sphi 0, %s286
    %s304 = sphi 0, %s304
    %s306 = sphi 0, %s304
    %s307 = sphi 0, %s306
    %s321 = sphi 0, %s307
    %s329 = sphi 0, %s331
    %s332 = sphi 0, %s329
    %s333 = sphi 0, %s332
    %s349 = sphi 0, %s333
    %s357 = sphi 0, %s359
    %s360 = sphi 0, %s357
    %s361 = sphi 0, %s360
    %s377 = sphi 0, %s361
  $region4: #{_lambda_.3} parent=0 // loop_header_branch
    %23 = sbr.rel (%p21) target = $region8
  $region5: #{_lambda_.3} parent=0 // loop_body
    %s25 = ssub.s32 %s20, 1
    %s26 = ssub.s32 %s20, 2
    %s33 = sadd.s32 1, %s28
    %p34 = scmp.ge.s32.totalorder %s33, 1
    %s35 = scalar_select %p34, 0, %s33
    %s36 = sadd.s32 1, %s27
    %s37 = scalar_select %p34, %s36, %s27
    %p38 = scmp.ge.s32.totalorder %s37, 2
    %s39 = scalar_select %p38, 0, %s37
    %s40 = ssub.s32 %s27, %s39
    %s41 = ssub.s32 %s28, %s35
    %s42 = sor.u32 %s40, %s41
    %p43 = scmp.eq.s32.totalorder %s42, 0
    %s45 = sadd.s32 %s44, 1
    %s46 = scalar_select %p43, %s44, %s45
    %p49 = pneg %p43
    %p50 = scmp.eq.s32.totalorder %s20, 1
    %p51 = por %p49, %p50
    %p52 = scmp.ne.s32.totalorder %s44, %s47
    %p53 = scmp.eq.s32.totalorder %s20, 0
    %p54 = por %p52, %p53
    %p55 = scmp.ne.s32.totalorder %s44, %s47
    %p56 = scmp.eq.s32.totalorder %s25, 1
    %p57 = por %p55, %p56
    %p58 = scmp.ne.s32.totalorder %s47, %s48
    %p59 = scmp.eq.s32.totalorder %s25, 0
    %p60 = por %p58, %p59
    %p61 = scmp.ne.s32.totalorder %s47, %s48
    %p62 = scmp.eq.s32.totalorder %s26, 1
    %p63 = por %p61, %p62
    %p65 = scmp.ne.s32.totalorder %s48, %s64
    %p66 = scmp.eq.s32.totalorder %s26, 0
    %p67 = por %p65, %p66
    %s68 = ssub.s32 %s27, %s39
    %s69 = ssub.s32 %s28, %s35
    %s70 = sor.u32 %s68, %s69
    %p71 = scmp.eq.s32.totalorder %s70, 0
    %s73 = sadd.s32 %s72, 1
    %s74 = scalar_select %p71, %s72, %s73
    %p77 = pneg %p71
    %p78 = scmp.eq.s32.totalorder %s20, 1
    %p79 = por %p77, %p78
    %p80 = scmp.ne.s32.totalorder %s72, %s75
    %p81 = scmp.eq.s32.totalorder %s20, 0
    %p82 = por %p80, %p81
    %p83 = scmp.ne.s32.totalorder %s72, %s75
    %p84 = scmp.eq.s32.totalorder %s25, 1
    %p85 = por %p83, %p84
    %p86 = scmp.ne.s32.totalorder %s75, %s76
    %p87 = scmp.eq.s32.totalorder %s25, 0
    %p88 = por %p86, %p87
    %p89 = scmp.ne.s32.totalorder %s75, %s76
    %p90 = scmp.eq.s32.totalorder %s26, 1
    %p91 = por %p89, %p90
    %p93 = scmp.ne.s32.totalorder %s76, %s92
    %p94 = scmp.eq.s32.totalorder %s26, 0
    %p95 = por %p93, %p94
    %s96 = ssub.s32 %s27, %s39
    %s97 = ssub.s32 %s28, %s35
    %s98 = sor.u32 %s96, %s97
    %p99 = scmp.eq.s32.totalorder %s98, 0
    %s101 = sadd.s32 %s100, 1
    %s102 = scalar_select %p99, %s100, %s101
    %p105 = pneg %p99
    %p106 = scmp.eq.s32.totalorder %s20, 1
    %p107 = por %p105, %p106
    %p108 = scmp.ne.s32.totalorder %s100, %s103
    %p109 = scmp.eq.s32.totalorder %s20, 0
    %p110 = por %p108, %p109
    %p111 = scmp.ne.s32.totalorder %s100, %s103
    %p112 = scmp.eq.s32.totalorder %s25, 1
    %p113 = por %p111, %p112
    %p114 = scmp.ne.s32.totalorder %s103, %s104
    %p115 = scmp.eq.s32.totalorder %s25, 0
    %p116 = por %p114, %p115
    %p117 = scmp.ne.s32.totalorder %s103, %s104
    %p118 = scmp.eq.s32.totalorder %s26, 1
    %p119 = por %p117, %p118
    %p121 = scmp.ne.s32.totalorder %s104, %s120
    %p122 = scmp.eq.s32.totalorder %s26, 0
    %p123 = por %p121, %p122
    %s124 = ssub.s32 %s27, %s39
    %s125 = ssub.s32 %s28, %s35
    %s126 = sor.u32 %s124, %s125
    %p127 = scmp.eq.s32.totalorder %s126, 0
    %s129 = sadd.s32 %s128, 1
    %s130 = scalar_select %p127, %s128, %s129
    %p133 = pneg %p127
    %p134 = scmp.eq.s32.totalorder %s20, 1
    %p135 = por %p133, %p134
    %p136 = scmp.ne.s32.totalorder %s128, %s131
    %p137 = scmp.eq.s32.totalorder %s20, 0
    %p138 = por %p136, %p137
    %p139 = scmp.ne.s32.totalorder %s128, %s131
    %p140 = scmp.eq.s32.totalorder %s25, 1
    %p141 = por %p139, %p140
    %p142 = scmp.ne.s32.totalorder %s131, %s132
    %p143 = scmp.eq.s32.totalorder %s25, 0
    %p144 = por %p142, %p143
    %p145 = scmp.ne.s32.totalorder %s131, %s132
    %p146 = scmp.eq.s32.totalorder %s26, 1
    %p147 = por %p145, %p146
    %p149 = scmp.ne.s32.totalorder %s132, %s148
    %p150 = scmp.eq.s32.totalorder %s26, 0
    %p151 = por %p149, %p150
    %s152 = ssub.s32 %s28, %s35
    %p153 = scmp.eq.s32.totalorder %s152, 0
    %s155 = sadd.s32 %s154, 1
    %s156 = scalar_select %p153, %s154, %s155
    %p159 = pneg %p153
    %p160 = scmp.eq.s32.totalorder %s20, 1
    %p161 = por %p159, %p160
    %p162 = scmp.ne.s32.totalorder %s154, %s157
    %p163 = scmp.eq.s32.totalorder %s20, 0
    %p164 = por %p162, %p163
    %p165 = scmp.ne.s32.totalorder %s154, %s157
    %p166 = scmp.eq.s32.totalorder %s25, 1
    %p167 = por %p165, %p166
    %p168 = scmp.ne.s32.totalorder %s157, %s158
    %p169 = scmp.eq.s32.totalorder %s25, 0
    %p170 = por %p168, %p169
    %p171 = scmp.ne.s32.totalorder %s157, %s158
    %p172 = scmp.eq.s32.totalorder %s26, 1
    %p173 = por %p171, %p172
    %p175 = scmp.ne.s32.totalorder %s158, %s174
    %p176 = scmp.eq.s32.totalorder %s26, 0
    %p177 = por %p175, %p176
    %s179 = sadd.s32 %s178, 1
    %p182 = scmp.eq.s32.totalorder %s20, 1
    %p183 = scmp.ne.s32.totalorder %s178, %s180
    %p184 = scmp.eq.s32.totalorder %s20, 0
    %p185 = por %p183, %p184
    %p186 = scmp.ne.s32.totalorder %s178, %s180
    %p187 = scmp.eq.s32.totalorder %s25, 1
    %p188 = por %p186, %p187
    %p189 = scmp.ne.s32.totalorder %s180, %s181
    %p190 = scmp.eq.s32.totalorder %s25, 0
    %p191 = por %p189, %p190
    %p192 = scmp.ne.s32.totalorder %s180, %s181
    %p193 = scmp.eq.s32.totalorder %s26, 1
    %p194 = por %p192, %p193
    %p196 = scmp.ne.s32.totalorder %s181, %s195
    %p197 = scmp.eq.s32.totalorder %s26, 0
    %p198 = por %p196, %p197
    %s200 = sadd.s32 %s199, 1
    %p203 = scmp.eq.s32.totalorder %s20, 1
    %p204 = scmp.ne.s32.totalorder %s199, %s201
    %p205 = scmp.eq.s32.totalorder %s20, 0
    %p206 = por %p204, %p205
    %p207 = scmp.ne.s32.totalorder %s199, %s201
    %p208 = scmp.eq.s32.totalorder %s25, 1
    %p209 = por %p207, %p208
    %p210 = scmp.ne.s32.totalorder %s201, %s202
    %p211 = scmp.eq.s32.totalorder %s25, 0
    %p212 = por %p210, %p211
    %p213 = scmp.ne.s32.totalorder %s201, %s202
    %p214 = scmp.eq.s32.totalorder %s26, 1
    %p215 = por %p213, %p214
    %p217 = scmp.ne.s32.totalorder %s202, %s216
    %p218 = scmp.eq.s32.totalorder %s26, 0
    %p219 = por %p217, %p218
    %s221 = sadd.s32 %s220, 1
    %p224 = scmp.eq.s32.totalorder %s20, 1
    %p225 = scmp.ne.s32.totalorder %s220, %s222
    %p226 = scmp.eq.s32.totalorder %s20, 0
    %p227 = por %p225, %p226
    %p228 = scmp.ne.s32.totalorder %s220, %s222
    %p229 = scmp.eq.s32.totalorder %s25, 1
    %p230 = por %p228, %p229
    %p231 = scmp.ne.s32.totalorder %s222, %s223
    %p232 = scmp.eq.s32.totalorder %s25, 0
    %p233 = por %p231, %p232
    %p234 = scmp.ne.s32.totalorder %s222, %s223
    %p235 = scmp.eq.s32.totalorder %s26, 1
    %p236 = por %p234, %p235
    %p238 = scmp.ne.s32.totalorder %s223, %s237
    %p239 = scmp.eq.s32.totalorder %s26, 0
    %p240 = por %p238, %p239
    %s242 = sadd.s32 %s241, 1
    %p245 = scmp.eq.s32.totalorder %s20, 1
    %p246 = scmp.ne.s32.totalorder %s241, %s243
    %p247 = scmp.eq.s32.totalorder %s20, 0
    %p248 = por %p246, %p247
    %p249 = scmp.ne.s32.totalorder %s241, %s243
    %p250 = scmp.eq.s32.totalorder %s25, 1
    %p251 = por %p249, %p250
    %p252 = scmp.ne.s32.totalorder %s243, %s244
    %p253 = scmp.eq.s32.totalorder %s25, 0
    %p254 = por %p252, %p253
    %p255 = scmp.ne.s32.totalorder %s243, %s244
    %p256 = scmp.eq.s32.totalorder %s26, 1
    %p257 = por %p255, %p256
    %p259 = scmp.ne.s32.totalorder %s244, %s258
    %p260 = scmp.eq.s32.totalorder %s26, 0
    %p261 = por %p259, %p260
    %s263 = sadd.s32 %s262, 1
    %p266 = scmp.eq.s32.totalorder %s20, 1
    %p267 = scmp.ne.s32.totalorder %s262, %s264
    %p268 = scmp.eq.s32.totalorder %s20, 0
    %p269 = por %p267, %p268
    %p270 = scmp.ne.s32.totalorder %s262, %s264
    %p271 = scmp.eq.s32.totalorder %s25, 1
    %p272 = por %p270, %p271
    %p273 = scmp.ne.s32.totalorder %s264, %s265
    %p274 = scmp.eq.s32.totalorder %s25, 0
    %p275 = por %p273, %p274
    %p276 = scmp.ne.s32.totalorder %s264, %s265
    %p277 = scmp.eq.s32.totalorder %s26, 1
    %p278 = por %p276, %p277
    %p280 = scmp.ne.s32.totalorder %s265, %s279
    %p281 = scmp.eq.s32.totalorder %s26, 0
    %p282 = por %p280, %p281
    %s284 = sadd.s32 %s283, 1
    %p287 = scmp.eq.s32.totalorder %s20, 1
    %p288 = scmp.ne.s32.totalorder %s283, %s285
    %p289 = scmp.eq.s32.totalorder %s20, 0
    %p290 = por %p288, %p289
    %p291 = scmp.ne.s32.totalorder %s283, %s285
    %p292 = scmp.eq.s32.totalorder %s25, 1
    %p293 = por %p291, %p292
    %p294 = scmp.ne.s32.totalorder %s285, %s286
    %p295 = scmp.eq.s32.totalorder %s25, 0
    %p296 = por %p294, %p295
    %p297 = scmp.ne.s32.totalorder %s285, %s286
    %p298 = scmp.eq.s32.totalorder %s26, 1
    %p299 = por %p297, %p298
    %p301 = scmp.ne.s32.totalorder %s286, %s300
    %p302 = scmp.eq.s32.totalorder %s26, 0
    %p303 = por %p301, %p302
    %s305 = sadd.s32 %s304, 1
    %p308 = scmp.eq.s32.totalorder %s20, 1
    %p309 = scmp.ne.s32.totalorder %s304, %s306
    %p310 = scmp.eq.s32.totalorder %s20, 0
    %p311 = por %p309, %p310
    %p312 = scmp.ne.s32.totalorder %s304, %s306
    %p313 = scmp.eq.s32.totalorder %s25, 1
    %p314 = por %p312, %p313
    %p315 = scmp.ne.s32.totalorder %s306, %s307
    %p316 = scmp.eq.s32.totalorder %s25, 0
    %p317 = por %p315, %p316
    %p318 = scmp.ne.s32.totalorder %s306, %s307
    %p319 = scmp.eq.s32.totalorder %s26, 1
    %p320 = por %p318, %p319
    %p322 = scmp.ne.s32.totalorder %s307, %s321
    %p323 = scmp.eq.s32.totalorder %s26, 0
    %p324 = por %p322, %p323
    %s325 = ssub.s32 %s27, %s39
    %s326 = ssub.s32 %s28, %s35
    %s327 = sor.u32 %s325, %s326
    %p328 = scmp.eq.s32.totalorder %s327, 0
    %s330 = sadd.s32 %s329, 1
    %s331 = scalar_select %p328, %s329, %s330
    %p334 = pneg %p328
    %p335 = scmp.eq.s32.totalorder %s20, 1
    %p336 = por %p334, %p335
    %p337 = scmp.ne.s32.totalorder %s329, %s332
    %p338 = scmp.eq.s32.totalorder %s20, 0
    %p339 = por %p337, %p338
    %p340 = scmp.ne.s32.totalorder %s329, %s332
    %p341 = scmp.eq.s32.totalorder %s25, 1
    %p342 = por %p340, %p341
    %p343 = scmp.ne.s32.totalorder %s332, %s333
    %p344 = scmp.eq.s32.totalorder %s25, 0
    %p345 = por %p343, %p344
    %p346 = scmp.ne.s32.totalorder %s332, %s333
    %p347 = scmp.eq.s32.totalorder %s26, 1
    %p348 = por %p346, %p347
    %p350 = scmp.ne.s32.totalorder %s333, %s349
    %p351 = scmp.eq.s32.totalorder %s26, 0
    %p352 = por %p350, %p351
    %s353 = ssub.s32 %s27, %s39
    %s354 = ssub.s32 %s28, %s35
    %s355 = sor.u32 %s353, %s354
    %p356 = scmp.eq.s32.totalorder %s355, 0
    %s358 = sadd.s32 %s357, 1
    %s359 = scalar_select %p356, %s357, %s358
    %p362 = pneg %p356
    %p363 = scmp.eq.s32.totalorder %s20, 1
    %p364 = por %p362, %p363
    %p365 = scmp.ne.s32.totalorder %s357, %s360
    %p366 = scmp.eq.s32.totalorder %s20, 0
    %p367 = por %p365, %p366
    %p368 = scmp.ne.s32.totalorder %s357, %s360
    %p369 = scmp.eq.s32.totalorder %s25, 1
    %p370 = por %p368, %p369
    %p371 = scmp.ne.s32.totalorder %s360, %s361
    %p372 = scmp.eq.s32.totalorder %s25, 0
    %p373 = por %p371, %p372
    %p374 = scmp.ne.s32.totalorder %s360, %s361
    %p375 = scmp.eq.s32.totalorder %s26, 1
    %p376 = por %p374, %p375
    %p378 = scmp.ne.s32.totalorder %s361, %s377
    %p379 = scmp.eq.s32.totalorder %s26, 0
    %p380 = por %p378, %p379
    %p381 = scmp.le.s32.totalorder 1, %s20
    %p382 = scmp.lt.s32.totalorder %s20, 3
    %p383 = pnand %p381, %p382
    %p384 = pneg %p383
    // Predicated region
    $region9: #{_lambda_.3} parent=5 // pred_check
      _
    $region10: #{_lambda_.3} parent=5 // pred_check_branch
      %386 = sbr.rel (%p383) target = $region12
    $region11: #{_lambda_.3} parent=5 // pred_region
      %s387 = ssub.s32 %s20, 1
      // Predicated region
      $region13: #{_lambda_.3} parent=11 // pred_check
        %p388 = pneg %p170
      $region14: #{_lambda_.3} parent=11 // pred_check_branch
        %390 = sbr.rel (%p388) target = $region16
      $region15: #{_lambda_.3} parent=11 // pred_region
        %p391 = scmp.lt.s32.totalorder %s30, 0
        %s392 = scalar_select %p391, %s30, 0
        %s393 = smul.addr %s392, 4
        %s394 = scalar_lea.vmem %s4, %s393
      $region16: #{_lambda_.3} parent=11 // pred_fallthru
        _
      // Predicated region
      $region17: #{_lambda_.3} parent=11 // pred_check
        %p395 = pneg %p191
      $region18: #{_lambda_.3} parent=11 // pred_check_branch
        %397 = sbr.rel (%p395) target = $region20
      $region19: #{_lambda_.3} parent=11 // pred_region
        _
      $region20: #{_lambda_.3} parent=11 // pred_fallthru
        _
      // Predicated region
      $region21: #{_lambda_.3} parent=11 // pred_check
        %p398 = pneg %p212
      $region22: #{_lambda_.3} parent=11 // pred_check_branch
        %400 = sbr.rel (%p398) target = $region24
      $region23: #{_lambda_.3} parent=11 // pred_region
        _
      $region24: #{_lambda_.3} parent=11 // pred_fallthru
        _
      // Predicated region
      $region25: #{_lambda_.3} parent=11 // pred_check
        %p401 = pneg %p233
      $region26: #{_lambda_.3} parent=11 // pred_check_branch
        %403 = sbr.rel (%p401) target = $region28
      $region27: #{_lambda_.3} parent=11 // pred_region
        _
      $region28: #{_lambda_.3} parent=11 // pred_fallthru
        _
      // Predicated region
      $region29: #{_lambda_.3} parent=11 // pred_check
        %p404 = pneg %p254
      $region30: #{_lambda_.3} parent=11 // pred_check_branch
        %406 = sbr.rel (%p404) target = $region32
      $region31: #{_lambda_.3} parent=11 // pred_region
        _
      $region32: #{_lambda_.3} parent=11 // pred_fallthru
        _
      // Predicated region
      $region33: #{_lambda_.3} parent=11 // pred_check
        %p407 = pneg %p275
      $region34: #{_lambda_.3} parent=11 // pred_check_branch
        %409 = sbr.rel (%p407) target = $region36
      $region35: #{_lambda_.3} parent=11 // pred_region
        _
      $region36: #{_lambda_.3} parent=11 // pred_fallthru
        _
      // Predicated region
      $region37: #{_lambda_.3} parent=11 // pred_check
        %p410 = pneg %p296
      $region38: #{_lambda_.3} parent=11 // pred_check_branch
        %412 = sbr.rel (%p410) target = $region40
      $region39: #{_lambda_.3} parent=11 // pred_region
        _
      $region40: #{_lambda_.3} parent=11 // pred_fallthru
        _
      // Predicated region
      $region41: #{_lambda_.3} parent=11 // pred_check
        %p413 = pneg %p317
      $region42: #{_lambda_.3} parent=11 // pred_check_branch
        %415 = sbr.rel (%p413) target = $region44
      $region43: #{_lambda_.3} parent=11 // pred_region
        _
      $region44: #{_lambda_.3} parent=11 // pred_fallthru
        _
    $region12: #{_lambda_.3} parent=5 // pred_fallthru
      _
    %p416 = scmp.lt.s32.totalorder %s20, 2
    // Predicated region
    $region45: #{_lambda_.3} parent=5 // pred_check
      %p417 = pneg %p416
    $region46: #{_lambda_.3} parent=5 // pred_check_branch
      %419 = sbr.rel (%p417) target = $region48
    $region47: #{_lambda_.3} parent=5 // pred_region
      // Predicated region
      $region49: #{_lambda_.3} parent=47 // pred_check
        %p420 = pneg %p54
      $region50: #{_lambda_.3} parent=47 // pred_check_branch
        %422 = sbr.rel (%p420) target = $region52
      $region51: #{_lambda_.3} parent=47 // pred_region
        %p423 = scmp.lt.s32.totalorder %s27, 1
        %s424 = scalar_select %p423, %s27, 1
        %p425 = scmp.lt.s32.totalorder %s28, 0
        %s426 = scalar_select %p425, %s28, 0
        %s427 = sadd.s32 %s426, %s424
        %s428 = smul.addr %s427, 4
        %s429 = scalar_lea.vmem %s0, %s428
      $region52: #{_lambda_.3} parent=47 // pred_fallthru
        _
      // Predicated region
      $region53: #{_lambda_.3} parent=47 // pred_check
        %p430 = pneg %p82
      $region54: #{_lambda_.3} parent=47 // pred_check_branch
        %432 = sbr.rel (%p430) target = $region56
      $region55: #{_lambda_.3} parent=47 // pred_region
        %p433 = scmp.lt.s32.totalorder %s27, 1
        %s434 = scalar_select %p433, %s27, 1
        %p435 = scmp.lt.s32.totalorder %s28, 0
        %s436 = scalar_select %p435, %s28, 0
        %s437 = sadd.s32 %s436, %s434
        %s438 = smul.addr %s437, 4
        %s439 = scalar_lea.vmem %s1, %s438
      $region56: #{_lambda_.3} parent=47 // pred_fallthru
        _
      // Predicated region
      $region57: #{_lambda_.3} parent=47 // pred_check
        %p440 = pneg %p110
      $region58: #{_lambda_.3} parent=47 // pred_check_branch
        %442 = sbr.rel (%p440) target = $region60
      $region59: #{_lambda_.3} parent=47 // pred_region
        %p443 = scmp.lt.s32.totalorder %s27, 1
        %s444 = scalar_select %p443, %s27, 1
        %p445 = scmp.lt.s32.totalorder %s28, 0
        %s446 = scalar_select %p445, %s28, 0
        %s447 = sadd.s32 %s446, %s444
        %s448 = smul.addr %s447, 4
        %s449 = scalar_lea.vmem %s2, %s448
      $region60: #{_lambda_.3} parent=47 // pred_fallthru
        _
      // Predicated region
      $region61: #{_lambda_.3} parent=47 // pred_check
        %p450 = pneg %p138
      $region62: #{_lambda_.3} parent=47 // pred_check_branch
        %452 = sbr.rel (%p450) target = $region64
      $region63: #{_lambda_.3} parent=47 // pred_region
        %p453 = scmp.lt.s32.totalorder %s27, 1
        %s454 = scalar_select %p453, %s27, 1
        %p455 = scmp.lt.s32.totalorder %s28, 0
        %s456 = scalar_select %p455, %s28, 0
        %s457 = smul.addr %s454, 4
        %s458 = sadd.s32 %s456, %s457
        %s459 = smul.addr %s458, 4
        %s460 = scalar_lea.vmem %s3, %s459
      $region64: #{_lambda_.3} parent=47 // pred_fallthru
        _
    $region48: #{_lambda_.3} parent=5 // pred_fallthru
      _
    %p461 = scmp.le.s32.totalorder 1, %s20
    %p462 = scmp.lt.s32.totalorder %s20, 3
    %p463 = pnand %p461, %p462
    %p464 = pneg %p463
    // Predicated region
    $region65: #{_lambda_.3} parent=5 // pred_check
      _
    $region66: #{_lambda_.3} parent=5 // pred_check_branch
      %466 = sbr.rel (%p463) target = $region68
    $region67: #{_lambda_.3} parent=5 // pred_region
      %s467 = ssub.s32 %s20, 1
      %p468 = scmp.lt.s32.totalorder %s29, 1
      %s469 = scalar_select %p468, %s29, 1
      %p470 = scmp.lt.s32.totalorder %s30, 0
      %s471 = scalar_select %p470, %s30, 0
      %s472 = sadd.s32 %s471, %s469
      %s473 = smul.addr %s472, 4
      %s474 = scalar_lea.vmem %s0, %s473
      %p475 = pneg %p60
      %p476 = pneg %p57
      %p477 = scmp.lt.s32.totalorder %s29, 1
      %s478 = scalar_select %p477, %s29, 1
      %p479 = scmp.lt.s32.totalorder %s30, 0
      %s480 = scalar_select %p479, %s30, 0
      %s481 = sadd.s32 %s480, %s478
      %s482 = smul.addr %s481, 4
      %s483 = scalar_lea.vmem %s1, %s482
      %p484 = pneg %p88
      %p485 = pneg %p85
      %p486 = scmp.lt.s32.totalorder %s29, 1
      %s487 = scalar_select %p486, %s29, 1
      %p488 = scmp.lt.s32.totalorder %s30, 0
      %s489 = scalar_select %p488, %s30, 0
      %s490 = sadd.s32 %s489, %s487
      %s491 = smul.addr %s490, 4
      %s492 = scalar_lea.vmem %s2, %s491
      %p493 = pneg %p116
      %p494 = pneg %p113
      %p495 = scmp.lt.s32.totalorder %s29, 1
      %s496 = scalar_select %p495, %s29, 1
      %p497 = scmp.lt.s32.totalorder %s30, 0
      %s498 = scalar_select %p497, %s30, 0
      %s499 = smul.addr %s496, 4
      %s500 = sadd.s32 %s498, %s499
      %s501 = smul.addr %s500, 4
      %s502 = scalar_lea.vmem %s3, %s501
      %p503 = pneg %p144
      %p504 = pneg %p141
      %p505 = scmp.lt.s32.totalorder %s30, 0
      %s506 = scalar_select %p505, %s30, 0
      %s507 = smul.addr %s506, 4
      %s508 = scalar_lea.vmem %s4, %s507
      %p509 = pneg %p170
      %p510 = pneg %p167
      %p511 = pneg %p191
      %p512 = pneg %p188
      %p513 = pneg %p212
      %p514 = pneg %p209
      %p515 = pneg %p233
      %p516 = pneg %p230
      %p517 = pneg %p254
      %p518 = pneg %p251
      %p519 = pneg %p275
      %p520 = pneg %p272
      %p521 = pneg %p296
      %p522 = pneg %p293
      %p523 = pneg %p317
      %p524 = pneg %p314
      %p525 = pneg %p345
      %p526 = pneg %p342
      %s527 = smul.u32 16, %s30
      %p528 = scmp.lt.s32.totalorder %s29, 1
      %s529 = scalar_select %p528, %s29, 1
      %p530 = scmp.lt.s32.totalorder %s527, 15
      %s531 = scalar_select %p530, %s527, 15
      %s532 = smul.addr %s529, 16
      %s533 = sadd.s32 %s531, %s532
      %s534 = smul.addr %s533, 4
      %s535 = scalar_lea.vmem %s12, %s534
      %p536 = pneg %p373
      %p537 = pneg %p370
      %p538 = scmp.lt.s32.totalorder %s29, 1
      %s539 = scalar_select %p538, %s29, 1
      %p540 = scmp.lt.s32.totalorder %s30, 0
      %s541 = scalar_select %p540, %s30, 0
      %s542 = smul.addr %s539, 4
      %s543 = sadd.s32 %s541, %s542
      %s544 = smul.addr %s543, 4
      %s545 = scalar_lea.vmem %s13, %s544
      %p546 = scmp.lt.s32.totalorder %s29, 1
      %s547 = scalar_select %p546, %s29, 1
      %p548 = scmp.lt.s32.totalorder %s30, 0
      %s549 = scalar_select %p548, %s30, 0
      %s550 = sadd.s32 %s549, %s547
      %s551 = smul.addr %s550, 4
      %s552 = scalar_lea.vmem %s0, %s551
      %p553 = scmp.lt.s32.totalorder %s29, 1
      %s554 = scalar_select %p553, %s29, 1
      %p555 = scmp.lt.s32.totalorder %s30, 0
      %s556 = scalar_select %p555, %s30, 0
      %s557 = sadd.s32 %s556, %s554
      %s558 = smul.addr %s557, 4
      %s559 = scalar_lea.vmem %s1, %s558
      %p560 = scmp.lt.s32.totalorder %s29, 1
      %s561 = scalar_select %p560, %s29, 1
      %p562 = scmp.lt.s32.totalorder %s30, 0
      %s563 = scalar_select %p562, %s30, 0
      %s564 = sadd.s32 %s563, %s561
      %s565 = smul.addr %s564, 4
      %s566 = scalar_lea.vmem %s2, %s565
      %p567 = scmp.lt.s32.totalorder %s29, 1
      %s568 = scalar_select %p567, %s29, 1
      %p569 = scmp.lt.s32.totalorder %s30, 0
      %s570 = scalar_select %p569, %s30, 0
      %s571 = smul.addr %s568, 4
      %s572 = sadd.s32 %s570, %s571
      %s573 = smul.addr %s572, 4
      %s574 = scalar_lea.vmem %s3, %s573
      %p575 = scmp.lt.s32.totalorder %s30, 0
      %s576 = scalar_select %p575, %s30, 0
      %s577 = smul.addr %s576, 4
      %s578 = scalar_lea.vmem %s4, %s577
      %s579 = smul.u32 16, %s30
      %p580 = scmp.lt.s32.totalorder %s29, 1
      %s581 = scalar_select %p580, %s29, 1
      %p582 = scmp.lt.s32.totalorder %s579, 15
      %s583 = scalar_select %p582, %s579, 15
      %s584 = smul.addr %s581, 16
      %s585 = sadd.s32 %s583, %s584
      %s586 = smul.addr %s585, 4
      %s587 = scalar_lea.vmem %s12, %s586
      %s588 = smul.u32 16, %s30
      %p589 = scmp.lt.s32.totalorder %s29, 1
      %s590 = scalar_select %p589, %s29, 1
      %p591 = scmp.lt.s32.totalorder %s30, 0
      %s592 = scalar_select %p591, %s30, 0
      %s593 = smul.addr %s590, 4
      %s594 = sadd.s32 %s592, %s593
      %s595 = smul.addr %s594, 4
      %s596 = scalar_lea.vmem %s13, %s595
      %v598 = vld [vmem:[%s5] sm:$0xf]
      %v599 = vld [vmem:[%s5 + $0x4] sm:$0xf]
      %v600 = vld [vmem:[%s5 + $0x8] sm:$0xf]
      %v601 = vld [vmem:[%s5 + $0xc] sm:$0xf]
      %v602 = vld [vmem:[%s5 + $0x10] sm:$0xf]
      %v603 = vld [vmem:[%s5 + $0x14] sm:$0xf]
      %v604 = vld [vmem:[%s5 + $0x18] sm:$0xf]
      %v605 = vld [vmem:[%s5 + $0x1c] sm:$0xf]
      %v606 = vld [vmem:[%s552] sm:$0xf]
      %v607 = vld [vmem:[%s6] sm:$0xf]
      %v608 = vld [vmem:[%s6 + $0x4] sm:$0xf]
      %v609 = vld [vmem:[%s6 + $0x8] sm:$0xf]
      %v610 = vld [vmem:[%s6 + $0xc] sm:$0xf]
      %v611 = vld [vmem:[%s6 + $0x10] sm:$0xf]
      %v612 = vld [vmem:[%s6 + $0x14] sm:$0xf]
      %v613 = vld [vmem:[%s6 + $0x18] sm:$0xf]
      %v614 = vld [vmem:[%s6 + $0x1c] sm:$0xf]
      %v615 = vld [vmem:[%s559] sm:$0xf]
      %v624 = vunpack.c.l.b16 %v607
      %v625 = vunpack.c.l.b16 %v608
      %v626 = vunpack.c.l.b16 %v609
      %v627 = vunpack.c.l.b16 %v610
      %v628 = vunpack.c.l.b16 %v611
      %v629 = vunpack.c.l.b16 %v612
      %v630 = vunpack.c.l.b16 %v613
      %v631 = vunpack.c.l.b16 %v614
      %v632 = vpack.c.b16 %v625, %v624
      %v633 = vpack.c.b16 %v627, %v626
      %v634 = vpack.c.b16 %v629, %v628
      %v635 = vpack.c.b16 %v631, %v630
      %vm636 = vcmask 64512
      %v638 = vsel %vm636, %v632, 0
      %v641 = vsel %vm636, %v633, 0
      %v644 = vsel %vm636, %v634, 0
      %v647 = vsel %vm636, %v635, 0
      %vm649 = vcmask 1043456
      %v651 = vsel %vm649, %v615, 0
      %653 = vmatpush.bf16.msra.mxu0 0
      %654 = vmatpush.bf16.msra.mxu0 0
      %655 = vmatpush.bf16.msra.mxu0 0
      %656 = vmatpush.bf16.msra.mxu0 0
      %657 = vmatpush.bf16.msra.mxu0 0
      %658 = vmatpush.bf16.msra.mxu0 0
      %659 = vmatpush.bf16.msra.mxu0 0
      %660 = vmatpush.bf16.msra.mxu0 %v651
      %661 = vmatmul.bf16.gmra.mxu0 %v638
      %v662 = vpop.f32.mrf.mxu0
      %v663 = vadd.f32 0.0, %v662
      %v664 = vpop.f32.mrf.mxu0
      %v665 = vadd.f32 0.0, %v664
      %666 = vmatmul.bf16.gmra.mxu0 %v641
      %v667 = vpop.f32.mrf.mxu0
      %v668 = vadd.f32 0.0, %v667
      %v669 = vpop.f32.mrf.mxu0
      %v670 = vadd.f32 0.0, %v669
      %671 = vmatmul.bf16.gmra.mxu0 %v644
      %v672 = vpop.f32.mrf.mxu0
      %v673 = vadd.f32 0.0, %v672
      %v674 = vpop.f32.mrf.mxu0
      %v675 = vadd.f32 0.0, %v674
      %676 = vmatmul.bf16.gmra.mxu0 %v647
      %v677 = vpop.f32.mrf.mxu0
      %v678 = vadd.f32 0.0, %v677
      %v679 = vpop.f32.mrf.mxu0
      %v680 = vadd.f32 0.0, %v679
      %681 = vdwg.mxu0
      %v690 = vunpack.c.l.b16 %v598
      %v691 = vunpack.c.l.b16 %v599
      %v692 = vunpack.c.l.b16 %v600
      %v693 = vunpack.c.l.b16 %v601
      %v694 = vunpack.c.l.b16 %v602
      %v695 = vunpack.c.l.b16 %v603
      %v696 = vunpack.c.l.b16 %v604
      %v697 = vunpack.c.l.b16 %v605
      %v698 = vpack.c.b16 %v691, %v690
      %v699 = vpack.c.b16 %v693, %v692
      %v700 = vpack.c.b16 %v695, %v694
      %v701 = vpack.c.b16 %v697, %v696
      %v703 = vsel %vm636, %v698, 0
      %v706 = vsel %vm636, %v699, 0
      %v709 = vsel %vm636, %v700, 0
      %v712 = vsel %vm636, %v701, 0
      %v715 = vsel %vm649, %v606, 0
      %717 = vmatpush.bf16.msra.mxu0 0
      %718 = vmatpush.bf16.msra.mxu0 0
      %719 = vmatpush.bf16.msra.mxu0 0
      %720 = vmatpush.bf16.msra.mxu0 0
      %721 = vmatpush.bf16.msra.mxu0 0
      %722 = vmatpush.bf16.msra.mxu0 0
      %723 = vmatpush.bf16.msra.mxu0 0
      %724 = vmatpush.bf16.msra.mxu0 %v715
      %725 = vmatmul.bf16.gmra.mxu0 %v703
      %v726 = vpop.f32.mrf.mxu0
      %v727 = vadd.f32 %v663, %v726
      %v728 = vpop.f32.mrf.mxu0
      %v729 = vadd.f32 %v665, %v728
      %730 = vmatmul.bf16.gmra.mxu0 %v706
      %v731 = vpop.f32.mrf.mxu0
      %v732 = vadd.f32 %v668, %v731
      %v733 = vpop.f32.mrf.mxu0
      %v734 = vadd.f32 %v670, %v733
      %735 = vmatmul.bf16.gmra.mxu0 %v709
      %v736 = vpop.f32.mrf.mxu0
      %v737 = vadd.f32 %v673, %v736
      %v738 = vpop.f32.mrf.mxu0
      %v739 = vadd.f32 %v675, %v738
      %740 = vmatmul.bf16.gmra.mxu0 %v712
      %v741 = vpop.f32.mrf.mxu0
      %v742 = vadd.f32 %v678, %v741
      %v743 = vpop.f32.mrf.mxu0
      %v744 = vadd.f32 %v680, %v743
      %745 = vdwg.mxu0
      %v746 = vld [vmem:[%s7] sm:$0xf]
      %v747 = vld [vmem:[%s7 + $0x4] sm:$0xf]
      %v748 = vld [vmem:[%s7 + $0x8] sm:$0xf]
      %v749 = vld [vmem:[%s7 + $0xc] sm:$0xf]
      %v750 = vld [vmem:[%s7 + $0x10] sm:$0xf]
      %v751 = vld [vmem:[%s7 + $0x14] sm:$0xf]
      %v752 = vld [vmem:[%s7 + $0x18] sm:$0xf]
      %v753 = vld [vmem:[%s7 + $0x1c] sm:$0xf]
      %v754 = vld [vmem:[%s566] sm:$0xf]
      %v763 = vunpack.c.l.b16 %v746
      %v764 = vunpack.c.l.b16 %v747
      %v765 = vunpack.c.l.b16 %v748
      %v766 = vunpack.c.l.b16 %v749
      %v767 = vunpack.c.l.b16 %v750
      %v768 = vunpack.c.l.b16 %v751
      %v769 = vunpack.c.l.b16 %v752
      %v770 = vunpack.c.l.b16 %v753
      %v771 = vpack.c.b16 %v764, %v763
      %v772 = vpack.c.b16 %v766, %v765
      %v773 = vpack.c.b16 %v768, %v767
      %v774 = vpack.c.b16 %v770, %v769
      %v776 = vsel %vm636, %v771, 0
      %v779 = vsel %vm636, %v772, 0
      %v782 = vsel %vm636, %v773, 0
      %v785 = vsel %vm636, %v774, 0
      %v788 = vsel %vm649, %v754, 0
      %790 = vmatpush.bf16.msra.mxu0 0
      %791 = vmatpush.bf16.msra.mxu0 0
      %792 = vmatpush.bf16.msra.mxu0 0
      %793 = vmatpush.bf16.msra.mxu0 0
      %794 = vmatpush.bf16.msra.mxu0 0
      %795 = vmatpush.bf16.msra.mxu0 0
      %796 = vmatpush.bf16.msra.mxu0 0
      %797 = vmatpush.bf16.msra.mxu0 %v788
      %798 = vmatmul.bf16.gmra.mxu0 %v776
      %v799 = vpop.f32.mrf.mxu0
      %v800 = vadd.f32 0.0, %v799
      %v801 = vpop.f32.mrf.mxu0
      %v802 = vadd.f32 0.0, %v801
      %803 = vmatmul.bf16.gmra.mxu0 %v779
      %v804 = vpop.f32.mrf.mxu0
      %v805 = vadd.f32 0.0, %v804
      %v806 = vpop.f32.mrf.mxu0
      %v807 = vadd.f32 0.0, %v806
      %808 = vmatmul.bf16.gmra.mxu0 %v782
      %v809 = vpop.f32.mrf.mxu0
      %v810 = vadd.f32 0.0, %v809
      %v811 = vpop.f32.mrf.mxu0
      %v812 = vadd.f32 0.0, %v811
      %813 = vmatmul.bf16.gmra.mxu0 %v785
      %v814 = vpop.f32.mrf.mxu0
      %v815 = vadd.f32 0.0, %v814
      %v816 = vpop.f32.mrf.mxu0
      %v817 = vadd.f32 0.0, %v816
      %818 = vdwg.mxu0
      %v819 = vadd.f32 %v727, %v800
      %v820 = vadd.f32 %v729, %v802
      %v821 = vadd.f32 %v732, %v805
      %v822 = vadd.f32 %v734, %v807
      %v823 = vadd.f32 %v737, %v810
      %v824 = vadd.f32 %v739, %v812
      %v825 = vadd.f32 %v742, %v815
      %v826 = vadd.f32 %v744, %v817
      %v827 = vld [vmem:[%s8] sm:$0xf]
      %v828 = vld [vmem:[%s8 + $0x4] sm:$0xf]
      %v829 = vld [vmem:[%s8 + $0x8] sm:$0xf]
      %v830 = vld [vmem:[%s8 + $0xc] sm:$0xf]
      %v831 = vld [vmem:[%s8 + $0x10] sm:$0xf]
      %v832 = vld [vmem:[%s8 + $0x14] sm:$0xf]
      %v833 = vld [vmem:[%s8 + $0x18] sm:$0xf]
      %v834 = vld [vmem:[%s8 + $0x1c] sm:$0xf]
      %v835 = vld [vmem:[%s574] sm:$0xf]
      %v836 = vld [vmem:[%s574 + $0x4] sm:$0xf]
      %v837 = vld [vmem:[%s574 + $0x8] sm:$0xf]
      %v838 = vld [vmem:[%s574 + $0xc] sm:$0xf]
      %v847 = vunpack.c.l.b16 %v827
      %v848 = vunpack.c.l.b16 %v828
      %v849 = vunpack.c.l.b16 %v829
      %v850 = vunpack.c.l.b16 %v830
      %v851 = vunpack.c.l.b16 %v831
      %v852 = vunpack.c.l.b16 %v832
      %v853 = vunpack.c.l.b16 %v833
      %v854 = vunpack.c.l.b16 %v834
      %v855 = vpack.c.b16 %v848, %v847
      %v856 = vpack.c.b16 %v850, %v849
      %v857 = vpack.c.b16 %v852, %v851
      %v858 = vpack.c.b16 %v854, %v853
      %v863 = vunpack.c.l.b16 %v835
      %v864 = vunpack.c.l.b16 %v836
      %v865 = vunpack.c.l.b16 %v837
      %v866 = vunpack.c.l.b16 %v838
      %v867 = vpack.c.b16 %v864, %v863
      %v868 = vpack.c.b16 %v866, %v865
      %vm871 = vcmask 261120
      %v873 = vsel %vm871, %v855, 0
      %v876 = vsel %vm871, %v856, 0
      %v879 = vsel %vm871, %v857, 0
      %v882 = vsel %vm871, %v858, 0
      %884 = vmatpush.bf16.msra.mxu0 0
      %885 = vmatpush.bf16.msra.mxu0 0
      %886 = vmatpush.bf16.msra.mxu0 0
      %887 = vmatpush.bf16.msra.mxu0 0
      %888 = vmatpush.bf16.msra.mxu0 0
      %889 = vmatpush.bf16.msra.mxu0 0
      %890 = vmatpush.bf16.msra.mxu0 %v868
      %891 = vmatpush.bf16.msra.mxu0 %v867
      %892 = vmatmul.bf16.gmra.mxu0 %v873
      %v893 = vpop.f32.mrf.mxu0
      %v894 = vadd.f32 0.0, %v893
      %v895 = vpop.f32.mrf.mxu0
      %v896 = vadd.f32 0.0, %v895
      %897 = vmatmul.bf16.gmra.mxu0 %v876
      %v898 = vpop.f32.mrf.mxu0
      %v899 = vadd.f32 0.0, %v898
      %v900 = vpop.f32.mrf.mxu0
      %v901 = vadd.f32 0.0, %v900
      %902 = vmatmul.bf16.gmra.mxu0 %v879
      %v903 = vpop.f32.mrf.mxu0
      %v904 = vadd.f32 0.0, %v903
      %v905 = vpop.f32.mrf.mxu0
      %v906 = vadd.f32 0.0, %v905
      %907 = vmatmul.bf16.gmra.mxu0 %v882
      %v908 = vpop.f32.mrf.mxu0
      %v909 = vadd.f32 0.0, %v908
      %v910 = vpop.f32.mrf.mxu0
      %v911 = vadd.f32 0.0, %v910
      %912 = vdwg.mxu0
      %v913 = vadd.f32 %v819, %v894
      %v914 = vadd.f32 %v820, %v896
      %v915 = vadd.f32 %v821, %v899
      %v916 = vadd.f32 %v822, %v901
      %v917 = vadd.f32 %v823, %v904
      %v918 = vadd.f32 %v824, %v906
      %v919 = vadd.f32 %v825, %v909
      %v920 = vadd.f32 %v826, %v911
      %v921 = vld [vmem:[%s9] sm:$0xf]
      %v922 = vld [vmem:[%s9 + $0x4] sm:$0xf]
      %v923 = vld [vmem:[%s9 + $0x8] sm:$0xf]
      %v924 = vld [vmem:[%s9 + $0xc] sm:$0xf]
      %v925 = vld [vmem:[%s9 + $0x10] sm:$0xf]
      %v926 = vld [vmem:[%s9 + $0x14] sm:$0xf]
      %v927 = vld [vmem:[%s9 + $0x18] sm:$0xf]
      %v928 = vld [vmem:[%s9 + $0x1c] sm:$0xf]
      %v929 = vld [vmem:[%s578] sm:$0xf]
      %v938 = vunpack.c.l.b16 %v921
      %v939 = vunpack.c.l.b16 %v922
      %v940 = vunpack.c.l.b16 %v923
      %v941 = vunpack.c.l.b16 %v924
      %v942 = vunpack.c.l.b16 %v925
      %v943 = vunpack.c.l.b16 %v926
      %v944 = vunpack.c.l.b16 %v927
      %v945 = vunpack.c.l.b16 %v928
      %v946 = vpack.c.b16 %v939, %v938
      %v947 = vpack.c.b16 %v941, %v940
      %v948 = vpack.c.b16 %v943, %v942
      %v949 = vpack.c.b16 %v945, %v944
      %v951 = vsel %vm636, %v946, 0
      %v954 = vsel %vm636, %v947, 0
      %v957 = vsel %vm636, %v948, 0
      %v960 = vsel %vm636, %v949, 0
      %v963 = vsel %vm649, %v929, 0
      %965 = vmatpush.bf16.msra.mxu0 0
      %966 = vmatpush.bf16.msra.mxu0 0
      %967 = vmatpush.bf16.msra.mxu0 0
      %968 = vmatpush.bf16.msra.mxu0 0
      %969 = vmatpush.bf16.msra.mxu0 0
      %970 = vmatpush.bf16.msra.mxu0 0
      %971 = vmatpush.bf16.msra.mxu0 0
      %972 = vmatpush.bf16.msra.mxu0 %v963
      %973 = vmatmul.bf16.gmra.mxu0 %v951
      %v974 = vpop.f32.mrf.mxu0
      %v975 = vadd.f32 0.0, %v974
      %v976 = vpop.f32.mrf.mxu0
      %v977 = vadd.f32 0.0, %v976
      %978 = vmatmul.bf16.gmra.mxu0 %v954
      %v979 = vpop.f32.mrf.mxu0
      %v980 = vadd.f32 0.0, %v979
      %v981 = vpop.f32.mrf.mxu0
      %v982 = vadd.f32 0.0, %v981
      %983 = vmatmul.bf16.gmra.mxu0 %v957
      %v984 = vpop.f32.mrf.mxu0
      %v985 = vadd.f32 0.0, %v984
      %v986 = vpop.f32.mrf.mxu0
      %v987 = vadd.f32 0.0, %v986
      %988 = vmatmul.bf16.gmra.mxu0 %v960
      %v989 = vpop.f32.mrf.mxu0
      %v990 = vadd.f32 0.0, %v989
      %v991 = vpop.f32.mrf.mxu0
      %v992 = vadd.f32 0.0, %v991
      %993 = vdwg.mxu0
      %v994 = vadd.f32 %v913, %v975
      %v995 = vadd.f32 %v914, %v977
      %v996 = vadd.f32 %v915, %v980
      %v997 = vadd.f32 %v916, %v982
      %v998 = vadd.f32 %v917, %v985
      %v999 = vadd.f32 %v918, %v987
      %v1000 = vadd.f32 %v919, %v990
      %v1001 = vadd.f32 %v920, %v992
      %v1002 = vld [vmem:[%s10] sm:$0xff]
      %v1003 = vld [vmem:[%s10 + $0x8] sm:$0xff]
      %v1004 = vld [vmem:[%s10 + $0x10] sm:$0xff]
      %v1005 = vld [vmem:[%s10 + $0x18] sm:$0xff]
      %v1006 = vld [vmem:[%s10 + $0x20] sm:$0xff]
      %v1007 = vld [vmem:[%s10 + $0x28] sm:$0xff]
      %v1008 = vld [vmem:[%s10 + $0x30] sm:$0xff]
      %v1009 = vld [vmem:[%s10 + $0x38] sm:$0xff]
      %1011 = vset.pattern.permute.xlu0 0
      %1012 = vperm.xlu0 %1011, %v1002
      %v1013 = vpop.permute.xlu0 %1012
      %1016 = vset.pattern.permute.xlu0 0
      %1017 = vperm.xlu0 %1016, %v1003
      %v1018 = vpop.permute.xlu0 %1017
      %1021 = vset.pattern.permute.xlu0 0
      %1022 = vperm.xlu0 %1021, %v1004
      %v1023 = vpop.permute.xlu0 %1022
      %1026 = vset.pattern.permute.xlu0 0
      %1027 = vperm.xlu0 %1026, %v1005
      %v1028 = vpop.permute.xlu0 %1027
      %1031 = vset.pattern.permute.xlu0 0
      %1032 = vperm.xlu0 %1031, %v1006
      %v1033 = vpop.permute.xlu0 %1032
      %1036 = vset.pattern.permute.xlu0 0
      %1037 = vperm.xlu0 %1036, %v1007
      %v1038 = vpop.permute.xlu0 %1037
      %1041 = vset.pattern.permute.xlu0 0
      %1042 = vperm.xlu0 %1041, %v1008
      %v1043 = vpop.permute.xlu0 %1042
      %1046 = vset.pattern.permute.xlu0 0
      %1047 = vperm.xlu0 %1046, %v1009
      %v1048 = vpop.permute.xlu0 %1047
      %v1050 = vmul.f32 %v994, %v1013
      %v1051 = vmul.f32 %v995, %v1018
      %v1052 = vmul.f32 %v996, %v1023
      %v1053 = vmul.f32 %v997, %v1028
      %v1054 = vmul.f32 %v998, %v1033
      %v1055 = vmul.f32 %v999, %v1038
      %v1056 = vmul.f32 %v1000, %v1043
      %v1057 = vmul.f32 %v1001, %v1048
      %v1058 = vld [vmem:[%s11] sm:$0xff]
      %v1059 = vld [vmem:[%s11 + $0x8] sm:$0xff]
      %v1060 = vld [vmem:[%s11 + $0x10] sm:$0xff]
      %v1061 = vld [vmem:[%s11 + $0x18] sm:$0xff]
      %v1062 = vld [vmem:[%s11 + $0x20] sm:$0xff]
      %v1063 = vld [vmem:[%s11 + $0x28] sm:$0xff]
      %v1064 = vld [vmem:[%s11 + $0x30] sm:$0xff]
      %v1065 = vld [vmem:[%s11 + $0x38] sm:$0xff]
      %1067 = vset.pattern.permute.xlu0 0
      %1068 = vperm.xlu0 %1067, %v1058
      %v1069 = vpop.permute.xlu0 %1068
      %1072 = vset.pattern.permute.xlu0 0
      %1073 = vperm.xlu0 %1072, %v1059
      %v1074 = vpop.permute.xlu0 %1073
      %1077 = vset.pattern.permute.xlu0 0
      %1078 = vperm.xlu0 %1077, %v1060
      %v1079 = vpop.permute.xlu0 %1078
      %1082 = vset.pattern.permute.xlu0 0
      %1083 = vperm.xlu0 %1082, %v1061
      %v1084 = vpop.permute.xlu0 %1083
      %1087 = vset.pattern.permute.xlu0 0
      %1088 = vperm.xlu0 %1087, %v1062
      %v1089 = vpop.permute.xlu0 %1088
      %1092 = vset.pattern.permute.xlu0 0
      %1093 = vperm.xlu0 %1092, %v1063
      %v1094 = vpop.permute.xlu0 %1093
      %1097 = vset.pattern.permute.xlu0 0
      %1098 = vperm.xlu0 %1097, %v1064
      %v1099 = vpop.permute.xlu0 %1098
      %1102 = vset.pattern.permute.xlu0 0
      %1103 = vperm.xlu0 %1102, %v1065
      %v1104 = vpop.permute.xlu0 %1103
      %v1106 = vadd.f32 %v1050, %v1069
      %v1107 = vadd.f32 %v1051, %v1074
      %v1108 = vadd.f32 %v1052, %v1079
      %v1109 = vadd.f32 %v1053, %v1084
      %v1110 = vadd.f32 %v1054, %v1089
      %v1111 = vadd.f32 %v1055, %v1094
      %v1112 = vadd.f32 %v1056, %v1099
      %v1113 = vadd.f32 %v1057, %v1104
      %v1114 = vmax.f32 %v1106, 0.0
      %v1115 = vmax.f32 %v1107, 0.0
      %v1116 = vmax.f32 %v1108, 0.0
      %v1117 = vmax.f32 %v1109, 0.0
      %v1118 = vmax.f32 %v1110, 0.0
      %v1119 = vmax.f32 %v1111, 0.0
      %v1120 = vmax.f32 %v1112, 0.0
      %v1121 = vmax.f32 %v1113, 0.0
      %v1122 = vpack.c.bf16 %v1118, %v1118
      %v1123 = vpack.c.bf16 %v1119, %v1119
      %v1124 = vpack.c.bf16 %v1120, %v1120
      %v1125 = vpack.c.bf16 %v1121, %v1121
      %1126 = vst [vmem:[%s596] sm:$0xf] %v1122
      %1127 = vst [vmem:[%s596 + $0x4] sm:$0xf] %v1123
      %1128 = vst [vmem:[%s596 + $0x8] sm:$0xf] %v1124
      %1129 = vst [vmem:[%s596 + $0xc] sm:$0xf] %v1125
      %1130 = vxpose.xlu0.b32.start [1/16] %v1114, 128
      %1131 = vxpose.xlu0.b32.cont [2/16] %v1115, 128
      %1132 = vxpose.xlu0.b32.cont [3/16] %v1116, 128
      %1133 = vxpose.xlu0.b32.cont [4/16] %v1117, 128
      %1134 = vxpose.xlu0.b32.cont [5/16] 0.0, 128
      %1135 = vxpose.xlu0.b32.cont [6/16] 0.0, 128
      %1136 = vxpose.xlu0.b32.cont [7/16] 0.0, 128
      %1137 = vxpose.xlu0.b32.cont [8/16] 0.0, 128
      %1138 = vxpose.xlu0.b32.cont [9/16] 0.0, 128
      %1139 = vxpose.xlu0.b32.cont [10/16] 0.0, 128
      %1140 = vxpose.xlu0.b32.cont [11/16] 0.0, 128
      %1141 = vxpose.xlu0.b32.cont [12/16] 0.0, 128
      %1142 = vxpose.xlu0.b32.cont [13/16] 0.0, 128
      %1143 = vxpose.xlu0.b32.cont [14/16] 0.0, 128
      %1144 = vxpose.xlu0.b32.cont [15/16] 0.0, 128
      %1145 = vxpose.xlu0.b32.end [16/16] 0.0, 128
      %v1146 = vpop.trf.xlu0
      %v1147 = vpop.trf.xlu0
      %v1148 = vpop.trf.xlu0
      %v1149 = vpop.trf.xlu0
      %v1150 = vpop.trf.xlu0
      %v1151 = vpop.trf.xlu0
      %v1152 = vpop.trf.xlu0
      %v1153 = vpop.trf.xlu0
      %v1154 = vpop.trf.xlu0
      %v1155 = vpop.trf.xlu0
      %v1156 = vpop.trf.xlu0
      %v1157 = vpop.trf.xlu0
      %v1158 = vpop.trf.xlu0
      %v1159 = vpop.trf.xlu0
      %v1160 = vpop.trf.xlu0
      %v1161 = vpop.trf.xlu0
      %v1162 = vpack.c.bf16 %v1146, %v1146
      %v1163 = vpack.c.bf16 %v1147, %v1147
      %v1164 = vpack.c.bf16 %v1148, %v1148
      %v1165 = vpack.c.bf16 %v1149, %v1149
      %v1166 = vpack.c.bf16 %v1150, %v1150
      %v1167 = vpack.c.bf16 %v1151, %v1151
      %v1168 = vpack.c.bf16 %v1152, %v1152
      %v1169 = vpack.c.bf16 %v1153, %v1153
      %v1170 = vpack.c.bf16 %v1154, %v1154
      %v1171 = vpack.c.bf16 %v1155, %v1155
      %v1172 = vpack.c.bf16 %v1156, %v1156
      %v1173 = vpack.c.bf16 %v1157, %v1157
      %v1174 = vpack.c.bf16 %v1158, %v1158
      %v1175 = vpack.c.bf16 %v1159, %v1159
      %v1176 = vpack.c.bf16 %v1160, %v1160
      %v1177 = vpack.c.bf16 %v1161, %v1161
      %vm1178 = vcmask 257024
      %1179 = vst.msk [vmem:[%s587] sm:$0xf] %vm1178, %v1162
      %1180 = vst.msk [vmem:[%s587 + $0x4] sm:$0xf] %vm1178, %v1163
      %1181 = vst.msk [vmem:[%s587 + $0x8] sm:$0xf] %vm1178, %v1164
      %1182 = vst.msk [vmem:[%s587 + $0xc] sm:$0xf] %vm1178, %v1165
      %1183 = vst.msk [vmem:[%s587 + $0x10] sm:$0xf] %vm1178, %v1166
      %1184 = vst.msk [vmem:[%s587 + $0x14] sm:$0xf] %vm1178, %v1167
      %1185 = vst.msk [vmem:[%s587 + $0x18] sm:$0xf] %vm1178, %v1168
      %1186 = vst.msk [vmem:[%s587 + $0x1c] sm:$0xf] %vm1178, %v1169
      %1187 = vst.msk [vmem:[%s587 + $0x20] sm:$0xf] %vm1178, %v1170
      %1188 = vst.msk [vmem:[%s587 + $0x24] sm:$0xf] %vm1178, %v1171
      %1189 = vst.msk [vmem:[%s587 + $0x28] sm:$0xf] %vm1178, %v1172
      %1190 = vst.msk [vmem:[%s587 + $0x2c] sm:$0xf] %vm1178, %v1173
      %1191 = vst.msk [vmem:[%s587 + $0x30] sm:$0xf] %vm1178, %v1174
      %1192 = vst.msk [vmem:[%s587 + $0x34] sm:$0xf] %vm1178, %v1175
      %1193 = vst.msk [vmem:[%s587 + $0x38] sm:$0xf] %vm1178, %v1176
      %1194 = vst.msk [vmem:[%s587 + $0x3c] sm:$0xf] %vm1178, %v1177
      %s1195 = smul.u32 16, %s30
      %p1196 = scmp.lt.s32.totalorder %s29, 1
      %s1197 = scalar_select %p1196, %s29, 1
      %p1198 = scmp.lt.s32.totalorder %s1195, 15
      %s1199 = scalar_select %p1198, %s1195, 15
      %s1200 = smul.addr %s1197, 16
      %s1201 = sadd.s32 %s1199, %s1200
      %s1202 = smul.addr %s1201, 4
      %s1203 = scalar_lea.vmem %s12, %s1202
      %p1204 = scmp.lt.s32.totalorder %s29, 1
      %s1205 = scalar_select %p1204, %s29, 1
      %p1206 = scmp.lt.s32.totalorder %s30, 0
      %s1207 = scalar_select %p1206, %s30, 0
      %s1208 = smul.addr %s1205, 4
      %s1209 = sadd.s32 %s1207, %s1208
      %s1210 = smul.addr %s1209, 4
      %s1211 = scalar_lea.vmem %s13, %s1210
      // Predicated region
      $region69: #{_lambda_.3} parent=67 // pred_check
        %p1212 = pneg %p342
      $region70: #{_lambda_.3} parent=67 // pred_check_branch
        %1214 = sbr.rel (%p1212) target = $region72
      $region71: #{_lambda_.3} parent=67 // pred_region
        %s1215 = smul.u32 16, %s30
      $region72: #{_lambda_.3} parent=67 // pred_fallthru
        _
      // Predicated region
      $region73: #{_lambda_.3} parent=67 // pred_check
        %p1216 = pneg %p370
      $region74: #{_lambda_.3} parent=67 // pred_check_branch
        %1218 = sbr.rel (%p1216) target = $region76
      $region75: #{_lambda_.3} parent=67 // pred_region
        _
      $region76: #{_lambda_.3} parent=67 // pred_fallthru
        _
    $region68: #{_lambda_.3} parent=5 // pred_fallthru
      _
    %p1219 = scmp.le.s32.totalorder 2, %s20
    // Predicated region
    $region77: #{_lambda_.3} parent=5 // pred_check
      %p1220 = pneg %p1219
    $region78: #{_lambda_.3} parent=5 // pred_check_branch
      %1222 = sbr.rel (%p1220) target = $region80
    $region79: #{_lambda_.3} parent=5 // pred_region
      %s1223 = ssub.s32 %s20, 2
      // Predicated region
      $region81: #{_lambda_.3} parent=79 // pred_check
        %p1224 = pneg %p348
      $region82: #{_lambda_.3} parent=79 // pred_check_branch
        %1226 = sbr.rel (%p1224) target = $region84
      $region83: #{_lambda_.3} parent=79 // pred_region
        %s1227 = smul.u32 16, %s32
        %p1228 = scmp.lt.s32.totalorder %s31, 1
        %s1229 = scalar_select %p1228, %s31, 1
        %p1230 = scmp.lt.s32.totalorder %s1227, 15
        %s1231 = scalar_select %p1230, %s1227, 15
        %s1232 = smul.addr %s1229, 16
        %s1233 = sadd.s32 %s1231, %s1232
        %s1234 = smul.addr %s1233, 4
        %s1235 = scalar_lea.vmem %s12, %s1234
      $region84: #{_lambda_.3} parent=79 // pred_fallthru
        _
      // Predicated region
      $region85: #{_lambda_.3} parent=79 // pred_check
        %p1236 = pneg %p376
      $region86: #{_lambda_.3} parent=79 // pred_check_branch
        %1238 = sbr.rel (%p1236) target = $region88
      $region87: #{_lambda_.3} parent=79 // pred_region
        %p1239 = scmp.lt.s32.totalorder %s31, 1
        %s1240 = scalar_select %p1239, %s31, 1
        %p1241 = scmp.lt.s32.totalorder %s32, 0
        %s1242 = scalar_select %p1241, %s32, 0
        %s1243 = smul.addr %s1240, 4
        %s1244 = sadd.s32 %s1242, %s1243
        %s1245 = smul.addr %s1244, 4
        %s1246 = scalar_lea.vmem %s13, %s1245
      $region88: #{_lambda_.3} parent=79 // pred_fallthru
        _
    $region80: #{_lambda_.3} parent=5 // pred_fallthru
      _
  $region6: #{_lambda_.3} parent=0 // loop_footer
    %s24 = sadd.s32 1, %s20
  $region7: #{_lambda_.3} parent=0 // loop_footer_branch
    %19 = sbr.rel target = $region3
  $region8: #{_lambda_.3} parent=0 // loop_exit
    _

</llo_original>
